<compile_context>
chip_gen: v7x
topology: tpu7x:2x2x1
jax: 0.10.0
libtpu: 0.0.40
codegen_flags: <defaults>
</compile_context>

<pallas_src>
import functools

import jax
import jax.numpy as jnp
from jax.experimental import pallas as pl
from jax.experimental.pallas import tpu as pltpu

F32 = jnp.float32

# ------------------------- small synthetic BERT config -------------------------
VOCAB = 512        # stands in for the hard-coded 30522 vocab in the reference code
HIDDEN = 32
LAYERS = 2
HEADS = 4
INTER = 64
MAX_POS = 32
TYPE_VOCAB = 2
BATCH = 2
SEQ = 16
MAX_PRED = 4       # max_predictions_per_seq

# bf16 matmul inputs / bf16-stored weight matrices (perf review, all targets).
# All accumulation is f32 (preferred_element_type) and all VPU/EUP math (LayerNorm,
# softmax, GELU, mask add, losses) stays in f32.  Set both to jnp.float32 to
# reproduce the fp32 reference numerics as closely as possible.
MXU_INPUT_DTYPE = jnp.bfloat16
WEIGHT_DTYPE = jnp.bfloat16

_VMEM = pl.BlockSpec(memory_space=pltpu.MemorySpace.VMEM)
_SMEM = pl.BlockSpec(memory_space=pltpu.MemorySpace.SMEM)


# ----------------------------- in-kernel math helpers -----------------------------
def _mm(a, b):
    """MXU matmul with f32 accumulation (inputs down-cast to the MXU dtype)."""
    return jnp.dot(a.astype(MXU_INPUT_DTYPE), b.astype(MXU_INPUT_DTYPE),
                   preferred_element_type=jnp.float32)


def _mm_nt(a, b):
    """a @ b.T with f32 accumulation (contraction on the last dim of both)."""
    return jax.lax.dot_general(a.astype(MXU_INPUT_DTYPE), b.astype(MXU_INPUT_DTYPE),
                               (((1,), (1,)), ((), ())),
                               preferred_element_type=jnp.float32)


def _erf(x):
    # Abramowitz & Stegun 7.1.26: max abs err ~1.5e-7 (~f32 eps); lowers in Mosaic
    # with only exp/abs/select, so no runtime lax.erf probe is needed.
    a1, a2, a3, a4, a5 = 0.254829592, -0.284496736, 1.421413741, -1.453152027, 1.061405429
    p = 0.3275911
    s = jnp.where(x >= 0, 1.0, -1.0)
    z = jnp.abs(x)
    t = 1.0 / (1.0 + p * z)
    y = 1.0 - ((((a5 * t + a4) * t + a3) * t + a2) * t + a1) * t * jnp.exp(-z * z)
    return s * y


def _gelu(x):
    # exact (erf-based) GELU, matching torch.nn.GELU() default
    return 0.5 * x * (1.0 + _erf(x * 0.7071067811865476))


def _ln_op(x, g, b, eps):
    mu = jnp.mean(x, axis=-1, keepdims=True)
    xc = x - mu
    var = jnp.mean(xc * xc, axis=-1, keepdims=True)
    return xc * jax.lax.rsqrt(var + eps) * g + b


# --------------------------- fused BertModel + heads kernel ---------------------------
def _fused_bert_kernel(pos_ref, x_ref, bias_ref, embg_ref, embb_ref,
                       wqkv_ref, bqkv_ref, wo_ref, bo_ref, ln1g_ref, ln1b_ref,
                       wi_ref, bi_ref, wo2_ref, bo2_ref, ln2g_ref, ln2b_ref,
                       pw_ref, pb_ref, srw_ref, srb_ref,
                       rows_ref, nsp_ref,
                       *, B, S, NH, Dh, P, n_layers, scale, eps):
    """Embedding-LN -> all encoder layers -> pooler/NSP logits -> masked-row gather,
    fully VMEM-resident (single pallas_call)."""
    H = NH * Dh
    M = B * S

    # ---- BertEmbeddings LayerNorm on the whole (B*S, H) slab
    x = _ln_op(x_ref[...], embg_ref[...], embb_ref[...], eps)
    # TODO(synk): dropout layers are omitted (deterministic / eval-mode semantics).

    # ---- encoder layers (static unrolled loop; weights are (LAYERS, ...) stacked)
    for l in range(n_layers):
        # fused Q/K/V projection on the full slab: one (B*S, 3H) matmul
        qkv = _mm(x, wqkv_ref[l]) + bqkv_ref[l]

        ctx_blocks = []
        for b in range(B):                              # static, small batch
            qkv_b = qkv[b * S:(b + 1) * S, :]           # (S, 3H)
            bias_b = bias_ref[b]                        # (1, S) additive mask
            heads = []
            for h in range(NH):                         # static, unrolled
                lo = h * Dh
                qh = qkv_b[:, lo:lo + Dh]
                kh = qkv_b[:, H + lo:H + lo + Dh]
                vh = qkv_b[:, 2 * H + lo:2 * H + lo + Dh]
                s = _mm_nt(qh, kh) * scale + bias_b     # (S, S), f32
                s = s - jnp.max(s, axis=-1, keepdims=True)
                p = jnp.exp(s)
                p = p / jnp.sum(p, axis=-1, keepdims=True)
                heads.append(_mm(p, vh))                # (S, Dh)
            ctx_blocks.append(jnp.concatenate(heads, axis=1))   # (S, H)
        ctx = jnp.concatenate(ctx_blocks, axis=0)       # (B*S, H)

        attn = _mm(ctx, wo_ref[l]) + bo_ref[l]                          # output proj
        h1 = _ln_op(attn + x, ln1g_ref[l], ln1b_ref[l], eps)            # add + LN
        inter = _gelu(_mm(h1, wi_ref[l]) + bi_ref[l])                   # FFN up + GELU
        ffn = _mm(inter, wo2_ref[l]) + bo2_ref[l]                       # FFN down
        x = _ln_op(ffn + h1, ln2g_ref[l], ln2b_ref[l], eps)             # add + LN

    # ---- BertPooler + seq_relationship logits (fused epilogue, was its own launch)
    cls = jnp.concatenate([x[b * S:b * S + 1, :] for b in range(B)], axis=0)  # (B, H)
    pooled = jnp.tanh(_mm(cls, pw_ref[...]) + pb_ref[...])
    nsp_ref[...] = _mm(pooled, srw_ref[...]) + srb_ref[...]                   # (B, 2)

    # ---- gather the masked-LM rows here so last_hidden never round-trips via HBM.
    # Exact select-and-reduce gather (one-hot row mask + sublane reduction); positions
    # are read as scalars from SMEM.
    row_ids = jax.lax.broadcasted_iota(jnp.int32, (M, 1), 0)
    out_rows = []
    for b in range(B):
        for q in range(P):
            idx = b * S + pos_ref[b, q]
            out_rows.append(jnp.sum(jnp.where(row_ids == idx, x, 0.0),
                                    axis=0, keepdims=True))
    rows_ref[...] = jnp.concatenate(out_rows, axis=0)   # (B*P, H)


def fused_bert_encoder(x_emb, bias, positions, params):
    """x_emb: (B*S, H) pre-LN embeddings; bias: (B, 1, S); positions: (B, P) int32."""
    B = bias.shape[0]
    S = bias.shape[2]
    M, H = x_emb.shape
    P = positions.shape[1]
    kernel = functools.partial(
        _fused_bert_kernel, B=B, S=S, NH=HEADS, Dh=H // HEADS, P=P,
        n_layers=LAYERS, scale=1.0 / ((H // HEADS) ** 0.5), eps=1e-12)
    rows, nsp = pl.pallas_call(
        kernel,
        out_shape=(jax.ShapeDtypeStruct((B * P, H), F32),   # gathered masked-LM rows
                   jax.ShapeDtypeStruct((B, 2), F32)),       # NSP logits
        in_specs=[_SMEM] + [_VMEM] * 20,
        out_specs=(_VMEM, _VMEM),
        # TODO(synk): for v7x (2 TCs/chip) shard the batch with pl.core_map /
        # pltpu.CORE_PARALLEL; at real BERT sizes also set vmem_limit_bytes and
        # keep weights bf16 to fit its 64 MiB VMEM.
    )(positions, x_emb, bias,
      params["emb_ln_g"], params["emb_ln_b"],
      params["wqkv"], params["bqkv"], params["wo"], params["bo"],
      params["ln1_g"], params["ln1_b"],
      params["wi"], params["bi"], params["wo2"], params["bo2"],
      params["ln2_g"], params["ln2_b"],
      params["pool_w"], params["pool_b"], params["sr_w"], params["sr_b"])
    return rows, nsp


# ----------------------------- fused MLM head + loss kernel -----------------------------
def _mlm_head_kernel(x_ref, trw_ref, trb_ref, lng_ref, lnb_ref,
                     decw_ref, decb_ref, lab_ref, w_ref, loss_ref,
                     t_sc, m_sc, l_sc, tgt_sc, *, eps, tn):
    """Transform + vocab projection (tiled over vocab) + online-LSE cross-entropy
    + weighted loss reduction, all fused; only the masked rows are processed."""
    j = pl.program_id(0)

    @pl.when(j == 0)
    def _():
        # BertPredictionHeadTransform on the gathered rows, cached in VMEM scratch.
        y = _mm(x_ref[...], trw_ref[...]) + trb_ref[...]
        t_sc[...] = _ln_op(_gelu(y), lng_ref[...], lnb_ref[...], eps)
        m_sc[...] = jnp.full(m_sc.shape, -jnp.inf, m_sc.dtype)
        l_sc[...] = jnp.zeros(l_sc.shape, l_sc.dtype)
        tgt_sc[...] = jnp.zeros(tgt_sc.shape, tgt_sc.dtype)

    logits = _mm(t_sc[...], decw_ref[...]) + decb_ref[...]            # (R, tn), f32
    col = jax.lax.broadcasted_iota(jnp.int32, logits.shape, 1) + j * tn
    # direct label-logit gather (iota compare) — no (R, V) one-hot materialized
    tgt_sc[...] += jnp.sum(jnp.where(col == lab_ref[...], logits, 0.0),
                           axis=-1, keepdims=True)
    # online log-sum-exp across vocab tiles (kept in f32)
    m_new = jnp.maximum(m_sc[...], jnp.max(logits, axis=-1, keepdims=True))
    l_sc[...] = l_sc[...] * jnp.exp(m_sc[...] - m_new) + jnp.sum(
        jnp.exp(logits - m_new), axis=-1, keepdims=True)
    m_sc[...] = m_new

    @pl.when(j == pl.num_programs(0) - 1)
    def _():
        per_row = (m_sc[...] + jnp.log(l_sc[...])) - tgt_sc[...]      # (R, 1) CE losses
        w = w_ref[...]
        loss_ref[0, 0] = jnp.sum(per_row * w) / (jnp.sum(w) + 1e-5)


def mlm_loss_fused(rows, labels, weights, trw, trb, lng, lnb, decw, decb,
                   *, tn=2048, eps=1e-5):
    """rows: (R, H) gathered masked positions; labels/weights: (R, 1)."""
    R, H = rows.shape
    V = decw.shape[1]
    tn = min(tn, V)                 # big lane-dense vocab tiles (perf review)
    Vp = pl.cdiv(V, tn) * tn
    if Vp != V:                     # pad vocab to a tile multiple instead of asserting
        decw = jnp.pad(decw, ((0, 0), (0, Vp - V)))
        decb = jnp.pad(decb, ((0, 0), (0, Vp - V)), constant_values=-1e30)  # f32-safe
    inv = lambda j: (0, 0)
    loss = pl.pallas_call(
        functools.partial(_mlm_head_kernel, eps=eps, tn=tn),
        out_shape=jax.ShapeDtypeStruct((1, 1), F32),
        grid=(Vp // tn,),
        in_specs=[
            pl.BlockSpec((R, H), inv),                        # gathered hidden rows
            pl.BlockSpec((H, H), inv),                        # transform dense w
            pl.BlockSpec((1, H), inv),                        # transform dense b
            pl.BlockSpec((1, H), inv),                        # transform LN gamma
            pl.BlockSpec((1, H), inv),                        # transform LN beta
            pl.BlockSpec((H, tn), lambda j: (0, j)),          # decoder weight tile
            pl.BlockSpec((1, tn), lambda j: (0, j)),          # decoder bias tile
            pl.BlockSpec((R, 1), inv),                        # labels (int32)
            pl.BlockSpec((R, 1), inv),                        # label weights
        ],
        out_specs=pl.BlockSpec(memory_space=pltpu.MemorySpace.SMEM),
        scratch_shapes=[
            pltpu.VMEM((R, H), F32),   # cached transformed rows
            pltpu.VMEM((R, 1), F32),   # running max
            pltpu.VMEM((R, 1), F32),   # running sum-exp
            pltpu.VMEM((R, 1), F32),   # target-logit accumulator
        ],
        compiler_params=pltpu.CompilerParams(dimension_semantics=("arbitrary",)),
    )(rows, trw, trb, lng, lnb, decw, decb, labels, weights)
    return loss[0, 0]


# ------------------------------------ parameters ------------------------------------
def init_params(key):
    keys = iter(jax.random.split(key, 64))

    def nrm(shape, dtype=WEIGHT_DTYPE, scale=0.02):
        return (scale * jax.random.normal(next(keys), shape)).astype(dtype)

    def stack(make):
        return jnp.stack([make() for _ in range(LAYERS)])

    H, I = HIDDEN, INTER
    return {
        # embeddings (gathered by XLA, kept f32)
        "word_emb": nrm((VOCAB, H), F32),
        "pos_emb": nrm((MAX_POS, H), F32),
        "type_emb": nrm((TYPE_VOCAB, H), F32),
        "emb_ln_g": jnp.ones((1, H), F32), "emb_ln_b": jnp.zeros((1, H), F32),
        # stacked encoder-layer weights: big matrices in WEIGHT_DTYPE (bf16),
        # biases / LayerNorm params in f32
        "wqkv": stack(lambda: nrm((H, 3 * H))),
        "bqkv": jnp.zeros((LAYERS, 1, 3 * H), F32),
        "wo": stack(lambda: nrm((H, H))),
        "bo": jnp.zeros((LAYERS, 1, H), F32),
        "ln1_g": jnp.ones((LAYERS, 1, H), F32), "ln1_b": jnp.zeros((LAYERS, 1, H), F32),
        "wi": stack(lambda: nrm((H, I))),
        "bi": jnp.zeros((LAYERS, 1, I), F32),
        "wo2": stack(lambda: nrm((I, H))),
        "bo2": jnp.zeros((LAYERS, 1, H), F32),
        "ln2_g": jnp.ones((LAYERS, 1, H), F32), "ln2_b": jnp.zeros((LAYERS, 1, H), F32),
        # pooler + NSP head
        "pool_w": nrm((H, H)), "pool_b": jnp.zeros((1, H), F32),
        "sr_w": nrm((H, 2)), "sr_b": jnp.zeros((1, 2), F32),
        # MLM head (BertPredictionHeadTransform + decoder)
        "tr_w": nrm((H, H)), "tr_b": jnp.zeros((1, H), F32),
        "tr_ln_g": jnp.ones((1, H), F32), "tr_ln_b": jnp.zeros((1, H), F32),
        "dec_w": nrm((H, VOCAB)), "dec_b": jnp.zeros((1, VOCAB), F32),
    }


# -------------------------------------- forward --------------------------------------
def bert_further_forward(params, input_ids, token_type_ids, attention_mask,
                         label, masked_lm_ids, masked_lm_positions, masked_lm_weights):
    B, S = input_ids.shape
    H = HIDDEN

    # ---- BertModel.embeddings: table lookups stay in XLA (no Pallas win); everything
    # from the embedding LayerNorm to the masked-row gather runs in ONE fused kernel.
    pos_ids = jnp.arange(S, dtype=jnp.int32)
    x = (params["word_emb"][input_ids]
         + params["pos_emb"][pos_ids][None, :, :]
         + params["type_emb"][token_type_ids]).astype(F32)

    # extended attention mask -> additive bias (B, 1, S), kept in f32
    bias = ((1.0 - attention_mask.astype(F32)) * -1e9).reshape(B, 1, S)

    mlm_rows, nsp_logits = fused_bert_encoder(
        x.reshape(B * S, H), bias, masked_lm_positions.astype(jnp.int32), params)

    # ---- NSP 2-class cross-entropy (reduction='mean'): nanoseconds of work -> plain JAX
    lbl = label.astype(jnp.int32)
    m = jnp.max(nsp_logits, axis=-1, keepdims=True)
    lse = jnp.log(jnp.sum(jnp.exp(nsp_logits - m), axis=-1, keepdims=True)) + m
    tgt = jnp.take_along_axis(nsp_logits, lbl[:, None], axis=-1)
    next_sentence_loss = jnp.mean(lse - tgt)

    # ---- masked-LM loss on the pre-gathered rows (mathematically identical to the
    # reference's full (B, S, V) projection followed by torch.gather along dim=1).
    # NOTE: the transform-head LayerNorm uses eps=1e-5 — the spec constructs
    # nn.LayerNorm(hidden_size) with PyTorch's default eps.
    masked_lm_loss = mlm_loss_fused(
        mlm_rows,
        masked_lm_ids.reshape(-1, 1).astype(jnp.int32),
        masked_lm_weights.reshape(-1, 1).astype(F32),
        params["tr_w"], params["tr_b"], params["tr_ln_g"], params["tr_ln_b"],
        params["dec_w"], params["dec_b"], eps=1e-5)
    # (the reference also computes an unused `sum_label_weight`; skipped — dead code)

    return next_sentence_loss + masked_lm_loss


# ---------------------------------------- main ----------------------------------------
if __name__ == "__main__":
    key = jax.random.PRNGKey(0)
    pkey, k1, k2, k3, k4, k5 = jax.random.split(key, 6)
    params = init_params(pkey)

    input_ids = jax.random.randint(k1, (BATCH, SEQ), 0, VOCAB, dtype=jnp.int32)
    token_type_ids = jax.random.randint(k2, (BATCH, SEQ), 0, TYPE_VOCAB, dtype=jnp.int32)
    attention_mask = jnp.ones((BATCH, SEQ), jnp.int32).at[1, SEQ - 3:].set(0)
    label = jax.random.randint(k3, (BATCH,), 0, 2, dtype=jnp.int32)
    masked_lm_positions = jax.random.randint(k4, (BATCH, MAX_PRED), 0, SEQ, dtype=jnp.int32)
    masked_lm_ids = jax.random.randint(k5, (BATCH, MAX_PRED), 0, VOCAB, dtype=jnp.int32)
    masked_lm_weights = jnp.ones((BATCH, MAX_PRED), F32).at[1, -1].set(0.0)

    fwd = jax.jit(bert_further_forward)
    total_loss = fwd(params, input_ids, token_type_ids, attention_mask,
                     label, masked_lm_ids, masked_lm_positions, masked_lm_weights)
    jax.block_until_ready(total_loss)
    assert total_loss.shape == () and bool(jnp.isfinite(total_loss))
    print("KERNEL_OK")
</pallas_src>

<mosaic_0001>
module attributes {stable_mosaic.version = 11 : i64} {
  func.func @_fused_bert_kernel(%arg0: memref<2x4xi32, #tpu.memory_space<smem>>, %arg1: memref<32x32xf32, #tpu.memory_space<vmem>>, %arg2: memref<2x1x16xf32, #tpu.memory_space<vmem>>, %arg3: memref<1x32xf32, #tpu.memory_space<vmem>>, %arg4: memref<1x32xf32, #tpu.memory_space<vmem>>, %arg5: memref<2x32x96xbf16, #tpu.memory_space<vmem>>, %arg6: memref<2x1x96xf32, #tpu.memory_space<vmem>>, %arg7: memref<2x32x32xbf16, #tpu.memory_space<vmem>>, %arg8: memref<2x1x32xf32, #tpu.memory_space<vmem>>, %arg9: memref<2x1x32xf32, #tpu.memory_space<vmem>>, %arg10: memref<2x1x32xf32, #tpu.memory_space<vmem>>, %arg11: memref<2x32x64xbf16, #tpu.memory_space<vmem>>, %arg12: memref<2x1x64xf32, #tpu.memory_space<vmem>>, %arg13: memref<2x64x32xbf16, #tpu.memory_space<vmem>>, %arg14: memref<2x1x32xf32, #tpu.memory_space<vmem>>, %arg15: memref<2x1x32xf32, #tpu.memory_space<vmem>>, %arg16: memref<2x1x32xf32, #tpu.memory_space<vmem>>, %arg17: memref<32x32xbf16, #tpu.memory_space<vmem>>, %arg18: memref<1x32xf32, #tpu.memory_space<vmem>>, %arg19: memref<32x2xbf16, #tpu.memory_space<vmem>>, %arg20: memref<1x2xf32, #tpu.memory_space<vmem>>, %arg21: memref<8x32xf32, #tpu.memory_space<vmem>>, %arg22: memref<2x2xf32, #tpu.memory_space<vmem>>) attributes {dimension_semantics = [], scalar_prefetch = 0 : i64, scratch_operands = 0 : i64, tpu.core_type = #tpu.core_type<tc>} {
    %c0 = arith.constant 0 : index
    %c0_0 = arith.constant 0 : index
    %0 = vector.load %arg1[%c0, %c0_0] : memref<32x32xf32, #tpu.memory_space<vmem>>, vector<32x32xf32>
    %c0_1 = arith.constant 0 : index
    %c0_2 = arith.constant 0 : index
    %1 = vector.load %arg3[%c0_1, %c0_2] : memref<1x32xf32, #tpu.memory_space<vmem>>, vector<1x32xf32>
    %c0_3 = arith.constant 0 : index
    %c0_4 = arith.constant 0 : index
    %2 = vector.load %arg4[%c0_3, %c0_4] : memref<1x32xf32, #tpu.memory_space<vmem>>, vector<1x32xf32>
    %cst = arith.constant dense<0.000000e+00> : vector<32xf32>
    %3 = vector.multi_reduction <add>, %0, %cst [1] : vector<32x32xf32> to vector<32xf32>
    %4 = vector.shape_cast %3 : vector<32xf32> to vector<32x1xf32>
    %cst_5 = arith.constant 3.200000e+01 : f32
    %5 = vector.broadcast %cst_5 : f32 to vector<32x1xf32>
    %6 = arith.divf %4, %5 : vector<32x1xf32>
    %7 = vector.broadcast %6 : vector<32x1xf32> to vector<32x32xf32>
    %8 = arith.subf %0, %7 : vector<32x32xf32>
    %9 = arith.mulf %8, %8 : vector<32x32xf32>
    %cst_6 = arith.constant dense<0.000000e+00> : vector<32xf32>
    %10 = vector.multi_reduction <add>, %9, %cst_6 [1] : vector<32x32xf32> to vector<32xf32>
    %11 = vector.shape_cast %10 : vector<32xf32> to vector<32x1xf32>
    %cst_7 = arith.constant 3.200000e+01 : f32
    %12 = vector.broadcast %cst_7 : f32 to vector<32x1xf32>
    %13 = arith.divf %11, %12 : vector<32x1xf32>
    %cst_8 = arith.constant 9.99999996E-13 : f32
    %14 = vector.broadcast %cst_8 : f32 to vector<32x1xf32>
    %15 = arith.addf %13, %14 : vector<32x1xf32>
    %16 = math.rsqrt %15 : vector<32x1xf32>
    %17 = vector.broadcast %16 : vector<32x1xf32> to vector<32x32xf32>
    %18 = arith.mulf %8, %17 : vector<32x32xf32>
    %19 = vector.broadcast %1 : vector<1x32xf32> to vector<32x32xf32>
    %20 = arith.mulf %18, %19 : vector<32x32xf32>
    %21 = vector.broadcast %2 : vector<1x32xf32> to vector<32x32xf32>
    %22 = arith.addf %20, %21 : vector<32x32xf32>
    %c0_9 = arith.constant 0 : index
    %c0_10 = arith.constant 0 : index
    %c0_11 = arith.constant 0 : index
    %23 = vector.load %arg5[%c0_9, %c0_10, %c0_11] : memref<2x32x96xbf16, #tpu.memory_space<vmem>>, vector<1x32x96xbf16>
    %24 = vector.shape_cast %23 : vector<1x32x96xbf16> to vector<32x96xbf16>
    %25 = arith.truncf %22 : vector<32x32xf32> to vector<32x32xbf16>
    %cst_12 = arith.constant dense<0.000000e+00> : vector<32x96xf32>
    %26 = tpu.matmul %25, %24, %cst_12 {dimension_numbers = #tpu.dot_dimension_numbers<[1], [0], [0], [1], [0, 0, 1, 1], [], []>} : vector<32x32xbf16>, vector<32x96xbf16>, vector<32x96xf32> -> vector<32x96xf32>
    %c0_13 = arith.constant 0 : index
    %c0_14 = arith.constant 0 : index
    %c0_15 = arith.constant 0 : index
    %27 = vector.load %arg6[%c0_13, %c0_14, %c0_15] : memref<2x1x96xf32, #tpu.memory_space<vmem>>, vector<1x1x96xf32>
    %28 = vector.shape_cast %27 : vector<1x1x96xf32> to vector<1x96xf32>
    %29 = vector.broadcast %28 : vector<1x96xf32> to vector<32x96xf32>
    %30 = arith.addf %26, %29 : vector<32x96xf32>
    %31 = vector.extract_strided_slice %30 {offsets = [0, 0], sizes = [16, 96], strides = [1, 1]} : vector<32x96xf32> to vector<16x96xf32>
    %c0_16 = arith.constant 0 : index
    %c0_17 = arith.constant 0 : index
    %c0_18 = arith.constant 0 : index
    %32 = vector.load %arg2[%c0_16, %c0_17, %c0_18] : memref<2x1x16xf32, #tpu.memory_space<vmem>>, vector<1x1x16xf32>
    %33 = vector.shape_cast %32 : vector<1x1x16xf32> to vector<1x16xf32>
    %34 = vector.extract_strided_slice %31 {offsets = [0, 0], sizes = [16, 8], strides = [1, 1]} : vector<16x96xf32> to vector<16x8xf32>
    %35 = vector.extract_strided_slice %31 {offsets = [0, 32], sizes = [16, 8], strides = [1, 1]} : vector<16x96xf32> to vector<16x8xf32>
    %36 = vector.extract_strided_slice %31 {offsets = [0, 64], sizes = [16, 8], strides = [1, 1]} : vector<16x96xf32> to vector<16x8xf32>
    %37 = arith.truncf %34 : vector<16x8xf32> to vector<16x8xbf16>
    %38 = arith.truncf %35 : vector<16x8xf32> to vector<16x8xbf16>
    %cst_19 = arith.constant dense<0.000000e+00> : vector<16x16xf32>
    %39 = tpu.matmul %37, %38, %cst_19 {dimension_numbers = #tpu.dot_dimension_numbers<[1], [1], [0], [0], [0, 0, 1, 0], [], []>} : vector<16x8xbf16>, vector<16x8xbf16>, vector<16x16xf32> -> vector<16x16xf32>
    %cst_20 = arith.constant 0.353553385 : f32
    %40 = vector.broadcast %cst_20 : f32 to vector<16x16xf32>
    %41 = arith.mulf %39, %40 : vector<16x16xf32>
    %42 = vector.broadcast %33 : vector<1x16xf32> to vector<16x16xf32>
    %43 = arith.addf %41, %42 : vector<16x16xf32>
    %cst_21 = arith.constant dense<0xFF800000> : vector<16xf32>
    %44 = vector.multi_reduction <maximumf>, %43, %cst_21 [1] : vector<16x16xf32> to vector<16xf32>
    %45 = vector.shape_cast %44 : vector<16xf32> to vector<16x1xf32>
    %46 = vector.broadcast %45 : vector<16x1xf32> to vector<16x16xf32>
    %47 = arith.subf %43, %46 : vector<16x16xf32>
    %48 = math.exp %47 : vector<16x16xf32>
    %cst_22 = arith.constant dense<0.000000e+00> : vector<16xf32>
    %49 = vector.multi_reduction <add>, %48, %cst_22 [1] : vector<16x16xf32> to vector<16xf32>
    %50 = vector.shape_cast %49 : vector<16xf32> to vector<16x1xf32>
    %51 = vector.broadcast %50 : vector<16x1xf32> to vector<16x16xf32>
    %52 = arith.divf %48, %51 : vector<16x16xf32>
    %53 = arith.truncf %52 : vector<16x16xf32> to vector<16x16xbf16>
    %54 = arith.truncf %36 : vector<16x8xf32> to vector<16x8xbf16>
    %cst_23 = arith.constant dense<0.000000e+00> : vector<16x8xf32>
    %55 = tpu.matmul %53, %54, %cst_23 {dimension_numbers = #tpu.dot_dimension_numbers<[1], [0], [0], [1], [0, 0, 1, 1], [], []>} : vector<16x16xbf16>, vector<16x8xbf16>, vector<16x8xf32> -> vector<16x8xf32>
    %56 = vector.extract_strided_slice %31 {offsets = [0, 8], sizes = [16, 8], strides = [1, 1]} : vector<16x96xf32> to vector<16x8xf32>
    %57 = vector.extract_strided_slice %31 {offsets = [0, 40], sizes = [16, 8], strides = [1, 1]} : vector<16x96xf32> to vector<16x8xf32>
    %58 = vector.extract_strided_slice %31 {offsets = [0, 72], sizes = [16, 8], strides = [1, 1]} : vector<16x96xf32> to vector<16x8xf32>
    %59 = arith.truncf %56 : vector<16x8xf32> to vector<16x8xbf16>
    %60 = arith.truncf %57 : vector<16x8xf32> to vector<16x8xbf16>
    %cst_24 = arith.constant dense<0.000000e+00> : vector<16x16xf32>
    %61 = tpu.matmul %59, %60, %cst_24 {dimension_numbers = #tpu.dot_dimension_numbers<[1], [1], [0], [0], [0, 0, 1, 0], [], []>} : vector<16x8xbf16>, vector<16x8xbf16>, vector<16x16xf32> -> vector<16x16xf32>
    %cst_25 = arith.constant 0.353553385 : f32
    %62 = vector.broadcast %cst_25 : f32 to vector<16x16xf32>
    %63 = arith.mulf %61, %62 : vector<16x16xf32>
    %64 = vector.broadcast %33 : vector<1x16xf32> to vector<16x16xf32>
    %65 = arith.addf %63, %64 : vector<16x16xf32>
    %cst_26 = arith.constant dense<0xFF800000> : vector<16xf32>
    %66 = vector.multi_reduction <maximumf>, %65, %cst_26 [1] : vector<16x16xf32> to vector<16xf32>
    %67 = vector.shape_cast %66 : vector<16xf32> to vector<16x1xf32>
    %68 = vector.broadcast %67 : vector<16x1xf32> to vector<16x16xf32>
    %69 = arith.subf %65, %68 : vector<16x16xf32>
    %70 = math.exp %69 : vector<16x16xf32>
    %cst_27 = arith.constant dense<0.000000e+00> : vector<16xf32>
    %71 = vector.multi_reduction <add>, %70, %cst_27 [1] : vector<16x16xf32> to vector<16xf32>
    %72 = vector.shape_cast %71 : vector<16xf32> to vector<16x1xf32>
    %73 = vector.broadcast %72 : vector<16x1xf32> to vector<16x16xf32>
    %74 = arith.divf %70, %73 : vector<16x16xf32>
    %75 = arith.truncf %74 : vector<16x16xf32> to vector<16x16xbf16>
    %76 = arith.truncf %58 : vector<16x8xf32> to vector<16x8xbf16>
    %cst_28 = arith.constant dense<0.000000e+00> : vector<16x8xf32>
    %77 = tpu.matmul %75, %76, %cst_28 {dimension_numbers = #tpu.dot_dimension_numbers<[1], [0], [0], [1], [0, 0, 1, 1], [], []>} : vector<16x16xbf16>, vector<16x8xbf16>, vector<16x8xf32> -> vector<16x8xf32>
    %78 = vector.extract_strided_slice %31 {offsets = [0, 16], sizes = [16, 8], strides = [1, 1]} : vector<16x96xf32> to vector<16x8xf32>
    %79 = vector.extract_strided_slice %31 {offsets = [0, 48], sizes = [16, 8], strides = [1, 1]} : vector<16x96xf32> to vector<16x8xf32>
    %80 = vector.extract_strided_slice %31 {offsets = [0, 80], sizes = [16, 8], strides = [1, 1]} : vector<16x96xf32> to vector<16x8xf32>
    %81 = arith.truncf %78 : vector<16x8xf32> to vector<16x8xbf16>
    %82 = arith.truncf %79 : vector<16x8xf32> to vector<16x8xbf16>
    %cst_29 = arith.constant dense<0.000000e+00> : vector<16x16xf32>
    %83 = tpu.matmul %81, %82, %cst_29 {dimension_numbers = #tpu.dot_dimension_numbers<[1], [1], [0], [0], [0, 0, 1, 0], [], []>} : vector<16x8xbf16>, vector<16x8xbf16>, vector<16x16xf32> -> vector<16x16xf32>
    %cst_30 = arith.constant 0.353553385 : f32
    %84 = vector.broadcast %cst_30 : f32 to vector<16x16xf32>
    %85 = arith.mulf %83, %84 : vector<16x16xf32>
    %86 = vector.broadcast %33 : vector<1x16xf32> to vector<16x16xf32>
    %87 = arith.addf %85, %86 : vector<16x16xf32>
    %cst_31 = arith.constant dense<0xFF800000> : vector<16xf32>
    %88 = vector.multi_reduction <maximumf>, %87, %cst_31 [1] : vector<16x16xf32> to vector<16xf32>
    %89 = vector.shape_cast %88 : vector<16xf32> to vector<16x1xf32>
    %90 = vector.broadcast %89 : vector<16x1xf32> to vector<16x16xf32>
    %91 = arith.subf %87, %90 : vector<16x16xf32>
    %92 = math.exp %91 : vector<16x16xf32>
    %cst_32 = arith.constant dense<0.000000e+00> : vector<16xf32>
    %93 = vector.multi_reduction <add>, %92, %cst_32 [1] : vector<16x16xf32> to vector<16xf32>
    %94 = vector.shape_cast %93 : vector<16xf32> to vector<16x1xf32>
    %95 = vector.broadcast %94 : vector<16x1xf32> to vector<16x16xf32>
    %96 = arith.divf %92, %95 : vector<16x16xf32>
    %97 = arith.truncf %96 : vector<16x16xf32> to vector<16x16xbf16>
    %98 = arith.truncf %80 : vector<16x8xf32> to vector<16x8xbf16>
    %cst_33 = arith.constant dense<0.000000e+00> : vector<16x8xf32>
    %99 = tpu.matmul %97, %98, %cst_33 {dimension_numbers = #tpu.dot_dimension_numbers<[1], [0], [0], [1], [0, 0, 1, 1], [], []>} : vector<16x16xbf16>, vector<16x8xbf16>, vector<16x8xf32> -> vector<16x8xf32>
    %100 = vector.extract_strided_slice %31 {offsets = [0, 24], sizes = [16, 8], strides = [1, 1]} : vector<16x96xf32> to vector<16x8xf32>
    %101 = vector.extract_strided_slice %31 {offsets = [0, 56], sizes = [16, 8], strides = [1, 1]} : vector<16x96xf32> to vector<16x8xf32>
    %102 = vector.extract_strided_slice %31 {offsets = [0, 88], sizes = [16, 8], strides = [1, 1]} : vector<16x96xf32> to vector<16x8xf32>
    %103 = arith.truncf %100 : vector<16x8xf32> to vector<16x8xbf16>
    %104 = arith.truncf %101 : vector<16x8xf32> to vector<16x8xbf16>
    %cst_34 = arith.constant dense<0.000000e+00> : vector<16x16xf32>
    %105 = tpu.matmul %103, %104, %cst_34 {dimension_numbers = #tpu.dot_dimension_numbers<[1], [1], [0], [0], [0, 0, 1, 0], [], []>} : vector<16x8xbf16>, vector<16x8xbf16>, vector<16x16xf32> -> vector<16x16xf32>
    %cst_35 = arith.constant 0.353553385 : f32
    %106 = vector.broadcast %cst_35 : f32 to vector<16x16xf32>
    %107 = arith.mulf %105, %106 : vector<16x16xf32>
    %108 = vector.broadcast %33 : vector<1x16xf32> to vector<16x16xf32>
    %109 = arith.addf %107, %108 : vector<16x16xf32>
    %cst_36 = arith.constant dense<0xFF800000> : vector<16xf32>
    %110 = vector.multi_reduction <maximumf>, %109, %cst_36 [1] : vector<16x16xf32> to vector<16xf32>
    %111 = vector.shape_cast %110 : vector<16xf32> to vector<16x1xf32>
    %112 = vector.broadcast %111 : vector<16x1xf32> to vector<16x16xf32>
    %113 = arith.subf %109, %112 : vector<16x16xf32>
    %114 = math.exp %113 : vector<16x16xf32>
    %cst_37 = arith.constant dense<0.000000e+00> : vector<16xf32>
    %115 = vector.multi_reduction <add>, %114, %cst_37 [1] : vector<16x16xf32> to vector<16xf32>
    %116 = vector.shape_cast %115 : vector<16xf32> to vector<16x1xf32>
    %117 = vector.broadcast %116 : vector<16x1xf32> to vector<16x16xf32>
    %118 = arith.divf %114, %117 : vector<16x16xf32>
    %119 = arith.truncf %118 : vector<16x16xf32> to vector<16x16xbf16>
    %120 = arith.truncf %102 : vector<16x8xf32> to vector<16x8xbf16>
    %cst_38 = arith.constant dense<0.000000e+00> : vector<16x8xf32>
    %121 = tpu.matmul %119, %120, %cst_38 {dimension_numbers = #tpu.dot_dimension_numbers<[1], [0], [0], [1], [0, 0, 1, 1], [], []>} : vector<16x16xbf16>, vector<16x8xbf16>, vector<16x8xf32> -> vector<16x8xf32>
    %122 = tpu.concatenate %55, %77, %99, %121 in 1 : vector<16x8xf32>, vector<16x8xf32>, vector<16x8xf32>, vector<16x8xf32> -> vector<16x32xf32>
    %123 = vector.extract_strided_slice %30 {offsets = [16, 0], sizes = [16, 96], strides = [1, 1]} : vector<32x96xf32> to vector<16x96xf32>
    %c1 = arith.constant 1 : index
    %c0_39 = arith.constant 0 : index
    %c0_40 = arith.constant 0 : index
    %124 = vector.load %arg2[%c1, %c0_39, %c0_40] : memref<2x1x16xf32, #tpu.memory_space<vmem>>, vector<1x1x16xf32>
    %125 = vector.shape_cast %124 : vector<1x1x16xf32> to vector<1x16xf32>
    %126 = vector.extract_strided_slice %123 {offsets = [0, 0], sizes = [16, 8], strides = [1, 1]} : vector<16x96xf32> to vector<16x8xf32>
    %127 = vector.extract_strided_slice %123 {offsets = [0, 32], sizes = [16, 8], strides = [1, 1]} : vector<16x96xf32> to vector<16x8xf32>
    %128 = vector.extract_strided_slice %123 {offsets = [0, 64], sizes = [16, 8], strides = [1, 1]} : vector<16x96xf32> to vector<16x8xf32>
    %129 = arith.truncf %126 : vector<16x8xf32> to vector<16x8xbf16>
    %130 = arith.truncf %127 : vector<16x8xf32> to vector<16x8xbf16>
    %cst_41 = arith.constant dense<0.000000e+00> : vector<16x16xf32>
    %131 = tpu.matmul %129, %130, %cst_41 {dimension_numbers = #tpu.dot_dimension_numbers<[1], [1], [0], [0], [0, 0, 1, 0], [], []>} : vector<16x8xbf16>, vector<16x8xbf16>, vector<16x16xf32> -> vector<16x16xf32>
    %cst_42 = arith.constant 0.353553385 : f32
    %132 = vector.broadcast %cst_42 : f32 to vector<16x16xf32>
    %133 = arith.mulf %131, %132 : vector<16x16xf32>
    %134 = vector.broadcast %125 : vector<1x16xf32> to vector<16x16xf32>
    %135 = arith.addf %133, %134 : vector<16x16xf32>
    %cst_43 = arith.constant dense<0xFF800000> : vector<16xf32>
    %136 = vector.multi_reduction <maximumf>, %135, %cst_43 [1] : vector<16x16xf32> to vector<16xf32>
    %137 = vector.shape_cast %136 : vector<16xf32> to vector<16x1xf32>
    %138 = vector.broadcast %137 : vector<16x1xf32> to vector<16x16xf32>
    %139 = arith.subf %135, %138 : vector<16x16xf32>
    %140 = math.exp %139 : vector<16x16xf32>
    %cst_44 = arith.constant dense<0.000000e+00> : vector<16xf32>
    %141 = vector.multi_reduction <add>, %140, %cst_44 [1] : vector<16x16xf32> to vector<16xf32>
    %142 = vector.shape_cast %141 : vector<16xf32> to vector<16x1xf32>
    %143 = vector.broadcast %142 : vector<16x1xf32> to vector<16x16xf32>
    %144 = arith.divf %140, %143 : vector<16x16xf32>
    %145 = arith.truncf %144 : vector<16x16xf32> to vector<16x16xbf16>
    %146 = arith.truncf %128 : vector<16x8xf32> to vector<16x8xbf16>
    %cst_45 = arith.constant dense<0.000000e+00> : vector<16x8xf32>
    %147 = tpu.matmul %145, %146, %cst_45 {dimension_numbers = #tpu.dot_dimension_numbers<[1], [0], [0], [1], [0, 0, 1, 1], [], []>} : vector<16x16xbf16>, vector<16x8xbf16>, vector<16x8xf32> -> vector<16x8xf32>
    %148 = vector.extract_strided_slice %123 {offsets = [0, 8], sizes = [16, 8], strides = [1, 1]} : vector<16x96xf32> to vector<16x8xf32>
    %149 = vector.extract_strided_slice %123 {offsets = [0, 40], sizes = [16, 8], strides = [1, 1]} : vector<16x96xf32> to vector<16x8xf32>
    %150 = vector.extract_strided_slice %123 {offsets = [0, 72], sizes = [16, 8], strides = [1, 1]} : vector<16x96xf32> to vector<16x8xf32>
    %151 = arith.truncf %148 : vector<16x8xf32> to vector<16x8xbf16>
    %152 = arith.truncf %149 : vector<16x8xf32> to vector<16x8xbf16>
    %cst_46 = arith.constant dense<0.000000e+00> : vector<16x16xf32>
    %153 = tpu.matmul %151, %152, %cst_46 {dimension_numbers = #tpu.dot_dimension_numbers<[1], [1], [0], [0], [0, 0, 1, 0], [], []>} : vector<16x8xbf16>, vector<16x8xbf16>, vector<16x16xf32> -> vector<16x16xf32>
    %cst_47 = arith.constant 0.353553385 : f32
    %154 = vector.broadcast %cst_47 : f32 to vector<16x16xf32>
    %155 = arith.mulf %153, %154 : vector<16x16xf32>
    %156 = vector.broadcast %125 : vector<1x16xf32> to vector<16x16xf32>
    %157 = arith.addf %155, %156 : vector<16x16xf32>
    %cst_48 = arith.constant dense<0xFF800000> : vector<16xf32>
    %158 = vector.multi_reduction <maximumf>, %157, %cst_48 [1] : vector<16x16xf32> to vector<16xf32>
    %159 = vector.shape_cast %158 : vector<16xf32> to vector<16x1xf32>
    %160 = vector.broadcast %159 : vector<16x1xf32> to vector<16x16xf32>
    %161 = arith.subf %157, %160 : vector<16x16xf32>
    %162 = math.exp %161 : vector<16x16xf32>
    %cst_49 = arith.constant dense<0.000000e+00> : vector<16xf32>
    %163 = vector.multi_reduction <add>, %162, %cst_49 [1] : vector<16x16xf32> to vector<16xf32>
    %164 = vector.shape_cast %163 : vector<16xf32> to vector<16x1xf32>
    %165 = vector.broadcast %164 : vector<16x1xf32> to vector<16x16xf32>
    %166 = arith.divf %162, %165 : vector<16x16xf32>
    %167 = arith.truncf %166 : vector<16x16xf32> to vector<16x16xbf16>
    %168 = arith.truncf %150 : vector<16x8xf32> to vector<16x8xbf16>
    %cst_50 = arith.constant dense<0.000000e+00> : vector<16x8xf32>
    %169 = tpu.matmul %167, %168, %cst_50 {dimension_numbers = #tpu.dot_dimension_numbers<[1], [0], [0], [1], [0, 0, 1, 1], [], []>} : vector<16x16xbf16>, vector<16x8xbf16>, vector<16x8xf32> -> vector<16x8xf32>
    %170 = vector.extract_strided_slice %123 {offsets = [0, 16], sizes = [16, 8], strides = [1, 1]} : vector<16x96xf32> to vector<16x8xf32>
    %171 = vector.extract_strided_slice %123 {offsets = [0, 48], sizes = [16, 8], strides = [1, 1]} : vector<16x96xf32> to vector<16x8xf32>
    %172 = vector.extract_strided_slice %123 {offsets = [0, 80], sizes = [16, 8], strides = [1, 1]} : vector<16x96xf32> to vector<16x8xf32>
    %173 = arith.truncf %170 : vector<16x8xf32> to vector<16x8xbf16>
    %174 = arith.truncf %171 : vector<16x8xf32> to vector<16x8xbf16>
    %cst_51 = arith.constant dense<0.000000e+00> : vector<16x16xf32>
    %175 = tpu.matmul %173, %174, %cst_51 {dimension_numbers = #tpu.dot_dimension_numbers<[1], [1], [0], [0], [0, 0, 1, 0], [], []>} : vector<16x8xbf16>, vector<16x8xbf16>, vector<16x16xf32> -> vector<16x16xf32>
    %cst_52 = arith.constant 0.353553385 : f32
    %176 = vector.broadcast %cst_52 : f32 to vector<16x16xf32>
    %177 = arith.mulf %175, %176 : vector<16x16xf32>
    %178 = vector.broadcast %125 : vector<1x16xf32> to vector<16x16xf32>
    %179 = arith.addf %177, %178 : vector<16x16xf32>
    %cst_53 = arith.constant dense<0xFF800000> : vector<16xf32>
    %180 = vector.multi_reduction <maximumf>, %179, %cst_53 [1] : vector<16x16xf32> to vector<16xf32>
    %181 = vector.shape_cast %180 : vector<16xf32> to vector<16x1xf32>
    %182 = vector.broadcast %181 : vector<16x1xf32> to vector<16x16xf32>
    %183 = arith.subf %179, %182 : vector<16x16xf32>
    %184 = math.exp %183 : vector<16x16xf32>
    %cst_54 = arith.constant dense<0.000000e+00> : vector<16xf32>
    %185 = vector.multi_reduction <add>, %184, %cst_54 [1] : vector<16x16xf32> to vector<16xf32>
    %186 = vector.shape_cast %185 : vector<16xf32> to vector<16x1xf32>
    %187 = vector.broadcast %186 : vector<16x1xf32> to vector<16x16xf32>
    %188 = arith.divf %184, %187 : vector<16x16xf32>
    %189 = arith.truncf %188 : vector<16x16xf32> to vector<16x16xbf16>
    %190 = arith.truncf %172 : vector<16x8xf32> to vector<16x8xbf16>
    %cst_55 = arith.constant dense<0.000000e+00> : vector<16x8xf32>
    %191 = tpu.matmul %189, %190, %cst_55 {dimension_numbers = #tpu.dot_dimension_numbers<[1], [0], [0], [1], [0, 0, 1, 1], [], []>} : vector<16x16xbf16>, vector<16x8xbf16>, vector<16x8xf32> -> vector<16x8xf32>
    %192 = vector.extract_strided_slice %123 {offsets = [0, 24], sizes = [16, 8], strides = [1, 1]} : vector<16x96xf32> to vector<16x8xf32>
    %193 = vector.extract_strided_slice %123 {offsets = [0, 56], sizes = [16, 8], strides = [1, 1]} : vector<16x96xf32> to vector<16x8xf32>
    %194 = vector.extract_strided_slice %123 {offsets = [0, 88], sizes = [16, 8], strides = [1, 1]} : vector<16x96xf32> to vector<16x8xf32>
    %195 = arith.truncf %192 : vector<16x8xf32> to vector<16x8xbf16>
    %196 = arith.truncf %193 : vector<16x8xf32> to vector<16x8xbf16>
    %cst_56 = arith.constant dense<0.000000e+00> : vector<16x16xf32>
    %197 = tpu.matmul %195, %196, %cst_56 {dimension_numbers = #tpu.dot_dimension_numbers<[1], [1], [0], [0], [0, 0, 1, 0], [], []>} : vector<16x8xbf16>, vector<16x8xbf16>, vector<16x16xf32> -> vector<16x16xf32>
    %cst_57 = arith.constant 0.353553385 : f32
    %198 = vector.broadcast %cst_57 : f32 to vector<16x16xf32>
    %199 = arith.mulf %197, %198 : vector<16x16xf32>
    %200 = vector.broadcast %125 : vector<1x16xf32> to vector<16x16xf32>
    %201 = arith.addf %199, %200 : vector<16x16xf32>
    %cst_58 = arith.constant dense<0xFF800000> : vector<16xf32>
    %202 = vector.multi_reduction <maximumf>, %201, %cst_58 [1] : vector<16x16xf32> to vector<16xf32>
    %203 = vector.shape_cast %202 : vector<16xf32> to vector<16x1xf32>
    %204 = vector.broadcast %203 : vector<16x1xf32> to vector<16x16xf32>
    %205 = arith.subf %201, %204 : vector<16x16xf32>
    %206 = math.exp %205 : vector<16x16xf32>
    %cst_59 = arith.constant dense<0.000000e+00> : vector<16xf32>
    %207 = vector.multi_reduction <add>, %206, %cst_59 [1] : vector<16x16xf32> to vector<16xf32>
    %208 = vector.shape_cast %207 : vector<16xf32> to vector<16x1xf32>
    %209 = vector.broadcast %208 : vector<16x1xf32> to vector<16x16xf32>
    %210 = arith.divf %206, %209 : vector<16x16xf32>
    %211 = arith.truncf %210 : vector<16x16xf32> to vector<16x16xbf16>
    %212 = arith.truncf %194 : vector<16x8xf32> to vector<16x8xbf16>
    %cst_60 = arith.constant dense<0.000000e+00> : vector<16x8xf32>
    %213 = tpu.matmul %211, %212, %cst_60 {dimension_numbers = #tpu.dot_dimension_numbers<[1], [0], [0], [1], [0, 0, 1, 1], [], []>} : vector<16x16xbf16>, vector<16x8xbf16>, vector<16x8xf32> -> vector<16x8xf32>
    %214 = tpu.concatenate %147, %169, %191, %213 in 1 : vector<16x8xf32>, vector<16x8xf32>, vector<16x8xf32>, vector<16x8xf32> -> vector<16x32xf32>
    %215 = tpu.concatenate %122, %214 in 0 : vector<16x32xf32>, vector<16x32xf32> -> vector<32x32xf32>
    %c0_61 = arith.constant 0 : index
    %c0_62 = arith.constant 0 : index
    %c0_63 = arith.constant 0 : index
    %216 = vector.load %arg7[%c0_61, %c0_62, %c0_63] : memref<2x32x32xbf16, #tpu.memory_space<vmem>>, vector<1x32x32xbf16>
    %217 = vector.shape_cast %216 : vector<1x32x32xbf16> to vector<32x32xbf16>
    %218 = arith.truncf %215 : vector<32x32xf32> to vector<32x32xbf16>
    %cst_64 = arith.constant dense<0.000000e+00> : vector<32x32xf32>
    %219 = tpu.matmul %218, %217, %cst_64 {dimension_numbers = #tpu.dot_dimension_numbers<[1], [0], [0], [1], [0, 0, 1, 1], [], []>} : vector<32x32xbf16>, vector<32x32xbf16>, vector<32x32xf32> -> vector<32x32xf32>
    %c0_65 = arith.constant 0 : index
    %c0_66 = arith.constant 0 : index
    %c0_67 = arith.constant 0 : index
    %220 = vector.load %arg8[%c0_65, %c0_66, %c0_67] : memref<2x1x32xf32, #tpu.memory_space<vmem>>, vector<1x1x32xf32>
    %221 = vector.shape_cast %220 : vector<1x1x32xf32> to vector<1x32xf32>
    %222 = vector.broadcast %221 : vector<1x32xf32> to vector<32x32xf32>
    %223 = arith.addf %219, %222 : vector<32x32xf32>
    %224 = arith.addf %223, %22 : vector<32x32xf32>
    %c0_68 = arith.constant 0 : index
    %c0_69 = arith.constant 0 : index
    %c0_70 = arith.constant 0 : index
    %225 = vector.load %arg9[%c0_68, %c0_69, %c0_70] : memref<2x1x32xf32, #tpu.memory_space<vmem>>, vector<1x1x32xf32>
    %226 = vector.shape_cast %225 : vector<1x1x32xf32> to vector<1x32xf32>
    %c0_71 = arith.constant 0 : index
    %c0_72 = arith.constant 0 : index
    %c0_73 = arith.constant 0 : index
    %227 = vector.load %arg10[%c0_71, %c0_72, %c0_73] : memref<2x1x32xf32, #tpu.memory_space<vmem>>, vector<1x1x32xf32>
    %228 = vector.shape_cast %227 : vector<1x1x32xf32> to vector<1x32xf32>
    %cst_74 = arith.constant dense<0.000000e+00> : vector<32xf32>
    %229 = vector.multi_reduction <add>, %224, %cst_74 [1] : vector<32x32xf32> to vector<32xf32>
    %230 = vector.shape_cast %229 : vector<32xf32> to vector<32x1xf32>
    %cst_75 = arith.constant 3.200000e+01 : f32
    %231 = vector.broadcast %cst_75 : f32 to vector<32x1xf32>
    %232 = arith.divf %230, %231 : vector<32x1xf32>
    %233 = vector.broadcast %232 : vector<32x1xf32> to vector<32x32xf32>
    %234 = arith.subf %224, %233 : vector<32x32xf32>
    %235 = arith.mulf %234, %234 : vector<32x32xf32>
    %cst_76 = arith.constant dense<0.000000e+00> : vector<32xf32>
    %236 = vector.multi_reduction <add>, %235, %cst_76 [1] : vector<32x32xf32> to vector<32xf32>
    %237 = vector.shape_cast %236 : vector<32xf32> to vector<32x1xf32>
    %cst_77 = arith.constant 3.200000e+01 : f32
    %238 = vector.broadcast %cst_77 : f32 to vector<32x1xf32>
    %239 = arith.divf %237, %238 : vector<32x1xf32>
    %cst_78 = arith.constant 9.99999996E-13 : f32
    %240 = vector.broadcast %cst_78 : f32 to vector<32x1xf32>
    %241 = arith.addf %239, %240 : vector<32x1xf32>
    %242 = math.rsqrt %241 : vector<32x1xf32>
    %243 = vector.broadcast %242 : vector<32x1xf32> to vector<32x32xf32>
    %244 = arith.mulf %234, %243 : vector<32x32xf32>
    %245 = vector.broadcast %226 : vector<1x32xf32> to vector<32x32xf32>
    %246 = arith.mulf %244, %245 : vector<32x32xf32>
    %247 = vector.broadcast %228 : vector<1x32xf32> to vector<32x32xf32>
    %248 = arith.addf %246, %247 : vector<32x32xf32>
    %c0_79 = arith.constant 0 : index
    %c0_80 = arith.constant 0 : index
    %c0_81 = arith.constant 0 : index
    %249 = vector.load %arg11[%c0_79, %c0_80, %c0_81] : memref<2x32x64xbf16, #tpu.memory_space<vmem>>, vector<1x32x64xbf16>
    %250 = vector.shape_cast %249 : vector<1x32x64xbf16> to vector<32x64xbf16>
    %251 = arith.truncf %248 : vector<32x32xf32> to vector<32x32xbf16>
    %cst_82 = arith.constant dense<0.000000e+00> : vector<32x64xf32>
    %252 = tpu.matmul %251, %250, %cst_82 {dimension_numbers = #tpu.dot_dimension_numbers<[1], [0], [0], [1], [0, 0, 1, 1], [], []>} : vector<32x32xbf16>, vector<32x64xbf16>, vector<32x64xf32> -> vector<32x64xf32>
    %c0_83 = arith.constant 0 : index
    %c0_84 = arith.constant 0 : index
    %c0_85 = arith.constant 0 : index
    %253 = vector.load %arg12[%c0_83, %c0_84, %c0_85] : memref<2x1x64xf32, #tpu.memory_space<vmem>>, vector<1x1x64xf32>
    %254 = vector.shape_cast %253 : vector<1x1x64xf32> to vector<1x64xf32>
    %255 = vector.broadcast %254 : vector<1x64xf32> to vector<32x64xf32>
    %256 = arith.addf %252, %255 : vector<32x64xf32>
    %cst_86 = arith.constant 5.000000e-01 : f32
    %257 = vector.broadcast %cst_86 : f32 to vector<32x64xf32>
    %258 = arith.mulf %257, %256 : vector<32x64xf32>
    %cst_87 = arith.constant 0.707106769 : f32
    %259 = vector.broadcast %cst_87 : f32 to vector<32x64xf32>
    %260 = arith.mulf %256, %259 : vector<32x64xf32>
    %cst_88 = arith.constant 0.000000e+00 : f32
    %261 = vector.broadcast %cst_88 : f32 to vector<32x64xf32>
    %262 = arith.cmpf oge, %260, %261 : vector<32x64xf32>
    %cst_89 = arith.constant 1.000000e+00 : f32
    %cst_90 = arith.constant -1.000000e+00 : f32
    %263 = vector.broadcast %cst_89 : f32 to vector<32x64xf32>
    %264 = vector.broadcast %cst_90 : f32 to vector<32x64xf32>
    %265 = arith.select %262, %263, %264 : vector<32x64xi1>, vector<32x64xf32>
    %266 = math.absf %260 : vector<32x64xf32>
    %cst_91 = arith.constant 0.327591091 : f32
    %267 = vector.broadcast %cst_91 : f32 to vector<32x64xf32>
    %268 = arith.mulf %267, %266 : vector<32x64xf32>
    %cst_92 = arith.constant 1.000000e+00 : f32
    %269 = vector.broadcast %cst_92 : f32 to vector<32x64xf32>
    %270 = arith.addf %269, %268 : vector<32x64xf32>
    %cst_93 = arith.constant 1.000000e+00 : f32
    %271 = vector.broadcast %cst_93 : f32 to vector<32x64xf32>
    %272 = arith.divf %271, %270 : vector<32x64xf32>
    %cst_94 = arith.constant 1.06140542 : f32
    %273 = vector.broadcast %cst_94 : f32 to vector<32x64xf32>
    %274 = arith.mulf %273, %272 : vector<32x64xf32>
    %cst_95 = arith.constant -1.45315206 : f32
    %275 = vector.broadcast %cst_95 : f32 to vector<32x64xf32>
    %276 = arith.addf %274, %275 : vector<32x64xf32>
    %277 = arith.mulf %276, %272 : vector<32x64xf32>
    %cst_96 = arith.constant 1.42141378 : f32
    %278 = vector.broadcast %cst_96 : f32 to vector<32x64xf32>
    %279 = arith.addf %277, %278 : vector<32x64xf32>
    %280 = arith.mulf %279, %272 : vector<32x64xf32>
    %cst_97 = arith.constant -0.284496725 : f32
    %281 = vector.broadcast %cst_97 : f32 to vector<32x64xf32>
    %282 = arith.addf %280, %281 : vector<32x64xf32>
    %283 = arith.mulf %282, %272 : vector<32x64xf32>
    %cst_98 = arith.constant 0.254829586 : f32
    %284 = vector.broadcast %cst_98 : f32 to vector<32x64xf32>
    %285 = arith.addf %283, %284 : vector<32x64xf32>
    %286 = arith.mulf %285, %272 : vector<32x64xf32>
    %cst_99 = arith.constant 0.000000e+00 : f32
    %287 = vector.broadcast %cst_99 : f32 to vector<32x64xf32>
    %288 = arith.subf %287, %266 : vector<32x64xf32>
    %289 = arith.mulf %288, %266 : vector<32x64xf32>
    %290 = math.exp %289 : vector<32x64xf32>
    %291 = arith.mulf %286, %290 : vector<32x64xf32>
    %cst_100 = arith.constant 1.000000e+00 : f32
    %292 = vector.broadcast %cst_100 : f32 to vector<32x64xf32>
    %293 = arith.subf %292, %291 : vector<32x64xf32>
    %294 = arith.mulf %265, %293 : vector<32x64xf32>
    %cst_101 = arith.constant 1.000000e+00 : f32
    %295 = vector.broadcast %cst_101 : f32 to vector<32x64xf32>
    %296 = arith.addf %295, %294 : vector<32x64xf32>
    %297 = arith.mulf %258, %296 : vector<32x64xf32>
    %c0_102 = arith.constant 0 : index
    %c0_103 = arith.constant 0 : index
    %c0_104 = arith.constant 0 : index
    %298 = vector.load %arg13[%c0_102, %c0_103, %c0_104] : memref<2x64x32xbf16, #tpu.memory_space<vmem>>, vector<1x64x32xbf16>
    %299 = vector.shape_cast %298 : vector<1x64x32xbf16> to vector<64x32xbf16>
    %300 = arith.truncf %297 : vector<32x64xf32> to vector<32x64xbf16>
    %cst_105 = arith.constant dense<0.000000e+00> : vector<32x32xf32>
    %301 = tpu.matmul %300, %299, %cst_105 {dimension_numbers = #tpu.dot_dimension_numbers<[1], [0], [0], [1], [0, 0, 1, 1], [], []>} : vector<32x64xbf16>, vector<64x32xbf16>, vector<32x32xf32> -> vector<32x32xf32>
    %c0_106 = arith.constant 0 : index
    %c0_107 = arith.constant 0 : index
    %c0_108 = arith.constant 0 : index
    %302 = vector.load %arg14[%c0_106, %c0_107, %c0_108] : memref<2x1x32xf32, #tpu.memory_space<vmem>>, vector<1x1x32xf32>
    %303 = vector.shape_cast %302 : vector<1x1x32xf32> to vector<1x32xf32>
    %304 = vector.broadcast %303 : vector<1x32xf32> to vector<32x32xf32>
    %305 = arith.addf %301, %304 : vector<32x32xf32>
    %306 = arith.addf %305, %248 : vector<32x32xf32>
    %c0_109 = arith.constant 0 : index
    %c0_110 = arith.constant 0 : index
    %c0_111 = arith.constant 0 : index
    %307 = vector.load %arg15[%c0_109, %c0_110, %c0_111] : memref<2x1x32xf32, #tpu.memory_space<vmem>>, vector<1x1x32xf32>
    %308 = vector.shape_cast %307 : vector<1x1x32xf32> to vector<1x32xf32>
    %c0_112 = arith.constant 0 : index
    %c0_113 = arith.constant 0 : index
    %c0_114 = arith.constant 0 : index
    %309 = vector.load %arg16[%c0_112, %c0_113, %c0_114] : memref<2x1x32xf32, #tpu.memory_space<vmem>>, vector<1x1x32xf32>
    %310 = vector.shape_cast %309 : vector<1x1x32xf32> to vector<1x32xf32>
    %cst_115 = arith.constant dense<0.000000e+00> : vector<32xf32>
    %311 = vector.multi_reduction <add>, %306, %cst_115 [1] : vector<32x32xf32> to vector<32xf32>
    %312 = vector.shape_cast %311 : vector<32xf32> to vector<32x1xf32>
    %cst_116 = arith.constant 3.200000e+01 : f32
    %313 = vector.broadcast %cst_116 : f32 to vector<32x1xf32>
    %314 = arith.divf %312, %313 : vector<32x1xf32>
    %315 = vector.broadcast %314 : vector<32x1xf32> to vector<32x32xf32>
    %316 = arith.subf %306, %315 : vector<32x32xf32>
    %317 = arith.mulf %316, %316 : vector<32x32xf32>
    %cst_117 = arith.constant dense<0.000000e+00> : vector<32xf32>
    %318 = vector.multi_reduction <add>, %317, %cst_117 [1] : vector<32x32xf32> to vector<32xf32>
    %319 = vector.shape_cast %318 : vector<32xf32> to vector<32x1xf32>
    %cst_118 = arith.constant 3.200000e+01 : f32
    %320 = vector.broadcast %cst_118 : f32 to vector<32x1xf32>
    %321 = arith.divf %319, %320 : vector<32x1xf32>
    %cst_119 = arith.constant 9.99999996E-13 : f32
    %322 = vector.broadcast %cst_119 : f32 to vector<32x1xf32>
    %323 = arith.addf %321, %322 : vector<32x1xf32>
    %324 = math.rsqrt %323 : vector<32x1xf32>
    %325 = vector.broadcast %324 : vector<32x1xf32> to vector<32x32xf32>
    %326 = arith.mulf %316, %325 : vector<32x32xf32>
    %327 = vector.broadcast %308 : vector<1x32xf32> to vector<32x32xf32>
    %328 = arith.mulf %326, %327 : vector<32x32xf32>
    %329 = vector.broadcast %310 : vector<1x32xf32> to vector<32x32xf32>
    %330 = arith.addf %328, %329 : vector<32x32xf32>
    %c1_120 = arith.constant 1 : index
    %c0_121 = arith.constant 0 : index
    %c0_122 = arith.constant 0 : index
    %331 = vector.load %arg5[%c1_120, %c0_121, %c0_122] : memref<2x32x96xbf16, #tpu.memory_space<vmem>>, vector<1x32x96xbf16>
    %332 = vector.shape_cast %331 : vector<1x32x96xbf16> to vector<32x96xbf16>
    %333 = arith.truncf %330 : vector<32x32xf32> to vector<32x32xbf16>
    %cst_123 = arith.constant dense<0.000000e+00> : vector<32x96xf32>
    %334 = tpu.matmul %333, %332, %cst_123 {dimension_numbers = #tpu.dot_dimension_numbers<[1], [0], [0], [1], [0, 0, 1, 1], [], []>} : vector<32x32xbf16>, vector<32x96xbf16>, vector<32x96xf32> -> vector<32x96xf32>
    %c1_124 = arith.constant 1 : index
    %c0_125 = arith.constant 0 : index
    %c0_126 = arith.constant 0 : index
    %335 = vector.load %arg6[%c1_124, %c0_125, %c0_126] : memref<2x1x96xf32, #tpu.memory_space<vmem>>, vector<1x1x96xf32>
    %336 = vector.shape_cast %335 : vector<1x1x96xf32> to vector<1x96xf32>
    %337 = vector.broadcast %336 : vector<1x96xf32> to vector<32x96xf32>
    %338 = arith.addf %334, %337 : vector<32x96xf32>
    %339 = vector.extract_strided_slice %338 {offsets = [0, 0], sizes = [16, 96], strides = [1, 1]} : vector<32x96xf32> to vector<16x96xf32>
    %c0_127 = arith.constant 0 : index
    %c0_128 = arith.constant 0 : index
    %c0_129 = arith.constant 0 : index
    %340 = vector.load %arg2[%c0_127, %c0_128, %c0_129] : memref<2x1x16xf32, #tpu.memory_space<vmem>>, vector<1x1x16xf32>
    %341 = vector.shape_cast %340 : vector<1x1x16xf32> to vector<1x16xf32>
    %342 = vector.extract_strided_slice %339 {offsets = [0, 0], sizes = [16, 8], strides = [1, 1]} : vector<16x96xf32> to vector<16x8xf32>
    %343 = vector.extract_strided_slice %339 {offsets = [0, 32], sizes = [16, 8], strides = [1, 1]} : vector<16x96xf32> to vector<16x8xf32>
    %344 = vector.extract_strided_slice %339 {offsets = [0, 64], sizes = [16, 8], strides = [1, 1]} : vector<16x96xf32> to vector<16x8xf32>
    %345 = arith.truncf %342 : vector<16x8xf32> to vector<16x8xbf16>
    %346 = arith.truncf %343 : vector<16x8xf32> to vector<16x8xbf16>
    %cst_130 = arith.constant dense<0.000000e+00> : vector<16x16xf32>
    %347 = tpu.matmul %345, %346, %cst_130 {dimension_numbers = #tpu.dot_dimension_numbers<[1], [1], [0], [0], [0, 0, 1, 0], [], []>} : vector<16x8xbf16>, vector<16x8xbf16>, vector<16x16xf32> -> vector<16x16xf32>
    %cst_131 = arith.constant 0.353553385 : f32
    %348 = vector.broadcast %cst_131 : f32 to vector<16x16xf32>
    %349 = arith.mulf %347, %348 : vector<16x16xf32>
    %350 = vector.broadcast %341 : vector<1x16xf32> to vector<16x16xf32>
    %351 = arith.addf %349, %350 : vector<16x16xf32>
    %cst_132 = arith.constant dense<0xFF800000> : vector<16xf32>
    %352 = vector.multi_reduction <maximumf>, %351, %cst_132 [1] : vector<16x16xf32> to vector<16xf32>
    %353 = vector.shape_cast %352 : vector<16xf32> to vector<16x1xf32>
    %354 = vector.broadcast %353 : vector<16x1xf32> to vector<16x16xf32>
    %355 = arith.subf %351, %354 : vector<16x16xf32>
    %356 = math.exp %355 : vector<16x16xf32>
    %cst_133 = arith.constant dense<0.000000e+00> : vector<16xf32>
    %357 = vector.multi_reduction <add>, %356, %cst_133 [1] : vector<16x16xf32> to vector<16xf32>
    %358 = vector.shape_cast %357 : vector<16xf32> to vector<16x1xf32>
    %359 = vector.broadcast %358 : vector<16x1xf32> to vector<16x16xf32>
    %360 = arith.divf %356, %359 : vector<16x16xf32>
    %361 = arith.truncf %360 : vector<16x16xf32> to vector<16x16xbf16>
    %362 = arith.truncf %344 : vector<16x8xf32> to vector<16x8xbf16>
    %cst_134 = arith.constant dense<0.000000e+00> : vector<16x8xf32>
    %363 = tpu.matmul %361, %362, %cst_134 {dimension_numbers = #tpu.dot_dimension_numbers<[1], [0], [0], [1], [0, 0, 1, 1], [], []>} : vector<16x16xbf16>, vector<16x8xbf16>, vector<16x8xf32> -> vector<16x8xf32>
    %364 = vector.extract_strided_slice %339 {offsets = [0, 8], sizes = [16, 8], strides = [1, 1]} : vector<16x96xf32> to vector<16x8xf32>
    %365 = vector.extract_strided_slice %339 {offsets = [0, 40], sizes = [16, 8], strides = [1, 1]} : vector<16x96xf32> to vector<16x8xf32>
    %366 = vector.extract_strided_slice %339 {offsets = [0, 72], sizes = [16, 8], strides = [1, 1]} : vector<16x96xf32> to vector<16x8xf32>
    %367 = arith.truncf %364 : vector<16x8xf32> to vector<16x8xbf16>
    %368 = arith.truncf %365 : vector<16x8xf32> to vector<16x8xbf16>
    %cst_135 = arith.constant dense<0.000000e+00> : vector<16x16xf32>
    %369 = tpu.matmul %367, %368, %cst_135 {dimension_numbers = #tpu.dot_dimension_numbers<[1], [1], [0], [0], [0, 0, 1, 0], [], []>} : vector<16x8xbf16>, vector<16x8xbf16>, vector<16x16xf32> -> vector<16x16xf32>
    %cst_136 = arith.constant 0.353553385 : f32
    %370 = vector.broadcast %cst_136 : f32 to vector<16x16xf32>
    %371 = arith.mulf %369, %370 : vector<16x16xf32>
    %372 = vector.broadcast %341 : vector<1x16xf32> to vector<16x16xf32>
    %373 = arith.addf %371, %372 : vector<16x16xf32>
    %cst_137 = arith.constant dense<0xFF800000> : vector<16xf32>
    %374 = vector.multi_reduction <maximumf>, %373, %cst_137 [1] : vector<16x16xf32> to vector<16xf32>
    %375 = vector.shape_cast %374 : vector<16xf32> to vector<16x1xf32>
    %376 = vector.broadcast %375 : vector<16x1xf32> to vector<16x16xf32>
    %377 = arith.subf %373, %376 : vector<16x16xf32>
    %378 = math.exp %377 : vector<16x16xf32>
    %cst_138 = arith.constant dense<0.000000e+00> : vector<16xf32>
    %379 = vector.multi_reduction <add>, %378, %cst_138 [1] : vector<16x16xf32> to vector<16xf32>
    %380 = vector.shape_cast %379 : vector<16xf32> to vector<16x1xf32>
    %381 = vector.broadcast %380 : vector<16x1xf32> to vector<16x16xf32>
    %382 = arith.divf %378, %381 : vector<16x16xf32>
    %383 = arith.truncf %382 : vector<16x16xf32> to vector<16x16xbf16>
    %384 = arith.truncf %366 : vector<16x8xf32> to vector<16x8xbf16>
    %cst_139 = arith.constant dense<0.000000e+00> : vector<16x8xf32>
    %385 = tpu.matmul %383, %384, %cst_139 {dimension_numbers = #tpu.dot_dimension_numbers<[1], [0], [0], [1], [0, 0, 1, 1], [], []>} : vector<16x16xbf16>, vector<16x8xbf16>, vector<16x8xf32> -> vector<16x8xf32>
    %386 = vector.extract_strided_slice %339 {offsets = [0, 16], sizes = [16, 8], strides = [1, 1]} : vector<16x96xf32> to vector<16x8xf32>
    %387 = vector.extract_strided_slice %339 {offsets = [0, 48], sizes = [16, 8], strides = [1, 1]} : vector<16x96xf32> to vector<16x8xf32>
    %388 = vector.extract_strided_slice %339 {offsets = [0, 80], sizes = [16, 8], strides = [1, 1]} : vector<16x96xf32> to vector<16x8xf32>
    %389 = arith.truncf %386 : vector<16x8xf32> to vector<16x8xbf16>
    %390 = arith.truncf %387 : vector<16x8xf32> to vector<16x8xbf16>
    %cst_140 = arith.constant dense<0.000000e+00> : vector<16x16xf32>
    %391 = tpu.matmul %389, %390, %cst_140 {dimension_numbers = #tpu.dot_dimension_numbers<[1], [1], [0], [0], [0, 0, 1, 0], [], []>} : vector<16x8xbf16>, vector<16x8xbf16>, vector<16x16xf32> -> vector<16x16xf32>
    %cst_141 = arith.constant 0.353553385 : f32
    %392 = vector.broadcast %cst_141 : f32 to vector<16x16xf32>
    %393 = arith.mulf %391, %392 : vector<16x16xf32>
    %394 = vector.broadcast %341 : vector<1x16xf32> to vector<16x16xf32>
    %395 = arith.addf %393, %394 : vector<16x16xf32>
    %cst_142 = arith.constant dense<0xFF800000> : vector<16xf32>
    %396 = vector.multi_reduction <maximumf>, %395, %cst_142 [1] : vector<16x16xf32> to vector<16xf32>
    %397 = vector.shape_cast %396 : vector<16xf32> to vector<16x1xf32>
    %398 = vector.broadcast %397 : vector<16x1xf32> to vector<16x16xf32>
    %399 = arith.subf %395, %398 : vector<16x16xf32>
    %400 = math.exp %399 : vector<16x16xf32>
    %cst_143 = arith.constant dense<0.000000e+00> : vector<16xf32>
    %401 = vector.multi_reduction <add>, %400, %cst_143 [1] : vector<16x16xf32> to vector<16xf32>
    %402 = vector.shape_cast %401 : vector<16xf32> to vector<16x1xf32>
    %403 = vector.broadcast %402 : vector<16x1xf32> to vector<16x16xf32>
    %404 = arith.divf %400, %403 : vector<16x16xf32>
    %405 = arith.truncf %404 : vector<16x16xf32> to vector<16x16xbf16>
    %406 = arith.truncf %388 : vector<16x8xf32> to vector<16x8xbf16>
    %cst_144 = arith.constant dense<0.000000e+00> : vector<16x8xf32>
    %407 = tpu.matmul %405, %406, %cst_144 {dimension_numbers = #tpu.dot_dimension_numbers<[1], [0], [0], [1], [0, 0, 1, 1], [], []>} : vector<16x16xbf16>, vector<16x8xbf16>, vector<16x8xf32> -> vector<16x8xf32>
    %408 = vector.extract_strided_slice %339 {offsets = [0, 24], sizes = [16, 8], strides = [1, 1]} : vector<16x96xf32> to vector<16x8xf32>
    %409 = vector.extract_strided_slice %339 {offsets = [0, 56], sizes = [16, 8], strides = [1, 1]} : vector<16x96xf32> to vector<16x8xf32>
    %410 = vector.extract_strided_slice %339 {offsets = [0, 88], sizes = [16, 8], strides = [1, 1]} : vector<16x96xf32> to vector<16x8xf32>
    %411 = arith.truncf %408 : vector<16x8xf32> to vector<16x8xbf16>
    %412 = arith.truncf %409 : vector<16x8xf32> to vector<16x8xbf16>
    %cst_145 = arith.constant dense<0.000000e+00> : vector<16x16xf32>
    %413 = tpu.matmul %411, %412, %cst_145 {dimension_numbers = #tpu.dot_dimension_numbers<[1], [1], [0], [0], [0, 0, 1, 0], [], []>} : vector<16x8xbf16>, vector<16x8xbf16>, vector<16x16xf32> -> vector<16x16xf32>
    %cst_146 = arith.constant 0.353553385 : f32
    %414 = vector.broadcast %cst_146 : f32 to vector<16x16xf32>
    %415 = arith.mulf %413, %414 : vector<16x16xf32>
    %416 = vector.broadcast %341 : vector<1x16xf32> to vector<16x16xf32>
    %417 = arith.addf %415, %416 : vector<16x16xf32>
    %cst_147 = arith.constant dense<0xFF800000> : vector<16xf32>
    %418 = vector.multi_reduction <maximumf>, %417, %cst_147 [1] : vector<16x16xf32> to vector<16xf32>
    %419 = vector.shape_cast %418 : vector<16xf32> to vector<16x1xf32>
    %420 = vector.broadcast %419 : vector<16x1xf32> to vector<16x16xf32>
    %421 = arith.subf %417, %420 : vector<16x16xf32>
    %422 = math.exp %421 : vector<16x16xf32>
    %cst_148 = arith.constant dense<0.000000e+00> : vector<16xf32>
    %423 = vector.multi_reduction <add>, %422, %cst_148 [1] : vector<16x16xf32> to vector<16xf32>
    %424 = vector.shape_cast %423 : vector<16xf32> to vector<16x1xf32>
    %425 = vector.broadcast %424 : vector<16x1xf32> to vector<16x16xf32>
    %426 = arith.divf %422, %425 : vector<16x16xf32>
    %427 = arith.truncf %426 : vector<16x16xf32> to vector<16x16xbf16>
    %428 = arith.truncf %410 : vector<16x8xf32> to vector<16x8xbf16>
    %cst_149 = arith.constant dense<0.000000e+00> : vector<16x8xf32>
    %429 = tpu.matmul %427, %428, %cst_149 {dimension_numbers = #tpu.dot_dimension_numbers<[1], [0], [0], [1], [0, 0, 1, 1], [], []>} : vector<16x16xbf16>, vector<16x8xbf16>, vector<16x8xf32> -> vector<16x8xf32>
    %430 = tpu.concatenate %363, %385, %407, %429 in 1 : vector<16x8xf32>, vector<16x8xf32>, vector<16x8xf32>, vector<16x8xf32> -> vector<16x32xf32>
    %431 = vector.extract_strided_slice %338 {offsets = [16, 0], sizes = [16, 96], strides = [1, 1]} : vector<32x96xf32> to vector<16x96xf32>
    %c1_150 = arith.constant 1 : index
    %c0_151 = arith.constant 0 : index
    %c0_152 = arith.constant 0 : index
    %432 = vector.load %arg2[%c1_150, %c0_151, %c0_152] : memref<2x1x16xf32, #tpu.memory_space<vmem>>, vector<1x1x16xf32>
    %433 = vector.shape_cast %432 : vector<1x1x16xf32> to vector<1x16xf32>
    %434 = vector.extract_strided_slice %431 {offsets = [0, 0], sizes = [16, 8], strides = [1, 1]} : vector<16x96xf32> to vector<16x8xf32>
    %435 = vector.extract_strided_slice %431 {offsets = [0, 32], sizes = [16, 8], strides = [1, 1]} : vector<16x96xf32> to vector<16x8xf32>
    %436 = vector.extract_strided_slice %431 {offsets = [0, 64], sizes = [16, 8], strides = [1, 1]} : vector<16x96xf32> to vector<16x8xf32>
    %437 = arith.truncf %434 : vector<16x8xf32> to vector<16x8xbf16>
    %438 = arith.truncf %435 : vector<16x8xf32> to vector<16x8xbf16>
    %cst_153 = arith.constant dense<0.000000e+00> : vector<16x16xf32>
    %439 = tpu.matmul %437, %438, %cst_153 {dimension_numbers = #tpu.dot_dimension_numbers<[1], [1], [0], [0], [0, 0, 1, 0], [], []>} : vector<16x8xbf16>, vector<16x8xbf16>, vector<16x16xf32> -> vector<16x16xf32>
    %cst_154 = arith.constant 0.353553385 : f32
    %440 = vector.broadcast %cst_154 : f32 to vector<16x16xf32>
    %441 = arith.mulf %439, %440 : vector<16x16xf32>
    %442 = vector.broadcast %433 : vector<1x16xf32> to vector<16x16xf32>
    %443 = arith.addf %441, %442 : vector<16x16xf32>
    %cst_155 = arith.constant dense<0xFF800000> : vector<16xf32>
    %444 = vector.multi_reduction <maximumf>, %443, %cst_155 [1] : vector<16x16xf32> to vector<16xf32>
    %445 = vector.shape_cast %444 : vector<16xf32> to vector<16x1xf32>
    %446 = vector.broadcast %445 : vector<16x1xf32> to vector<16x16xf32>
    %447 = arith.subf %443, %446 : vector<16x16xf32>
    %448 = math.exp %447 : vector<16x16xf32>
    %cst_156 = arith.constant dense<0.000000e+00> : vector<16xf32>
    %449 = vector.multi_reduction <add>, %448, %cst_156 [1] : vector<16x16xf32> to vector<16xf32>
    %450 = vector.shape_cast %449 : vector<16xf32> to vector<16x1xf32>
    %451 = vector.broadcast %450 : vector<16x1xf32> to vector<16x16xf32>
    %452 = arith.divf %448, %451 : vector<16x16xf32>
    %453 = arith.truncf %452 : vector<16x16xf32> to vector<16x16xbf16>
    %454 = arith.truncf %436 : vector<16x8xf32> to vector<16x8xbf16>
    %cst_157 = arith.constant dense<0.000000e+00> : vector<16x8xf32>
    %455 = tpu.matmul %453, %454, %cst_157 {dimension_numbers = #tpu.dot_dimension_numbers<[1], [0], [0], [1], [0, 0, 1, 1], [], []>} : vector<16x16xbf16>, vector<16x8xbf16>, vector<16x8xf32> -> vector<16x8xf32>
    %456 = vector.extract_strided_slice %431 {offsets = [0, 8], sizes = [16, 8], strides = [1, 1]} : vector<16x96xf32> to vector<16x8xf32>
    %457 = vector.extract_strided_slice %431 {offsets = [0, 40], sizes = [16, 8], strides = [1, 1]} : vector<16x96xf32> to vector<16x8xf32>
    %458 = vector.extract_strided_slice %431 {offsets = [0, 72], sizes = [16, 8], strides = [1, 1]} : vector<16x96xf32> to vector<16x8xf32>
    %459 = arith.truncf %456 : vector<16x8xf32> to vector<16x8xbf16>
    %460 = arith.truncf %457 : vector<16x8xf32> to vector<16x8xbf16>
    %cst_158 = arith.constant dense<0.000000e+00> : vector<16x16xf32>
    %461 = tpu.matmul %459, %460, %cst_158 {dimension_numbers = #tpu.dot_dimension_numbers<[1], [1], [0], [0], [0, 0, 1, 0], [], []>} : vector<16x8xbf16>, vector<16x8xbf16>, vector<16x16xf32> -> vector<16x16xf32>
    %cst_159 = arith.constant 0.353553385 : f32
    %462 = vector.broadcast %cst_159 : f32 to vector<16x16xf32>
    %463 = arith.mulf %461, %462 : vector<16x16xf32>
    %464 = vector.broadcast %433 : vector<1x16xf32> to vector<16x16xf32>
    %465 = arith.addf %463, %464 : vector<16x16xf32>
    %cst_160 = arith.constant dense<0xFF800000> : vector<16xf32>
    %466 = vector.multi_reduction <maximumf>, %465, %cst_160 [1] : vector<16x16xf32> to vector<16xf32>
    %467 = vector.shape_cast %466 : vector<16xf32> to vector<16x1xf32>
    %468 = vector.broadcast %467 : vector<16x1xf32> to vector<16x16xf32>
    %469 = arith.subf %465, %468 : vector<16x16xf32>
    %470 = math.exp %469 : vector<16x16xf32>
    %cst_161 = arith.constant dense<0.000000e+00> : vector<16xf32>
    %471 = vector.multi_reduction <add>, %470, %cst_161 [1] : vector<16x16xf32> to vector<16xf32>
    %472 = vector.shape_cast %471 : vector<16xf32> to vector<16x1xf32>
    %473 = vector.broadcast %472 : vector<16x1xf32> to vector<16x16xf32>
    %474 = arith.divf %470, %473 : vector<16x16xf32>
    %475 = arith.truncf %474 : vector<16x16xf32> to vector<16x16xbf16>
    %476 = arith.truncf %458 : vector<16x8xf32> to vector<16x8xbf16>
    %cst_162 = arith.constant dense<0.000000e+00> : vector<16x8xf32>
    %477 = tpu.matmul %475, %476, %cst_162 {dimension_numbers = #tpu.dot_dimension_numbers<[1], [0], [0], [1], [0, 0, 1, 1], [], []>} : vector<16x16xbf16>, vector<16x8xbf16>, vector<16x8xf32> -> vector<16x8xf32>
    %478 = vector.extract_strided_slice %431 {offsets = [0, 16], sizes = [16, 8], strides = [1, 1]} : vector<16x96xf32> to vector<16x8xf32>
    %479 = vector.extract_strided_slice %431 {offsets = [0, 48], sizes = [16, 8], strides = [1, 1]} : vector<16x96xf32> to vector<16x8xf32>
    %480 = vector.extract_strided_slice %431 {offsets = [0, 80], sizes = [16, 8], strides = [1, 1]} : vector<16x96xf32> to vector<16x8xf32>
    %481 = arith.truncf %478 : vector<16x8xf32> to vector<16x8xbf16>
    %482 = arith.truncf %479 : vector<16x8xf32> to vector<16x8xbf16>
    %cst_163 = arith.constant dense<0.000000e+00> : vector<16x16xf32>
    %483 = tpu.matmul %481, %482, %cst_163 {dimension_numbers = #tpu.dot_dimension_numbers<[1], [1], [0], [0], [0, 0, 1, 0], [], []>} : vector<16x8xbf16>, vector<16x8xbf16>, vector<16x16xf32> -> vector<16x16xf32>
    %cst_164 = arith.constant 0.353553385 : f32
    %484 = vector.broadcast %cst_164 : f32 to vector<16x16xf32>
    %485 = arith.mulf %483, %484 : vector<16x16xf32>
    %486 = vector.broadcast %433 : vector<1x16xf32> to vector<16x16xf32>
    %487 = arith.addf %485, %486 : vector<16x16xf32>
    %cst_165 = arith.constant dense<0xFF800000> : vector<16xf32>
    %488 = vector.multi_reduction <maximumf>, %487, %cst_165 [1] : vector<16x16xf32> to vector<16xf32>
    %489 = vector.shape_cast %488 : vector<16xf32> to vector<16x1xf32>
    %490 = vector.broadcast %489 : vector<16x1xf32> to vector<16x16xf32>
    %491 = arith.subf %487, %490 : vector<16x16xf32>
    %492 = math.exp %491 : vector<16x16xf32>
    %cst_166 = arith.constant dense<0.000000e+00> : vector<16xf32>
    %493 = vector.multi_reduction <add>, %492, %cst_166 [1] : vector<16x16xf32> to vector<16xf32>
    %494 = vector.shape_cast %493 : vector<16xf32> to vector<16x1xf32>
    %495 = vector.broadcast %494 : vector<16x1xf32> to vector<16x16xf32>
    %496 = arith.divf %492, %495 : vector<16x16xf32>
    %497 = arith.truncf %496 : vector<16x16xf32> to vector<16x16xbf16>
    %498 = arith.truncf %480 : vector<16x8xf32> to vector<16x8xbf16>
    %cst_167 = arith.constant dense<0.000000e+00> : vector<16x8xf32>
    %499 = tpu.matmul %497, %498, %cst_167 {dimension_numbers = #tpu.dot_dimension_numbers<[1], [0], [0], [1], [0, 0, 1, 1], [], []>} : vector<16x16xbf16>, vector<16x8xbf16>, vector<16x8xf32> -> vector<16x8xf32>
    %500 = vector.extract_strided_slice %431 {offsets = [0, 24], sizes = [16, 8], strides = [1, 1]} : vector<16x96xf32> to vector<16x8xf32>
    %501 = vector.extract_strided_slice %431 {offsets = [0, 56], sizes = [16, 8], strides = [1, 1]} : vector<16x96xf32> to vector<16x8xf32>
    %502 = vector.extract_strided_slice %431 {offsets = [0, 88], sizes = [16, 8], strides = [1, 1]} : vector<16x96xf32> to vector<16x8xf32>
    %503 = arith.truncf %500 : vector<16x8xf32> to vector<16x8xbf16>
    %504 = arith.truncf %501 : vector<16x8xf32> to vector<16x8xbf16>
    %cst_168 = arith.constant dense<0.000000e+00> : vector<16x16xf32>
    %505 = tpu.matmul %503, %504, %cst_168 {dimension_numbers = #tpu.dot_dimension_numbers<[1], [1], [0], [0], [0, 0, 1, 0], [], []>} : vector<16x8xbf16>, vector<16x8xbf16>, vector<16x16xf32> -> vector<16x16xf32>
    %cst_169 = arith.constant 0.353553385 : f32
    %506 = vector.broadcast %cst_169 : f32 to vector<16x16xf32>
    %507 = arith.mulf %505, %506 : vector<16x16xf32>
    %508 = vector.broadcast %433 : vector<1x16xf32> to vector<16x16xf32>
    %509 = arith.addf %507, %508 : vector<16x16xf32>
    %cst_170 = arith.constant dense<0xFF800000> : vector<16xf32>
    %510 = vector.multi_reduction <maximumf>, %509, %cst_170 [1] : vector<16x16xf32> to vector<16xf32>
    %511 = vector.shape_cast %510 : vector<16xf32> to vector<16x1xf32>
    %512 = vector.broadcast %511 : vector<16x1xf32> to vector<16x16xf32>
    %513 = arith.subf %509, %512 : vector<16x16xf32>
    %514 = math.exp %513 : vector<16x16xf32>
    %cst_171 = arith.constant dense<0.000000e+00> : vector<16xf32>
    %515 = vector.multi_reduction <add>, %514, %cst_171 [1] : vector<16x16xf32> to vector<16xf32>
    %516 = vector.shape_cast %515 : vector<16xf32> to vector<16x1xf32>
    %517 = vector.broadcast %516 : vector<16x1xf32> to vector<16x16xf32>
    %518 = arith.divf %514, %517 : vector<16x16xf32>
    %519 = arith.truncf %518 : vector<16x16xf32> to vector<16x16xbf16>
    %520 = arith.truncf %502 : vector<16x8xf32> to vector<16x8xbf16>
    %cst_172 = arith.constant dense<0.000000e+00> : vector<16x8xf32>
    %521 = tpu.matmul %519, %520, %cst_172 {dimension_numbers = #tpu.dot_dimension_numbers<[1], [0], [0], [1], [0, 0, 1, 1], [], []>} : vector<16x16xbf16>, vector<16x8xbf16>, vector<16x8xf32> -> vector<16x8xf32>
    %522 = tpu.concatenate %455, %477, %499, %521 in 1 : vector<16x8xf32>, vector<16x8xf32>, vector<16x8xf32>, vector<16x8xf32> -> vector<16x32xf32>
    %523 = tpu.concatenate %430, %522 in 0 : vector<16x32xf32>, vector<16x32xf32> -> vector<32x32xf32>
    %c1_173 = arith.constant 1 : index
    %c0_174 = arith.constant 0 : index
    %c0_175 = arith.constant 0 : index
    %524 = vector.load %arg7[%c1_173, %c0_174, %c0_175] : memref<2x32x32xbf16, #tpu.memory_space<vmem>>, vector<1x32x32xbf16>
    %525 = vector.shape_cast %524 : vector<1x32x32xbf16> to vector<32x32xbf16>
    %526 = arith.truncf %523 : vector<32x32xf32> to vector<32x32xbf16>
    %cst_176 = arith.constant dense<0.000000e+00> : vector<32x32xf32>
    %527 = tpu.matmul %526, %525, %cst_176 {dimension_numbers = #tpu.dot_dimension_numbers<[1], [0], [0], [1], [0, 0, 1, 1], [], []>} : vector<32x32xbf16>, vector<32x32xbf16>, vector<32x32xf32> -> vector<32x32xf32>
    %c1_177 = arith.constant 1 : index
    %c0_178 = arith.constant 0 : index
    %c0_179 = arith.constant 0 : index
    %528 = vector.load %arg8[%c1_177, %c0_178, %c0_179] : memref<2x1x32xf32, #tpu.memory_space<vmem>>, vector<1x1x32xf32>
    %529 = vector.shape_cast %528 : vector<1x1x32xf32> to vector<1x32xf32>
    %530 = vector.broadcast %529 : vector<1x32xf32> to vector<32x32xf32>
    %531 = arith.addf %527, %530 : vector<32x32xf32>
    %532 = arith.addf %531, %330 : vector<32x32xf32>
    %c1_180 = arith.constant 1 : index
    %c0_181 = arith.constant 0 : index
    %c0_182 = arith.constant 0 : index
    %533 = vector.load %arg9[%c1_180, %c0_181, %c0_182] : memref<2x1x32xf32, #tpu.memory_space<vmem>>, vector<1x1x32xf32>
    %534 = vector.shape_cast %533 : vector<1x1x32xf32> to vector<1x32xf32>
    %c1_183 = arith.constant 1 : index
    %c0_184 = arith.constant 0 : index
    %c0_185 = arith.constant 0 : index
    %535 = vector.load %arg10[%c1_183, %c0_184, %c0_185] : memref<2x1x32xf32, #tpu.memory_space<vmem>>, vector<1x1x32xf32>
    %536 = vector.shape_cast %535 : vector<1x1x32xf32> to vector<1x32xf32>
    %cst_186 = arith.constant dense<0.000000e+00> : vector<32xf32>
    %537 = vector.multi_reduction <add>, %532, %cst_186 [1] : vector<32x32xf32> to vector<32xf32>
    %538 = vector.shape_cast %537 : vector<32xf32> to vector<32x1xf32>
    %cst_187 = arith.constant 3.200000e+01 : f32
    %539 = vector.broadcast %cst_187 : f32 to vector<32x1xf32>
    %540 = arith.divf %538, %539 : vector<32x1xf32>
    %541 = vector.broadcast %540 : vector<32x1xf32> to vector<32x32xf32>
    %542 = arith.subf %532, %541 : vector<32x32xf32>
    %543 = arith.mulf %542, %542 : vector<32x32xf32>
    %cst_188 = arith.constant dense<0.000000e+00> : vector<32xf32>
    %544 = vector.multi_reduction <add>, %543, %cst_188 [1] : vector<32x32xf32> to vector<32xf32>
    %545 = vector.shape_cast %544 : vector<32xf32> to vector<32x1xf32>
    %cst_189 = arith.constant 3.200000e+01 : f32
    %546 = vector.broadcast %cst_189 : f32 to vector<32x1xf32>
    %547 = arith.divf %545, %546 : vector<32x1xf32>
    %cst_190 = arith.constant 9.99999996E-13 : f32
    %548 = vector.broadcast %cst_190 : f32 to vector<32x1xf32>
    %549 = arith.addf %547, %548 : vector<32x1xf32>
    %550 = math.rsqrt %549 : vector<32x1xf32>
    %551 = vector.broadcast %550 : vector<32x1xf32> to vector<32x32xf32>
    %552 = arith.mulf %542, %551 : vector<32x32xf32>
    %553 = vector.broadcast %534 : vector<1x32xf32> to vector<32x32xf32>
    %554 = arith.mulf %552, %553 : vector<32x32xf32>
    %555 = vector.broadcast %536 : vector<1x32xf32> to vector<32x32xf32>
    %556 = arith.addf %554, %555 : vector<32x32xf32>
    %c1_191 = arith.constant 1 : index
    %c0_192 = arith.constant 0 : index
    %c0_193 = arith.constant 0 : index
    %557 = vector.load %arg11[%c1_191, %c0_192, %c0_193] : memref<2x32x64xbf16, #tpu.memory_space<vmem>>, vector<1x32x64xbf16>
    %558 = vector.shape_cast %557 : vector<1x32x64xbf16> to vector<32x64xbf16>
    %559 = arith.truncf %556 : vector<32x32xf32> to vector<32x32xbf16>
    %cst_194 = arith.constant dense<0.000000e+00> : vector<32x64xf32>
    %560 = tpu.matmul %559, %558, %cst_194 {dimension_numbers = #tpu.dot_dimension_numbers<[1], [0], [0], [1], [0, 0, 1, 1], [], []>} : vector<32x32xbf16>, vector<32x64xbf16>, vector<32x64xf32> -> vector<32x64xf32>
    %c1_195 = arith.constant 1 : index
    %c0_196 = arith.constant 0 : index
    %c0_197 = arith.constant 0 : index
    %561 = vector.load %arg12[%c1_195, %c0_196, %c0_197] : memref<2x1x64xf32, #tpu.memory_space<vmem>>, vector<1x1x64xf32>
    %562 = vector.shape_cast %561 : vector<1x1x64xf32> to vector<1x64xf32>
    %563 = vector.broadcast %562 : vector<1x64xf32> to vector<32x64xf32>
    %564 = arith.addf %560, %563 : vector<32x64xf32>
    %cst_198 = arith.constant 5.000000e-01 : f32
    %565 = vector.broadcast %cst_198 : f32 to vector<32x64xf32>
    %566 = arith.mulf %565, %564 : vector<32x64xf32>
    %cst_199 = arith.constant 0.707106769 : f32
    %567 = vector.broadcast %cst_199 : f32 to vector<32x64xf32>
    %568 = arith.mulf %564, %567 : vector<32x64xf32>
    %cst_200 = arith.constant 0.000000e+00 : f32
    %569 = vector.broadcast %cst_200 : f32 to vector<32x64xf32>
    %570 = arith.cmpf oge, %568, %569 : vector<32x64xf32>
    %cst_201 = arith.constant 1.000000e+00 : f32
    %cst_202 = arith.constant -1.000000e+00 : f32
    %571 = vector.broadcast %cst_201 : f32 to vector<32x64xf32>
    %572 = vector.broadcast %cst_202 : f32 to vector<32x64xf32>
    %573 = arith.select %570, %571, %572 : vector<32x64xi1>, vector<32x64xf32>
    %574 = math.absf %568 : vector<32x64xf32>
    %cst_203 = arith.constant 0.327591091 : f32
    %575 = vector.broadcast %cst_203 : f32 to vector<32x64xf32>
    %576 = arith.mulf %575, %574 : vector<32x64xf32>
    %cst_204 = arith.constant 1.000000e+00 : f32
    %577 = vector.broadcast %cst_204 : f32 to vector<32x64xf32>
    %578 = arith.addf %577, %576 : vector<32x64xf32>
    %cst_205 = arith.constant 1.000000e+00 : f32
    %579 = vector.broadcast %cst_205 : f32 to vector<32x64xf32>
    %580 = arith.divf %579, %578 : vector<32x64xf32>
    %cst_206 = arith.constant 1.06140542 : f32
    %581 = vector.broadcast %cst_206 : f32 to vector<32x64xf32>
    %582 = arith.mulf %581, %580 : vector<32x64xf32>
    %cst_207 = arith.constant -1.45315206 : f32
    %583 = vector.broadcast %cst_207 : f32 to vector<32x64xf32>
    %584 = arith.addf %582, %583 : vector<32x64xf32>
    %585 = arith.mulf %584, %580 : vector<32x64xf32>
    %cst_208 = arith.constant 1.42141378 : f32
    %586 = vector.broadcast %cst_208 : f32 to vector<32x64xf32>
    %587 = arith.addf %585, %586 : vector<32x64xf32>
    %588 = arith.mulf %587, %580 : vector<32x64xf32>
    %cst_209 = arith.constant -0.284496725 : f32
    %589 = vector.broadcast %cst_209 : f32 to vector<32x64xf32>
    %590 = arith.addf %588, %589 : vector<32x64xf32>
    %591 = arith.mulf %590, %580 : vector<32x64xf32>
    %cst_210 = arith.constant 0.254829586 : f32
    %592 = vector.broadcast %cst_210 : f32 to vector<32x64xf32>
    %593 = arith.addf %591, %592 : vector<32x64xf32>
    %594 = arith.mulf %593, %580 : vector<32x64xf32>
    %cst_211 = arith.constant 0.000000e+00 : f32
    %595 = vector.broadcast %cst_211 : f32 to vector<32x64xf32>
    %596 = arith.subf %595, %574 : vector<32x64xf32>
    %597 = arith.mulf %596, %574 : vector<32x64xf32>
    %598 = math.exp %597 : vector<32x64xf32>
    %599 = arith.mulf %594, %598 : vector<32x64xf32>
    %cst_212 = arith.constant 1.000000e+00 : f32
    %600 = vector.broadcast %cst_212 : f32 to vector<32x64xf32>
    %601 = arith.subf %600, %599 : vector<32x64xf32>
    %602 = arith.mulf %573, %601 : vector<32x64xf32>
    %cst_213 = arith.constant 1.000000e+00 : f32
    %603 = vector.broadcast %cst_213 : f32 to vector<32x64xf32>
    %604 = arith.addf %603, %602 : vector<32x64xf32>
    %605 = arith.mulf %566, %604 : vector<32x64xf32>
    %c1_214 = arith.constant 1 : index
    %c0_215 = arith.constant 0 : index
    %c0_216 = arith.constant 0 : index
    %606 = vector.load %arg13[%c1_214, %c0_215, %c0_216] : memref<2x64x32xbf16, #tpu.memory_space<vmem>>, vector<1x64x32xbf16>
    %607 = vector.shape_cast %606 : vector<1x64x32xbf16> to vector<64x32xbf16>
    %608 = arith.truncf %605 : vector<32x64xf32> to vector<32x64xbf16>
    %cst_217 = arith.constant dense<0.000000e+00> : vector<32x32xf32>
    %609 = tpu.matmul %608, %607, %cst_217 {dimension_numbers = #tpu.dot_dimension_numbers<[1], [0], [0], [1], [0, 0, 1, 1], [], []>} : vector<32x64xbf16>, vector<64x32xbf16>, vector<32x32xf32> -> vector<32x32xf32>
    %c1_218 = arith.constant 1 : index
    %c0_219 = arith.constant 0 : index
    %c0_220 = arith.constant 0 : index
    %610 = vector.load %arg14[%c1_218, %c0_219, %c0_220] : memref<2x1x32xf32, #tpu.memory_space<vmem>>, vector<1x1x32xf32>
    %611 = vector.shape_cast %610 : vector<1x1x32xf32> to vector<1x32xf32>
    %612 = vector.broadcast %611 : vector<1x32xf32> to vector<32x32xf32>
    %613 = arith.addf %609, %612 : vector<32x32xf32>
    %614 = arith.addf %613, %556 : vector<32x32xf32>
    %c1_221 = arith.constant 1 : index
    %c0_222 = arith.constant 0 : index
    %c0_223 = arith.constant 0 : index
    %615 = vector.load %arg15[%c1_221, %c0_222, %c0_223] : memref<2x1x32xf32, #tpu.memory_space<vmem>>, vector<1x1x32xf32>
    %616 = vector.shape_cast %615 : vector<1x1x32xf32> to vector<1x32xf32>
    %c1_224 = arith.constant 1 : index
    %c0_225 = arith.constant 0 : index
    %c0_226 = arith.constant 0 : index
    %617 = vector.load %arg16[%c1_224, %c0_225, %c0_226] : memref<2x1x32xf32, #tpu.memory_space<vmem>>, vector<1x1x32xf32>
    %618 = vector.shape_cast %617 : vector<1x1x32xf32> to vector<1x32xf32>
    %cst_227 = arith.constant dense<0.000000e+00> : vector<32xf32>
    %619 = vector.multi_reduction <add>, %614, %cst_227 [1] : vector<32x32xf32> to vector<32xf32>
    %620 = vector.shape_cast %619 : vector<32xf32> to vector<32x1xf32>
    %cst_228 = arith.constant 3.200000e+01 : f32
    %621 = vector.broadcast %cst_228 : f32 to vector<32x1xf32>
    %622 = arith.divf %620, %621 : vector<32x1xf32>
    %623 = vector.broadcast %622 : vector<32x1xf32> to vector<32x32xf32>
    %624 = arith.subf %614, %623 : vector<32x32xf32>
    %625 = arith.mulf %624, %624 : vector<32x32xf32>
    %cst_229 = arith.constant dense<0.000000e+00> : vector<32xf32>
    %626 = vector.multi_reduction <add>, %625, %cst_229 [1] : vector<32x32xf32> to vector<32xf32>
    %627 = vector.shape_cast %626 : vector<32xf32> to vector<32x1xf32>
    %cst_230 = arith.constant 3.200000e+01 : f32
    %628 = vector.broadcast %cst_230 : f32 to vector<32x1xf32>
    %629 = arith.divf %627, %628 : vector<32x1xf32>
    %cst_231 = arith.constant 9.99999996E-13 : f32
    %630 = vector.broadcast %cst_231 : f32 to vector<32x1xf32>
    %631 = arith.addf %629, %630 : vector<32x1xf32>
    %632 = math.rsqrt %631 : vector<32x1xf32>
    %633 = vector.broadcast %632 : vector<32x1xf32> to vector<32x32xf32>
    %634 = arith.mulf %624, %633 : vector<32x32xf32>
    %635 = vector.broadcast %616 : vector<1x32xf32> to vector<32x32xf32>
    %636 = arith.mulf %634, %635 : vector<32x32xf32>
    %637 = vector.broadcast %618 : vector<1x32xf32> to vector<32x32xf32>
    %638 = arith.addf %636, %637 : vector<32x32xf32>
    %639 = vector.extract_strided_slice %638 {offsets = [0, 0], sizes = [1, 32], strides = [1, 1]} : vector<32x32xf32> to vector<1x32xf32>
    %640 = vector.extract_strided_slice %638 {offsets = [16, 0], sizes = [1, 32], strides = [1, 1]} : vector<32x32xf32> to vector<1x32xf32>
    %641 = tpu.concatenate %639, %640 in 0 : vector<1x32xf32>, vector<1x32xf32> -> vector<2x32xf32>
    %c0_232 = arith.constant 0 : index
    %c0_233 = arith.constant 0 : index
    %642 = vector.load %arg17[%c0_232, %c0_233] : memref<32x32xbf16, #tpu.memory_space<vmem>>, vector<32x32xbf16>
    %643 = arith.truncf %641 : vector<2x32xf32> to vector<2x32xbf16>
    %cst_234 = arith.constant dense<0.000000e+00> : vector<2x32xf32>
    %644 = tpu.matmul %643, %642, %cst_234 {dimension_numbers = #tpu.dot_dimension_numbers<[1], [0], [0], [1], [0, 0, 1, 1], [], []>} : vector<2x32xbf16>, vector<32x32xbf16>, vector<2x32xf32> -> vector<2x32xf32>
    %c0_235 = arith.constant 0 : index
    %c0_236 = arith.constant 0 : index
    %645 = vector.load %arg18[%c0_235, %c0_236] : memref<1x32xf32, #tpu.memory_space<vmem>>, vector<1x32xf32>
    %646 = vector.broadcast %645 : vector<1x32xf32> to vector<2x32xf32>
    %647 = arith.addf %644, %646 : vector<2x32xf32>
    %648 = math.tanh %647 : vector<2x32xf32>
    %c0_237 = arith.constant 0 : index
    %c0_238 = arith.constant 0 : index
    %649 = vector.load %arg19[%c0_237, %c0_238] : memref<32x2xbf16, #tpu.memory_space<vmem>>, vector<32x2xbf16>
    %650 = arith.truncf %648 : vector<2x32xf32> to vector<2x32xbf16>
    %cst_239 = arith.constant dense<0.000000e+00> : vector<2x2xf32>
    %651 = tpu.matmul %650, %649, %cst_239 {dimension_numbers = #tpu.dot_dimension_numbers<[1], [0], [0], [1], [0, 0, 1, 1], [], []>} : vector<2x32xbf16>, vector<32x2xbf16>, vector<2x2xf32> -> vector<2x2xf32>
    %c0_240 = arith.constant 0 : index
    %c0_241 = arith.constant 0 : index
    %652 = vector.load %arg20[%c0_240, %c0_241] : memref<1x2xf32, #tpu.memory_space<vmem>>, vector<1x2xf32>
    %653 = vector.broadcast %652 : vector<1x2xf32> to vector<2x2xf32>
    %654 = arith.addf %651, %653 : vector<2x2xf32>
    %c0_242 = arith.constant 0 : index
    %c0_243 = arith.constant 0 : index
    %655 = vector.load %arg22[%c0_242, %c0_243] : memref<2x2xf32, #tpu.memory_space<vmem>>, vector<2x2xf32>
    tpu.vector_store %arg22[%c0_242, %c0_243], %654 {strides = array<i32>} : memref<2x2xf32, #tpu.memory_space<vmem>>, vector<2x2xf32>,
    %656 = tpu.iota {dimensions = array<i32: 0>} : vector<32x1xi32>
    %c0_244 = arith.constant 0 : index
    %c0_245 = arith.constant 0 : index
    %657 = memref.load %arg0[%c0_244, %c0_245] : memref<2x4xi32, #tpu.memory_space<smem>>
    %c0_i32 = arith.constant 0 : i32
    %658 = arith.addi %c0_i32, %657 : i32
    %659 = vector.broadcast %658 : i32 to vector<32x1xi32>
    %660 = arith.cmpi eq, %656, %659 : vector<32x1xi32>
    %cst_246 = arith.constant 0.000000e+00 : f32
    %661 = vector.shape_cast %660 : vector<32x1xi1> to vector<32x1xi1>
    %662 = vector.broadcast %661 : vector<32x1xi1> to vector<32x32xi1>
    %663 = vector.broadcast %cst_246 : f32 to vector<32x32xf32>
    %664 = arith.select %662, %638, %663 : vector<32x32xi1>, vector<32x32xf32>
    %cst_247 = arith.constant dense<0.000000e+00> : vector<32xf32>
    %665 = vector.multi_reduction <add>, %664, %cst_247 [0] : vector<32x32xf32> to vector<32xf32>
    %666 = vector.shape_cast %665 : vector<32xf32> to vector<1x32xf32>
    %c0_248 = arith.constant 0 : index
    %c1_249 = arith.constant 1 : index
    %667 = memref.load %arg0[%c0_248, %c1_249] : memref<2x4xi32, #tpu.memory_space<smem>>
    %c0_i32_250 = arith.constant 0 : i32
    %668 = arith.addi %c0_i32_250, %667 : i32
    %669 = vector.broadcast %668 : i32 to vector<32x1xi32>
    %670 = arith.cmpi eq, %656, %669 : vector<32x1xi32>
    %cst_251 = arith.constant 0.000000e+00 : f32
    %671 = vector.shape_cast %670 : vector<32x1xi1> to vector<32x1xi1>
    %672 = vector.broadcast %671 : vector<32x1xi1> to vector<32x32xi1>
    %673 = vector.broadcast %cst_251 : f32 to vector<32x32xf32>
    %674 = arith.select %672, %638, %673 : vector<32x32xi1>, vector<32x32xf32>
    %cst_252 = arith.constant dense<0.000000e+00> : vector<32xf32>
    %675 = vector.multi_reduction <add>, %674, %cst_252 [0] : vector<32x32xf32> to vector<32xf32>
    %676 = vector.shape_cast %675 : vector<32xf32> to vector<1x32xf32>
    %c0_253 = arith.constant 0 : index
    %c2 = arith.constant 2 : index
    %677 = memref.load %arg0[%c0_253, %c2] : memref<2x4xi32, #tpu.memory_space<smem>>
    %c0_i32_254 = arith.constant 0 : i32
    %678 = arith.addi %c0_i32_254, %677 : i32
    %679 = vector.broadcast %678 : i32 to vector<32x1xi32>
    %680 = arith.cmpi eq, %656, %679 : vector<32x1xi32>
    %cst_255 = arith.constant 0.000000e+00 : f32
    %681 = vector.shape_cast %680 : vector<32x1xi1> to vector<32x1xi1>
    %682 = vector.broadcast %681 : vector<32x1xi1> to vector<32x32xi1>
    %683 = vector.broadcast %cst_255 : f32 to vector<32x32xf32>
    %684 = arith.select %682, %638, %683 : vector<32x32xi1>, vector<32x32xf32>
    %cst_256 = arith.constant dense<0.000000e+00> : vector<32xf32>
    %685 = vector.multi_reduction <add>, %684, %cst_256 [0] : vector<32x32xf32> to vector<32xf32>
    %686 = vector.shape_cast %685 : vector<32xf32> to vector<1x32xf32>
    %c0_257 = arith.constant 0 : index
    %c3 = arith.constant 3 : index
    %687 = memref.load %arg0[%c0_257, %c3] : memref<2x4xi32, #tpu.memory_space<smem>>
    %c0_i32_258 = arith.constant 0 : i32
    %688 = arith.addi %c0_i32_258, %687 : i32
    %689 = vector.broadcast %688 : i32 to vector<32x1xi32>
    %690 = arith.cmpi eq, %656, %689 : vector<32x1xi32>
    %cst_259 = arith.constant 0.000000e+00 : f32
    %691 = vector.shape_cast %690 : vector<32x1xi1> to vector<32x1xi1>
    %692 = vector.broadcast %691 : vector<32x1xi1> to vector<32x32xi1>
    %693 = vector.broadcast %cst_259 : f32 to vector<32x32xf32>
    %694 = arith.select %692, %638, %693 : vector<32x32xi1>, vector<32x32xf32>
    %cst_260 = arith.constant dense<0.000000e+00> : vector<32xf32>
    %695 = vector.multi_reduction <add>, %694, %cst_260 [0] : vector<32x32xf32> to vector<32xf32>
    %696 = vector.shape_cast %695 : vector<32xf32> to vector<1x32xf32>
    %c1_261 = arith.constant 1 : index
    %c0_262 = arith.constant 0 : index
    %697 = memref.load %arg0[%c1_261, %c0_262] : memref<2x4xi32, #tpu.memory_space<smem>>
    %c16_i32 = arith.constant 16 : i32
    %698 = arith.addi %c16_i32, %697 : i32
    %699 = vector.broadcast %698 : i32 to vector<32x1xi32>
    %700 = arith.cmpi eq, %656, %699 : vector<32x1xi32>
    %cst_263 = arith.constant 0.000000e+00 : f32
    %701 = vector.shape_cast %700 : vector<32x1xi1> to vector<32x1xi1>
    %702 = vector.broadcast %701 : vector<32x1xi1> to vector<32x32xi1>
    %703 = vector.broadcast %cst_263 : f32 to vector<32x32xf32>
    %704 = arith.select %702, %638, %703 : vector<32x32xi1>, vector<32x32xf32>
    %cst_264 = arith.constant dense<0.000000e+00> : vector<32xf32>
    %705 = vector.multi_reduction <add>, %704, %cst_264 [0] : vector<32x32xf32> to vector<32xf32>
    %706 = vector.shape_cast %705 : vector<32xf32> to vector<1x32xf32>
    %c1_265 = arith.constant 1 : index
    %c1_266 = arith.constant 1 : index
    %707 = memref.load %arg0[%c1_265, %c1_266] : memref<2x4xi32, #tpu.memory_space<smem>>
    %c16_i32_267 = arith.constant 16 : i32
    %708 = arith.addi %c16_i32_267, %707 : i32
    %709 = vector.broadcast %708 : i32 to vector<32x1xi32>
    %710 = arith.cmpi eq, %656, %709 : vector<32x1xi32>
    %cst_268 = arith.constant 0.000000e+00 : f32
    %711 = vector.shape_cast %710 : vector<32x1xi1> to vector<32x1xi1>
    %712 = vector.broadcast %711 : vector<32x1xi1> to vector<32x32xi1>
    %713 = vector.broadcast %cst_268 : f32 to vector<32x32xf32>
    %714 = arith.select %712, %638, %713 : vector<32x32xi1>, vector<32x32xf32>
    %cst_269 = arith.constant dense<0.000000e+00> : vector<32xf32>
    %715 = vector.multi_reduction <add>, %714, %cst_269 [0] : vector<32x32xf32> to vector<32xf32>
    %716 = vector.shape_cast %715 : vector<32xf32> to vector<1x32xf32>
    %c1_270 = arith.constant 1 : index
    %c2_271 = arith.constant 2 : index
    %717 = memref.load %arg0[%c1_270, %c2_271] : memref<2x4xi32, #tpu.memory_space<smem>>
    %c16_i32_272 = arith.constant 16 : i32
    %718 = arith.addi %c16_i32_272, %717 : i32
    %719 = vector.broadcast %718 : i32 to vector<32x1xi32>
    %720 = arith.cmpi eq, %656, %719 : vector<32x1xi32>
    %cst_273 = arith.constant 0.000000e+00 : f32
    %721 = vector.shape_cast %720 : vector<32x1xi1> to vector<32x1xi1>
    %722 = vector.broadcast %721 : vector<32x1xi1> to vector<32x32xi1>
    %723 = vector.broadcast %cst_273 : f32 to vector<32x32xf32>
    %724 = arith.select %722, %638, %723 : vector<32x32xi1>, vector<32x32xf32>
    %cst_274 = arith.constant dense<0.000000e+00> : vector<32xf32>
    %725 = vector.multi_reduction <add>, %724, %cst_274 [0] : vector<32x32xf32> to vector<32xf32>
    %726 = vector.shape_cast %725 : vector<32xf32> to vector<1x32xf32>
    %c1_275 = arith.constant 1 : index
    %c3_276 = arith.constant 3 : index
    %727 = memref.load %arg0[%c1_275, %c3_276] : memref<2x4xi32, #tpu.memory_space<smem>>
    %c16_i32_277 = arith.constant 16 : i32
    %728 = arith.addi %c16_i32_277, %727 : i32
    %729 = vector.broadcast %728 : i32 to vector<32x1xi32>
    %730 = arith.cmpi eq, %656, %729 : vector<32x1xi32>
    %cst_278 = arith.constant 0.000000e+00 : f32
    %731 = vector.shape_cast %730 : vector<32x1xi1> to vector<32x1xi1>
    %732 = vector.broadcast %731 : vector<32x1xi1> to vector<32x32xi1>
    %733 = vector.broadcast %cst_278 : f32 to vector<32x32xf32>
    %734 = arith.select %732, %638, %733 : vector<32x32xi1>, vector<32x32xf32>
    %cst_279 = arith.constant dense<0.000000e+00> : vector<32xf32>
    %735 = vector.multi_reduction <add>, %734, %cst_279 [0] : vector<32x32xf32> to vector<32xf32>
    %736 = vector.shape_cast %735 : vector<32xf32> to vector<1x32xf32>
    %737 = tpu.concatenate %666, %676, %686, %696, %706, %716, %726, %736 in 0 : vector<1x32xf32>, vector<1x32xf32>, vector<1x32xf32>, vector<1x32xf32>, vector<1x32xf32>, vector<1x32xf32>, vector<1x32xf32>, vector<1x32xf32> -> vector<8x32xf32>
    %c0_280 = arith.constant 0 : index
    %c0_281 = arith.constant 0 : index
    %738 = vector.load %arg21[%c0_280, %c0_281] : memref<8x32xf32, #tpu.memory_space<vmem>>, vector<8x32xf32>
    tpu.vector_store %arg21[%c0_280, %c0_281], %737 {strides = array<i32>} : memref<8x32xf32, #tpu.memory_space<vmem>>, vector<8x32xf32>,
    return
  }
}

module attributes {stable_mosaic.version = 11 : i64} {
  func.func @_mlm_head_kernel(%arg0: i32, %arg1: memref<8x32xf32, #tpu.memory_space<vmem>>, %arg2: memref<32x32xbf16, #tpu.memory_space<vmem>>, %arg3: memref<1x32xf32, #tpu.memory_space<vmem>>, %arg4: memref<1x32xf32, #tpu.memory_space<vmem>>, %arg5: memref<1x32xf32, #tpu.memory_space<vmem>>, %arg6: memref<32x512xbf16, #tpu.memory_space<vmem>>, %arg7: memref<1x512xf32, #tpu.memory_space<vmem>>, %arg8: memref<8x1xi32, #tpu.memory_space<vmem>>, %arg9: memref<8x1xf32, #tpu.memory_space<vmem>>, %arg10: memref<1x1xf32, #tpu.memory_space<smem>>, %arg11: memref<8x32xf32, #tpu.memory_space<vmem>>, %arg12: memref<8x1xf32, #tpu.memory_space<vmem>>, %arg13: memref<8x1xf32, #tpu.memory_space<vmem>>, %arg14: memref<8x1xf32, #tpu.memory_space<vmem>>) attributes {dimension_semantics = [#tpu.dimension_semantics<arbitrary>], iteration_bounds = array<i64: 1>, scalar_prefetch = 0 : i64, scratch_operands = 4 : i64, tpu.core_type = #tpu.core_type<tc>, window_params = [{pipeline_mode = #tpu.pipeline_mode<synchronous>, transform_indices = @transform_0, window_bounds = array<i64: 8, 32>}, {pipeline_mode = #tpu.pipeline_mode<synchronous>, transform_indices = @transform_1, window_bounds = array<i64: 32, 32>}, {pipeline_mode = #tpu.pipeline_mode<synchronous>, transform_indices = @transform_2, window_bounds = array<i64: 1, 32>}, {pipeline_mode = #tpu.pipeline_mode<synchronous>, transform_indices = @transform_3, window_bounds = array<i64: 1, 32>}, {pipeline_mode = #tpu.pipeline_mode<synchronous>, transform_indices = @transform_4, window_bounds = array<i64: 1, 32>}, {transform_indices = @transform_5, window_bounds = array<i64: 32, 512>}, {transform_indices = @transform_6, window_bounds = array<i64: 1, 512>}, {pipeline_mode = #tpu.pipeline_mode<synchronous>, transform_indices = @transform_7, window_bounds = array<i64: 8, 1>}, {pipeline_mode = #tpu.pipeline_mode<synchronous>, transform_indices = @transform_8, window_bounds = array<i64: 8, 1>}, {transform_indices = @transform_9, window_bounds = array<i64: 1, 1>}]} {
    %c0_i32 = arith.constant 0 : i32
    %0 = arith.cmpi eq, %arg0, %c0_i32 : i32
    %1 = arith.extui %0 : i1 to i32
    %c0_i32_0 = arith.constant 0 : i32
    %2 = arith.cmpi ne, %1, %c0_i32_0 : i32
    scf.if %2 {
      %c0_28 = arith.constant 0 : index
      %c0_29 = arith.constant 0 : index
      %44 = vector.load %arg1[%c0_28, %c0_29] : memref<8x32xf32, #tpu.memory_space<vmem>>, vector<8x32xf32>
      %c0_30 = arith.constant 0 : index
      %c0_31 = arith.constant 0 : index
      %45 = vector.load %arg2[%c0_30, %c0_31] : memref<32x32xbf16, #tpu.memory_space<vmem>>, vector<32x32xbf16>
      %46 = arith.truncf %44 : vector<8x32xf32> to vector<8x32xbf16>
      %cst_32 = arith.constant dense<0.000000e+00> : vector<8x32xf32>
      %47 = tpu.matmul %46, %45, %cst_32 {dimension_numbers = #tpu.dot_dimension_numbers<[1], [0], [0], [1], [0, 0, 1, 1], [], []>} : vector<8x32xbf16>, vector<32x32xbf16>, vector<8x32xf32> -> vector<8x32xf32>
      %c0_33 = arith.constant 0 : index
      %c0_34 = arith.constant 0 : index
      %48 = vector.load %arg3[%c0_33, %c0_34] : memref<1x32xf32, #tpu.memory_space<vmem>>, vector<1x32xf32>
      %49 = vector.broadcast %48 : vector<1x32xf32> to vector<8x32xf32>
      %50 = arith.addf %47, %49 : vector<8x32xf32>
      %cst_35 = arith.constant 5.000000e-01 : f32
      %51 = vector.broadcast %cst_35 : f32 to vector<8x32xf32>
      %52 = arith.mulf %51, %50 : vector<8x32xf32>
      %cst_36 = arith.constant 0.707106769 : f32
      %53 = vector.broadcast %cst_36 : f32 to vector<8x32xf32>
      %54 = arith.mulf %50, %53 : vector<8x32xf32>
      %cst_37 = arith.constant 0.000000e+00 : f32
      %55 = vector.broadcast %cst_37 : f32 to vector<8x32xf32>
      %56 = arith.cmpf oge, %54, %55 : vector<8x32xf32>
      %cst_38 = arith.constant 1.000000e+00 : f32
      %cst_39 = arith.constant -1.000000e+00 : f32
      %57 = vector.broadcast %cst_38 : f32 to vector<8x32xf32>
      %58 = vector.broadcast %cst_39 : f32 to vector<8x32xf32>
      %59 = arith.select %56, %57, %58 : vector<8x32xi1>, vector<8x32xf32>
      %60 = math.absf %54 : vector<8x32xf32>
      %cst_40 = arith.constant 0.327591091 : f32
      %61 = vector.broadcast %cst_40 : f32 to vector<8x32xf32>
      %62 = arith.mulf %61, %60 : vector<8x32xf32>
      %cst_41 = arith.constant 1.000000e+00 : f32
      %63 = vector.broadcast %cst_41 : f32 to vector<8x32xf32>
      %64 = arith.addf %63, %62 : vector<8x32xf32>
      %cst_42 = arith.constant 1.000000e+00 : f32
      %65 = vector.broadcast %cst_42 : f32 to vector<8x32xf32>
      %66 = arith.divf %65, %64 : vector<8x32xf32>
      %cst_43 = arith.constant 1.06140542 : f32
      %67 = vector.broadcast %cst_43 : f32 to vector<8x32xf32>
      %68 = arith.mulf %67, %66 : vector<8x32xf32>
      %cst_44 = arith.constant -1.45315206 : f32
      %69 = vector.broadcast %cst_44 : f32 to vector<8x32xf32>
      %70 = arith.addf %68, %69 : vector<8x32xf32>
      %71 = arith.mulf %70, %66 : vector<8x32xf32>
      %cst_45 = arith.constant 1.42141378 : f32
      %72 = vector.broadcast %cst_45 : f32 to vector<8x32xf32>
      %73 = arith.addf %71, %72 : vector<8x32xf32>
      %74 = arith.mulf %73, %66 : vector<8x32xf32>
      %cst_46 = arith.constant -0.284496725 : f32
      %75 = vector.broadcast %cst_46 : f32 to vector<8x32xf32>
      %76 = arith.addf %74, %75 : vector<8x32xf32>
      %77 = arith.mulf %76, %66 : vector<8x32xf32>
      %cst_47 = arith.constant 0.254829586 : f32
      %78 = vector.broadcast %cst_47 : f32 to vector<8x32xf32>
      %79 = arith.addf %77, %78 : vector<8x32xf32>
      %80 = arith.mulf %79, %66 : vector<8x32xf32>
      %cst_48 = arith.constant 0.000000e+00 : f32
      %81 = vector.broadcast %cst_48 : f32 to vector<8x32xf32>
      %82 = arith.subf %81, %60 : vector<8x32xf32>
      %83 = arith.mulf %82, %60 : vector<8x32xf32>
      %84 = math.exp %83 : vector<8x32xf32>
      %85 = arith.mulf %80, %84 : vector<8x32xf32>
      %cst_49 = arith.constant 1.000000e+00 : f32
      %86 = vector.broadcast %cst_49 : f32 to vector<8x32xf32>
      %87 = arith.subf %86, %85 : vector<8x32xf32>
      %88 = arith.mulf %59, %87 : vector<8x32xf32>
      %cst_50 = arith.constant 1.000000e+00 : f32
      %89 = vector.broadcast %cst_50 : f32 to vector<8x32xf32>
      %90 = arith.addf %89, %88 : vector<8x32xf32>
      %91 = arith.mulf %52, %90 : vector<8x32xf32>
      %c0_51 = arith.constant 0 : index
      %c0_52 = arith.constant 0 : index
      %92 = vector.load %arg4[%c0_51, %c0_52] : memref<1x32xf32, #tpu.memory_space<vmem>>, vector<1x32xf32>
      %c0_53 = arith.constant 0 : index
      %c0_54 = arith.constant 0 : index
      %93 = vector.load %arg5[%c0_53, %c0_54] : memref<1x32xf32, #tpu.memory_space<vmem>>, vector<1x32xf32>
      %cst_55 = arith.constant dense<0.000000e+00> : vector<8xf32>
      %94 = vector.multi_reduction <add>, %91, %cst_55 [1] : vector<8x32xf32> to vector<8xf32>
      %95 = vector.shape_cast %94 : vector<8xf32> to vector<8x1xf32>
      %cst_56 = arith.constant 3.200000e+01 : f32
      %96 = vector.broadcast %cst_56 : f32 to vector<8x1xf32>
      %97 = arith.divf %95, %96 : vector<8x1xf32>
      %98 = vector.broadcast %97 : vector<8x1xf32> to vector<8x32xf32>
      %99 = arith.subf %91, %98 : vector<8x32xf32>
      %100 = arith.mulf %99, %99 : vector<8x32xf32>
      %cst_57 = arith.constant dense<0.000000e+00> : vector<8xf32>
      %101 = vector.multi_reduction <add>, %100, %cst_57 [1] : vector<8x32xf32> to vector<8xf32>
      %102 = vector.shape_cast %101 : vector<8xf32> to vector<8x1xf32>
      %cst_58 = arith.constant 3.200000e+01 : f32
      %103 = vector.broadcast %cst_58 : f32 to vector<8x1xf32>
      %104 = arith.divf %102, %103 : vector<8x1xf32>
      %cst_59 = arith.constant 9.99999974E-6 : f32
      %105 = vector.broadcast %cst_59 : f32 to vector<8x1xf32>
      %106 = arith.addf %104, %105 : vector<8x1xf32>
      %107 = math.rsqrt %106 : vector<8x1xf32>
      %108 = vector.broadcast %107 : vector<8x1xf32> to vector<8x32xf32>
      %109 = arith.mulf %99, %108 : vector<8x32xf32>
      %110 = vector.broadcast %92 : vector<1x32xf32> to vector<8x32xf32>
      %111 = arith.mulf %109, %110 : vector<8x32xf32>
      %112 = vector.broadcast %93 : vector<1x32xf32> to vector<8x32xf32>
      %113 = arith.addf %111, %112 : vector<8x32xf32>
      %c0_60 = arith.constant 0 : index
      %c0_61 = arith.constant 0 : index
      %114 = vector.load %arg11[%c0_60, %c0_61] : memref<8x32xf32, #tpu.memory_space<vmem>>, vector<8x32xf32>
      tpu.vector_store %arg11[%c0_60, %c0_61], %113 {strides = array<i32>} : memref<8x32xf32, #tpu.memory_space<vmem>>, vector<8x32xf32>,
      %cst_62 = arith.constant 0xFF800000 : f32
      %115 = vector.broadcast %cst_62 : f32 to vector<8x1xf32>
      %c0_63 = arith.constant 0 : index
      %c0_64 = arith.constant 0 : index
      %116 = vector.load %arg12[%c0_63, %c0_64] : memref<8x1xf32, #tpu.memory_space<vmem>>, vector<8x1xf32>
      tpu.vector_store %arg12[%c0_63, %c0_64], %115 {strides = array<i32>} : memref<8x1xf32, #tpu.memory_space<vmem>>, vector<8x1xf32>,
      %cst_65 = arith.constant 0.000000e+00 : f32
      %117 = vector.broadcast %cst_65 : f32 to vector<8x1xf32>
      %c0_66 = arith.constant 0 : index
      %c0_67 = arith.constant 0 : index
      %118 = vector.load %arg13[%c0_66, %c0_67] : memref<8x1xf32, #tpu.memory_space<vmem>>, vector<8x1xf32>
      tpu.vector_store %arg13[%c0_66, %c0_67], %117 {strides = array<i32>} : memref<8x1xf32, #tpu.memory_space<vmem>>, vector<8x1xf32>,
      %cst_68 = arith.constant 0.000000e+00 : f32
      %119 = vector.broadcast %cst_68 : f32 to vector<8x1xf32>
      %c0_69 = arith.constant 0 : index
      %c0_70 = arith.constant 0 : index
      %120 = vector.load %arg14[%c0_69, %c0_70] : memref<8x1xf32, #tpu.memory_space<vmem>>, vector<8x1xf32>
      tpu.vector_store %arg14[%c0_69, %c0_70], %119 {strides = array<i32>} : memref<8x1xf32, #tpu.memory_space<vmem>>, vector<8x1xf32>,
    } else {
    }
    %c0 = arith.constant 0 : index
    %c0_1 = arith.constant 0 : index
    %3 = vector.load %arg11[%c0, %c0_1] : memref<8x32xf32, #tpu.memory_space<vmem>>, vector<8x32xf32>
    %c0_2 = arith.constant 0 : index
    %c0_3 = arith.constant 0 : index
    %4 = vector.load %arg6[%c0_2, %c0_3] : memref<32x512xbf16, #tpu.memory_space<vmem>>, vector<32x512xbf16>
    %5 = arith.truncf %3 : vector<8x32xf32> to vector<8x32xbf16>
    %cst = arith.constant dense<0.000000e+00> : vector<8x512xf32>
    %6 = tpu.matmul %5, %4, %cst {dimension_numbers = #tpu.dot_dimension_numbers<[1], [0], [0], [1], [0, 0, 1, 1], [], []>} : vector<8x32xbf16>, vector<32x512xbf16>, vector<8x512xf32> -> vector<8x512xf32>
    %c0_4 = arith.constant 0 : index
    %c0_5 = arith.constant 0 : index
    %7 = vector.load %arg7[%c0_4, %c0_5] : memref<1x512xf32, #tpu.memory_space<vmem>>, vector<1x512xf32>
    %8 = vector.broadcast %7 : vector<1x512xf32> to vector<8x512xf32>
    %9 = arith.addf %6, %8 : vector<8x512xf32>
    %10 = tpu.iota {dimensions = array<i32: 1>} : vector<8x512xi32>
    %c512_i32 = arith.constant 512 : i32
    %11 = arith.muli %arg0, %c512_i32 : i32
    %12 = vector.broadcast %11 : i32 to vector<8x512xi32>
    %13 = arith.addi %10, %12 : vector<8x512xi32>
    %c0_6 = arith.constant 0 : index
    %c0_7 = arith.constant 0 : index
    %14 = vector.load %arg14[%c0_6, %c0_7] : memref<8x1xf32, #tpu.memory_space<vmem>>, vector<8x1xf32>
    %c0_8 = arith.constant 0 : index
    %c0_9 = arith.constant 0 : index
    %15 = vector.load %arg8[%c0_8, %c0_9] : memref<8x1xi32, #tpu.memory_space<vmem>>, vector<8x1xi32>
    %16 = vector.broadcast %15 : vector<8x1xi32> to vector<8x512xi32>
    %17 = arith.cmpi eq, %13, %16 : vector<8x512xi32>
    %cst_10 = arith.constant 0.000000e+00 : f32
    %18 = vector.broadcast %cst_10 : f32 to vector<8x512xf32>
    %19 = arith.select %17, %9, %18 : vector<8x512xi1>, vector<8x512xf32>
    %cst_11 = arith.constant dense<0.000000e+00> : vector<8xf32>
    %20 = vector.multi_reduction <add>, %19, %cst_11 [1] : vector<8x512xf32> to vector<8xf32>
    %21 = vector.shape_cast %20 : vector<8xf32> to vector<8x1xf32>
    %22 = arith.addf %14, %21 : vector<8x1xf32>
    %c0_12 = arith.constant 0 : index
    %c0_13 = arith.constant 0 : index
    %23 = vector.load %arg14[%c0_12, %c0_13] : memref<8x1xf32, #tpu.memory_space<vmem>>, vector<8x1xf32>
    tpu.vector_store %arg14[%c0_12, %c0_13], %22 {strides = array<i32>} : memref<8x1xf32, #tpu.memory_space<vmem>>, vector<8x1xf32>,
    %c0_14 = arith.constant 0 : index
    %c0_15 = arith.constant 0 : index
    %24 = vector.load %arg12[%c0_14, %c0_15] : memref<8x1xf32, #tpu.memory_space<vmem>>, vector<8x1xf32>
    %cst_16 = arith.constant dense<0xFF800000> : vector<8xf32>
    %25 = vector.multi_reduction <maximumf>, %9, %cst_16 [1] : vector<8x512xf32> to vector<8xf32>
    %26 = vector.shape_cast %25 : vector<8xf32> to vector<8x1xf32>
    %27 = arith.maximumf %24, %26 : vector<8x1xf32>
    %c0_17 = arith.constant 0 : index
    %c0_18 = arith.constant 0 : index
    %28 = vector.load %arg13[%c0_17, %c0_18] : memref<8x1xf32, #tpu.memory_space<vmem>>, vector<8x1xf32>
    %c0_19 = arith.constant 0 : index
    %c0_20 = arith.constant 0 : index
    %29 = vector.load %arg12[%c0_19, %c0_20] : memref<8x1xf32, #tpu.memory_space<vmem>>, vector<8x1xf32>
    %30 = arith.subf %29, %27 : vector<8x1xf32>
    %31 = math.exp %30 : vector<8x1xf32>
    %32 = arith.mulf %28, %31 : vector<8x1xf32>
    %33 = vector.broadcast %27 : vector<8x1xf32> to vector<8x512xf32>
    %34 = arith.subf %9, %33 : vector<8x512xf32>
    %35 = math.exp %34 : vector<8x512xf32>
    %cst_21 = arith.constant dense<0.000000e+00> : vector<8xf32>
    %36 = vector.multi_reduction <add>, %35, %cst_21 [1] : vector<8x512xf32> to vector<8xf32>
    %37 = vector.shape_cast %36 : vector<8xf32> to vector<8x1xf32>
    %38 = arith.addf %32, %37 : vector<8x1xf32>
    %c0_22 = arith.constant 0 : index
    %c0_23 = arith.constant 0 : index
    %39 = vector.load %arg13[%c0_22, %c0_23] : memref<8x1xf32, #tpu.memory_space<vmem>>, vector<8x1xf32>
    tpu.vector_store %arg13[%c0_22, %c0_23], %38 {strides = array<i32>} : memref<8x1xf32, #tpu.memory_space<vmem>>, vector<8x1xf32>,
    %c0_24 = arith.constant 0 : index
    %c0_25 = arith.constant 0 : index
    %40 = vector.load %arg12[%c0_24, %c0_25] : memref<8x1xf32, #tpu.memory_space<vmem>>, vector<8x1xf32>
    tpu.vector_store %arg12[%c0_24, %c0_25], %27 {strides = array<i32>} : memref<8x1xf32, #tpu.memory_space<vmem>>, vector<8x1xf32>,
    %c0_i32_26 = arith.constant 0 : i32
    %41 = arith.cmpi eq, %arg0, %c0_i32_26 : i32
    %42 = arith.extui %41 : i1 to i32
    %c0_i32_27 = arith.constant 0 : i32
    %43 = arith.cmpi ne, %42, %c0_i32_27 : i32
    scf.if %43 {
      %c0_28 = arith.constant 0 : index
      %c0_29 = arith.constant 0 : index
      %44 = vector.load %arg12[%c0_28, %c0_29] : memref<8x1xf32, #tpu.memory_space<vmem>>, vector<8x1xf32>
      %c0_30 = arith.constant 0 : index
      %c0_31 = arith.constant 0 : index
      %45 = vector.load %arg13[%c0_30, %c0_31] : memref<8x1xf32, #tpu.memory_space<vmem>>, vector<8x1xf32>
      %46 = math.log %45 : vector<8x1xf32>
      %47 = arith.addf %44, %46 : vector<8x1xf32>
      %c0_32 = arith.constant 0 : index
      %c0_33 = arith.constant 0 : index
      %48 = vector.load %arg14[%c0_32, %c0_33] : memref<8x1xf32, #tpu.memory_space<vmem>>, vector<8x1xf32>
      %49 = arith.subf %47, %48 : vector<8x1xf32>
      %c0_34 = arith.constant 0 : index
      %c0_35 = arith.constant 0 : index
      %50 = vector.load %arg9[%c0_34, %c0_35] : memref<8x1xf32, #tpu.memory_space<vmem>>, vector<8x1xf32>
      %51 = arith.mulf %49, %50 : vector<8x1xf32>
      %52 = vector.shape_cast %51 : vector<8x1xf32> to vector<1x8x1xf32>
      %cst_36 = arith.constant dense<0.000000e+00> : vector<1xf32>
      %53 = vector.multi_reduction <add>, %52, %cst_36 [1, 2] : vector<1x8x1xf32> to vector<1xf32>
      %54 = vector.shape_cast %53 : vector<1xf32> to vector<1x1x1xf32>
      %55 = vector.extract %54[0, 0, 0] : f32 from vector<1x1x1xf32>
      %56 = vector.shape_cast %50 : vector<8x1xf32> to vector<1x8x1xf32>
      %cst_37 = arith.constant dense<0.000000e+00> : vector<1xf32>
      %57 = vector.multi_reduction <add>, %56, %cst_37 [1, 2] : vector<1x8x1xf32> to vector<1xf32>
      %58 = vector.shape_cast %57 : vector<1xf32> to vector<1x1x1xf32>
      %59 = vector.extract %58[0, 0, 0] : f32 from vector<1x1x1xf32>
      %cst_38 = arith.constant 9.99999974E-6 : f32
      %60 = arith.addf %59, %cst_38 : f32
      %61 = arith.divf %55, %60 : f32
      %c0_39 = arith.constant 0 : index
      %c0_40 = arith.constant 0 : index
      %62 = memref.load %arg10[%c0_39, %c0_40] : memref<1x1xf32, #tpu.memory_space<smem>>
      memref.store %61, %arg10[%c0_39, %c0_40] : memref<1x1xf32, #tpu.memory_space<smem>>
    } else {
    }
    return
  }
  func.func @transform_0(%arg0: i32) -> (i32, i32) {
    %c0_i32 = arith.constant 0 : i32
    %c0_i32_0 = arith.constant 0 : i32
    %c0_i32_1 = arith.constant 0 : i32
    return %c0_i32, %c0_i32_0 : i32, i32
  }
  func.func @transform_1(%arg0: i32) -> (i32, i32) {
    %c0_i32 = arith.constant 0 : i32
    %c0_i32_0 = arith.constant 0 : i32
    %c0_i32_1 = arith.constant 0 : i32
    return %c0_i32, %c0_i32_0 : i32, i32
  }
  func.func @transform_2(%arg0: i32) -> (i32, i32) {
    %c0_i32 = arith.constant 0 : i32
    %c0_i32_0 = arith.constant 0 : i32
    %c0_i32_1 = arith.constant 0 : i32
    return %c0_i32, %c0_i32_0 : i32, i32
  }
  func.func @transform_3(%arg0: i32) -> (i32, i32) {
    %c0_i32 = arith.constant 0 : i32
    %c0_i32_0 = arith.constant 0 : i32
    %c0_i32_1 = arith.constant 0 : i32
    return %c0_i32, %c0_i32_0 : i32, i32
  }
  func.func @transform_4(%arg0: i32) -> (i32, i32) {
    %c0_i32 = arith.constant 0 : i32
    %c0_i32_0 = arith.constant 0 : i32
    %c0_i32_1 = arith.constant 0 : i32
    return %c0_i32, %c0_i32_0 : i32, i32
  }
  func.func @transform_5(%arg0: i32) -> (i32, i32) {
    %c0_i32 = arith.constant 0 : i32
    %c0_i32_0 = arith.constant 0 : i32
    return %c0_i32, %arg0 : i32, i32
  }
  func.func @transform_6(%arg0: i32) -> (i32, i32) {
    %c0_i32 = arith.constant 0 : i32
    %c0_i32_0 = arith.constant 0 : i32
    return %c0_i32, %arg0 : i32, i32
  }
  func.func @transform_7(%arg0: i32) -> (i32, i32) {
    %c0_i32 = arith.constant 0 : i32
    %c0_i32_0 = arith.constant 0 : i32
    %c0_i32_1 = arith.constant 0 : i32
    return %c0_i32, %c0_i32_0 : i32, i32
  }
  func.func @transform_8(%arg0: i32) -> (i32, i32) {
    %c0_i32 = arith.constant 0 : i32
    %c0_i32_0 = arith.constant 0 : i32
    %c0_i32_1 = arith.constant 0 : i32
    return %c0_i32, %c0_i32_0 : i32, i32
  }
  func.func @transform_9(%arg0: i32) -> (i32, i32) {
    %c0_i32 = arith.constant 0 : i32
    %c0_i32_0 = arith.constant 0 : i32
    %c0_i32_1 = arith.constant 0 : i32
    return %c0_i32, %c0_i32_0 : i32, i32
  }
}

</mosaic_0001>

<llo_original>
// kernel: bert_further_forward.3
$region0: #{bert_further_forward.3}
  #allocation0 [shape = 'u32[]', space=smem, size = 0x4, offset = 0x4, fixed_abs, tag = 'smem constant byte address 0x4 - core index']
  #allocation1 [shape = 'u32[144,128]{1,0:T(1,128)}', space=vmem, size = 0x12000, scoped, tag = 'internal scratch']
  #allocation2 [shape = 'f32[8,32]{1,0:T(8,128)}', space=vmem, size = 0x1000, scoped, tag = 'scratch operand']
  #allocation3 [shape = 'f32[8,1]{1,0:T(8,128)}', space=vmem, size = 0x1000, scoped, tag = 'scratch operand']
  #allocation4 [shape = 'f32[8,1]{1,0:T(8,128)}', space=vmem, size = 0x1000, scoped, tag = 'scratch operand']
  #allocation5 [shape = 'f32[8,1]{1,0:T(8,128)}', space=vmem, size = 0x1000, scoped, tag = 'scratch operand']
  %s0 = inlined_call_operand.vmem [shape: f32[8,32], index: 0, kind: input, shape index: {}]
  %s1 = inlined_call_operand.vmem [shape: bf16[32,32], index: 1, kind: input, shape index: {}]
  %s2 = inlined_call_operand.vmem [shape: f32[1,32], index: 2, kind: input, shape index: {}]
  %s3 = inlined_call_operand.vmem [shape: f32[1,32], index: 3, kind: input, shape index: {}]
  %s4 = inlined_call_operand.vmem [shape: f32[1,32], index: 4, kind: input, shape index: {}]
  %s5 = inlined_call_operand.vmem [shape: bf16[32,512], index: 5, kind: input, shape index: {}]
  %s6 = inlined_call_operand.vmem [shape: f32[1,512], index: 6, kind: input, shape index: {}]
  %s7 = inlined_call_operand.vmem [shape: s32[8,1], index: 7, kind: input, shape index: {}]
  %s8 = inlined_call_operand.vmem [shape: f32[8,1], index: 8, kind: input, shape index: {}]
  %s9 = inlined_call_operand.hbm [shape: f32[1,1], index: 9, kind: output, shape index: {}]
  %s10 = sld [smem:[#allocation0]]
  $region54: #{bert_further_forward.3} parent=0
    _
  %s12 = ssub.s32 1, %s10
  %s13 = scalar_select 0, %s12, %s10
  $region1: #{bert_further_forward.3} parent=0
    #allocation6 [shape = 'u8[512]{0}', space=smem, size = 0x200, scoped, tag = 'output window, operand 0, single buffered']
    #allocation7 [shape = 's32[1]{0}', space=sflag, size = 0x4, scoped, tag = 'scoped memory for bert_further_forward.3']
    %14 = vsyncpa [#allocation7], 0
    // Predicated region
    $region2: #{bert_further_forward.3} parent=1 // pred_check
      _
    $region3: #{bert_further_forward.3} parent=1 // pred_check_branch
      %16 = sbr.rel (0) target = $region5
    $region4: #{bert_further_forward.3} parent=1 // pred_region
      _
    $region5: #{bert_further_forward.3} parent=1 // pred_fallthru
      _
    // Predicated region
    $region6: #{bert_further_forward.3} parent=1 // pred_check
      _
    $region7: #{bert_further_forward.3} parent=1 // pred_check_branch
      %18 = sbr.rel (0) target = $region9
    $region8: #{bert_further_forward.3} parent=1 // pred_region
      _
    $region9: #{bert_further_forward.3} parent=1 // pred_fallthru
      _
    // Predicated region
    $region10: #{bert_further_forward.3} parent=1 // pred_check
      _
    $region11: #{bert_further_forward.3} parent=1 // pred_check_branch
      %20 = sbr.rel (0) target = $region13
    $region12: #{bert_further_forward.3} parent=1 // pred_region
      _
    $region13: #{bert_further_forward.3} parent=1 // pred_fallthru
      _
    // Predicated region
    $region14: #{bert_further_forward.3} parent=1 // pred_check
      _
    $region15: #{bert_further_forward.3} parent=1 // pred_check_branch
      %22 = sbr.rel (0) target = $region17
    $region16: #{bert_further_forward.3} parent=1 // pred_region
      _
    $region17: #{bert_further_forward.3} parent=1 // pred_fallthru
      _
    // Predicated region
    $region18: #{bert_further_forward.3} parent=1 // pred_check
      _
    $region19: #{bert_further_forward.3} parent=1 // pred_check_branch
      %24 = sbr.rel (0) target = $region21
    $region20: #{bert_further_forward.3} parent=1 // pred_region
      _
    $region21: #{bert_further_forward.3} parent=1 // pred_fallthru
      _
    // Predicated region
    $region22: #{bert_further_forward.3} parent=1 // pred_check
      _
    $region23: #{bert_further_forward.3} parent=1 // pred_check_branch
      %26 = sbr.rel (0) target = $region25
    $region24: #{bert_further_forward.3} parent=1 // pred_region
      _
    $region25: #{bert_further_forward.3} parent=1 // pred_fallthru
      _
    // Predicated region
    $region26: #{bert_further_forward.3} parent=1 // pred_check
      _
    $region27: #{bert_further_forward.3} parent=1 // pred_check_branch
      %28 = sbr.rel (0) target = $region29
    $region28: #{bert_further_forward.3} parent=1 // pred_region
      _
    $region29: #{bert_further_forward.3} parent=1 // pred_fallthru
      _
    // Predicated region
    $region30: #{bert_further_forward.3} parent=1 // pred_check
      _
    $region31: #{bert_further_forward.3} parent=1 // pred_check_branch
      %30 = sbr.rel (0) target = $region33
    $region32: #{bert_further_forward.3} parent=1 // pred_region
      _
    $region33: #{bert_further_forward.3} parent=1 // pred_fallthru
      _
    // Predicated region
    $region34: #{bert_further_forward.3} parent=1 // pred_check
      _
    $region35: #{bert_further_forward.3} parent=1 // pred_check_branch
      %32 = sbr.rel (0) target = $region37
    $region36: #{bert_further_forward.3} parent=1 // pred_region
      _
    $region37: #{bert_further_forward.3} parent=1 // pred_fallthru
      _
    %p34 = scmp.eq.s32.totalorder 0, 0
    // Predicated region
    $region38: #{bert_further_forward.3} parent=1 // pred_check
      %p35 = pneg %p34
    $region39: #{bert_further_forward.3} parent=1 // pred_check_branch
      %37 = sbr.rel (%p35) target = $region41
    $region40: #{bert_further_forward.3} parent=1 // pred_region
      %v38 = vld [vmem:[%s0] sm:$0xff]
      %v39 = vld [vmem:[%s1] sm:$0xf]
      %v40 = vld [vmem:[%s1 + $0x4] sm:$0xf]
      %v41 = vld [vmem:[%s1 + $0x8] sm:$0xf]
      %v42 = vld [vmem:[%s1 + $0xc] sm:$0xf]
      %v43 = vpack.c.bf16 %v38, %v38
      %v44 = vld [vmem:[%s2] sm:$0x1]
      %v46 = vlaneseq
      %v47 = vshrl.u32 %v46, 7
      %v48 = vsub.s32 0, %v47
      %v49 = vrot.slane %v44, %v48
      %v55 = vunpack.c.l.b16 %v39
      %v56 = vunpack.c.l.b16 %v40
      %v57 = vunpack.c.l.b16 %v41
      %v58 = vunpack.c.l.b16 %v42
      %v59 = vpack.c.b16 %v56, %v55
      %v60 = vpack.c.b16 %v58, %v57
      %vm63 = vcmask 261120
      %v65 = vsel %vm63, %v43, 0
      %67 = vmatprep.subr.bf16.mxu0 0
      %68 = vmatpush1.bf16.msra.mxu0 %v59
      %69 = vmatprep.subr.bf16.mxu0 0
      %70 = vmatpush1.bf16.msra.mxu0 %v60
      %71 = vmatprep.subr.bf16.mxu0 0
      %72 = vmatpush1.bf16.msra.mxu0 0
      %73 = vmatprep.subr.bf16.mxu0 0
      %74 = vmatpush1.bf16.msra.mxu0 0
      %75 = vmatprep.subr.bf16.mxu0 0
      %76 = vmatpush1.bf16.msra.mxu0 0
      %77 = vmatprep.subr.bf16.mxu0 0
      %78 = vmatpush1.bf16.msra.mxu0 0
      %79 = vmatprep.subr.bf16.mxu0 0
      %80 = vmatpush1.bf16.msra.mxu0 0
      %81 = vmatprep.subr.bf16.mxu0 0
      %82 = vmatpush1.bf16.msra.mxu0 0
      %83 = vmatprep.subr.bf16.mxu0 0
      %84 = vmatpush1.bf16.msra.mxu0 0
      %85 = vmatprep.subr.bf16.mxu0 0
      %86 = vmatpush1.bf16.msra.mxu0 0
      %87 = vmatprep.subr.bf16.mxu0 0
      %88 = vmatpush1.bf16.msra.mxu0 0
      %89 = vmatprep.subr.bf16.mxu0 0
      %90 = vmatpush1.bf16.msra.mxu0 0
      %91 = vmatprep.subr.bf16.mxu0 0
      %92 = vmatpush1.bf16.msra.mxu0 0
      %93 = vmatprep.subr.bf16.mxu0 0
      %94 = vmatpush1.bf16.msra.mxu0 0
      %95 = vmatprep.subr.bf16.mxu0 0
      %96 = vmatpush1.bf16.msra.mxu0 0
      %97 = vmatprep.subr.bf16.mxu0 0
      %98 = vmatpush1.bf16.msra.mxu0 0
      %99 = vmatprep.mubr.bf16.mxu0 0
      %100 = vmatmul.mubr.bf16.gmra.mrb[0].mxu0 %v65
      %v101 = vpop.f32.mrb[0].mxu0
      %v102 = vadd.f32 %v49, %v101
      %v103 = vpop.f32.mrb[0].mxu0
      %v104 = vpop.f32.mrb[0].mxu0
      %v105 = vpop.f32.mrb[0].mxu0
      %106 = vdwg.mxu0
      %v107 = vmul.f32 %v102, 0.5
      %v108 = vmul.f32 %v102, 0.70710677
      %vm109 = vcmp.ge.f32.partialorder %v108, 0.0
      %v110 = vsel %vm109, 1.0, -1.0
      %v111 = vand.u32 2147483647, %v108
      %v112 = vmul.f32 %v111, 0.3275911
      %v113 = vadd.f32 %v112, 1.0
      %v114 = vrcp.pop %v113
      %v115 = vmul.f32 1.0, %v114
      %v116 = vmul.f32 %v115, 1.0614054
      %v117 = vadd.f32 %v116, -1.4531521
      %v118 = vmul.f32 %v117, %v115
      %v119 = vadd.f32 %v118, 1.4214138
      %v120 = vmul.f32 %v119, %v115
      %v121 = vadd.f32 %v120, -0.28449672
      %v122 = vmul.f32 %v121, %v115
      %v123 = vadd.f32 %v122, 0.2548296
      %v124 = vmul.f32 %v123, %v115
      %v125 = vsub.f32 0.0, %v111
      %v126 = vmul.f32 %v125, %v111
      %v127 = vmul.f32 %v126, 1.442695
      %v128 = vpow.pop %v127
      %v129 = vmul.f32 %v124, %v128
      %v130 = vsub.f32 1.0, %v129
      %v131 = vmul.f32 %v110, %v130
      %v132 = vadd.f32 %v131, 1.0
      %v133 = vmul.f32 %v107, %v132
      %v134 = vld [vmem:[%s3] sm:$0x1]
      %v135 = vld [vmem:[%s4] sm:$0x1]
      %v136 = vsel %vm63, %v133, 0.0
      %137 = vadd.xlane.f32.xlu0 %v136
      %v138 = vpop.xlane.xlu0 %137
      %v139 = vrcp.pop 32.0
      %v140 = vmul.f32 %v138, %v139
      %v141 = vsub.f32 %v133, %v140
      %v142 = vmul.f32 %v141, %v141
      %v143 = vsel %vm63, %v142, 0.0
      %144 = vadd.xlane.f32.xlu0 %v143
      %v145 = vpop.xlane.xlu0 %144
      %v146 = vmul.f32 %v145, %v139
      %v147 = vadd.f32 %v146, 1e-05
      %v148 = vrsqrt.pop %v147
      %v149 = vmul.f32 %v141, %v148
      %v151 = vlaneseq
      %v152 = vshrl.u32 %v151, 7
      %v153 = vsub.s32 0, %v152
      %v154 = vrot.slane %v134, %v153
      %v156 = vmul.f32 %v149, %v154
      %v158 = vlaneseq
      %v159 = vshrl.u32 %v158, 7
      %v160 = vsub.s32 0, %v159
      %v161 = vrot.slane %v135, %v160
      %v163 = vadd.f32 %v156, %v161
      %164 = vst.msk [vmem:[#allocation2] sm:$0xff] %vm63, %v163
      %vm165 = vcmask 7168
      %166 = vst.msk [vmem:[#allocation3] sm:$0xff] %vm165, -inf
      %167 = vst.msk [vmem:[#allocation4] sm:$0xff] %vm165, 0.0
      %168 = vst.msk [vmem:[#allocation5] sm:$0xff] %vm165, 0.0
    $region41: #{bert_further_forward.3} parent=1 // pred_fallthru
      _
    %v169 = vld [vmem:[#allocation2] sm:$0xff]
    %v170 = vld [vmem:[%s5] sm:$0xff]
    %v171 = vld [vmem:[%s5 + $0x8] sm:$0xff]
    %v172 = vld [vmem:[%s5 + $0x10] sm:$0xff]
    %v173 = vld [vmem:[%s5 + $0x18] sm:$0xff]
    %v174 = vld [vmem:[%s5 + $0x20] sm:$0xff]
    %v175 = vld [vmem:[%s5 + $0x28] sm:$0xff]
    %v176 = vld [vmem:[%s5 + $0x30] sm:$0xff]
    %v177 = vld [vmem:[%s5 + $0x38] sm:$0xff]
    %v178 = vpack.c.bf16 %v169, %v169
    %v179 = vld [vmem:[%s6] sm:$0xf]
    %v181 = vlaneseq
    %v182 = vshrl.u32 %v181, 7
    %v183 = vsub.s32 0, %v182
    %v184 = vrot.slane %v179, %v183
    %v185 = vlaneseq
    %v186 = vshrl.u32 %v185, 7
    %v187 = vsub.s32 1, %v186
    %v188 = vrot.slane %v179, %v187
    %v189 = vlaneseq
    %v190 = vshrl.u32 %v189, 7
    %v191 = vsub.s32 2, %v190
    %v192 = vrot.slane %v179, %v191
    %v193 = vlaneseq
    %v194 = vshrl.u32 %v193, 7
    %v195 = vsub.s32 3, %v194
    %v196 = vrot.slane %v179, %v195
    %v209 = vunpack.c.l.b16 %v170
    %v210 = vunpack.c.h.b16 %v170
    %v211 = vunpack.c.l.b16 %v171
    %v212 = vunpack.c.h.b16 %v171
    %v213 = vunpack.c.l.b16 %v172
    %v214 = vunpack.c.h.b16 %v172
    %v215 = vunpack.c.l.b16 %v173
    %v216 = vunpack.c.h.b16 %v173
    %v217 = vunpack.c.l.b16 %v174
    %v218 = vunpack.c.h.b16 %v174
    %v219 = vunpack.c.l.b16 %v175
    %v220 = vunpack.c.h.b16 %v175
    %v221 = vunpack.c.l.b16 %v176
    %v222 = vunpack.c.h.b16 %v176
    %v223 = vunpack.c.l.b16 %v177
    %v224 = vunpack.c.h.b16 %v177
    %v225 = vpack.c.b16 %v213, %v209
    %v226 = vpack.c.b16 %v214, %v210
    %v227 = vpack.c.b16 %v215, %v211
    %v228 = vpack.c.b16 %v216, %v212
    %v229 = vpack.c.b16 %v221, %v217
    %v230 = vpack.c.b16 %v222, %v218
    %v231 = vpack.c.b16 %v223, %v219
    %v232 = vpack.c.b16 %v224, %v220
    %vm241 = vcmask 261120
    %v243 = vsel %vm241, %v178, 0
    %245 = vmatprep.subr.bf16.mxu0 %v226
    %246 = vmatpush1.bf16.msra.mxu0 %v225
    %247 = vmatprep.subr.bf16.mxu0 %v230
    %248 = vmatpush1.bf16.msra.mxu0 %v229
    %249 = vmatprep.subr.bf16.mxu0 0
    %250 = vmatpush1.bf16.msra.mxu0 0
    %251 = vmatprep.subr.bf16.mxu0 0
    %252 = vmatpush1.bf16.msra.mxu0 0
    %253 = vmatprep.subr.bf16.mxu0 0
    %254 = vmatpush1.bf16.msra.mxu0 0
    %255 = vmatprep.subr.bf16.mxu0 0
    %256 = vmatpush1.bf16.msra.mxu0 0
    %257 = vmatprep.subr.bf16.mxu0 0
    %258 = vmatpush1.bf16.msra.mxu0 0
    %259 = vmatprep.subr.bf16.mxu0 0
    %260 = vmatpush1.bf16.msra.mxu0 0
    %261 = vmatprep.subr.bf16.mxu0 0
    %262 = vmatpush1.bf16.msra.mxu0 0
    %263 = vmatprep.subr.bf16.mxu0 0
    %264 = vmatpush1.bf16.msra.mxu0 0
    %265 = vmatprep.subr.bf16.mxu0 0
    %266 = vmatpush1.bf16.msra.mxu0 0
    %267 = vmatprep.subr.bf16.mxu0 0
    %268 = vmatpush1.bf16.msra.mxu0 0
    %269 = vmatprep.subr.bf16.mxu0 0
    %270 = vmatpush1.bf16.msra.mxu0 0
    %271 = vmatprep.subr.bf16.mxu0 0
    %272 = vmatpush1.bf16.msra.mxu0 0
    %273 = vmatprep.subr.bf16.mxu0 0
    %274 = vmatpush1.bf16.msra.mxu0 0
    %275 = vmatprep.subr.bf16.mxu0 0
    %276 = vmatpush1.bf16.msra.mxu0 0
    %277 = vmatprep.mubr.bf16.mxu0 0
    %278 = vmatmul.mubr.bf16.gmra.mrb[0].mxu0 %v243
    %v279 = vpop.f32.mrb[0].mxu0
    %v280 = vadd.f32 %v184, %v279
    %v281 = vpop.f32.mrb[0].mxu0
    %v282 = vadd.f32 %v188, %v281
    %v283 = vpop.f32.mrb[0].mxu0
    %v284 = vpop.f32.mrb[0].mxu0
    %285 = vdwg.mxu0
    %286 = vmatprep.subr.bf16.mxu0 %v228
    %287 = vmatpush1.bf16.msra.mxu0 %v227
    %288 = vmatprep.subr.bf16.mxu0 %v232
    %289 = vmatpush1.bf16.msra.mxu0 %v231
    %290 = vmatprep.subr.bf16.mxu0 0
    %291 = vmatpush1.bf16.msra.mxu0 0
    %292 = vmatprep.subr.bf16.mxu0 0
    %293 = vmatpush1.bf16.msra.mxu0 0
    %294 = vmatprep.subr.bf16.mxu0 0
    %295 = vmatpush1.bf16.msra.mxu0 0
    %296 = vmatprep.subr.bf16.mxu0 0
    %297 = vmatpush1.bf16.msra.mxu0 0
    %298 = vmatprep.subr.bf16.mxu0 0
    %299 = vmatpush1.bf16.msra.mxu0 0
    %300 = vmatprep.subr.bf16.mxu0 0
    %301 = vmatpush1.bf16.msra.mxu0 0
    %302 = vmatprep.subr.bf16.mxu0 0
    %303 = vmatpush1.bf16.msra.mxu0 0
    %304 = vmatprep.subr.bf16.mxu0 0
    %305 = vmatpush1.bf16.msra.mxu0 0
    %306 = vmatprep.subr.bf16.mxu0 0
    %307 = vmatpush1.bf16.msra.mxu0 0
    %308 = vmatprep.subr.bf16.mxu0 0
    %309 = vmatpush1.bf16.msra.mxu0 0
    %310 = vmatprep.subr.bf16.mxu0 0
    %311 = vmatpush1.bf16.msra.mxu0 0
    %312 = vmatprep.subr.bf16.mxu0 0
    %313 = vmatpush1.bf16.msra.mxu0 0
    %314 = vmatprep.subr.bf16.mxu0 0
    %315 = vmatpush1.bf16.msra.mxu0 0
    %316 = vmatprep.subr.bf16.mxu0 0
    %317 = vmatpush1.bf16.msra.mxu0 0
    %318 = vmatprep.mubr.bf16.mxu0 0
    %319 = vmatmul.mubr.bf16.gmra.mrb[0].mxu0 %v243
    %v320 = vpop.f32.mrb[0].mxu0
    %v321 = vadd.f32 %v192, %v320
    %v322 = vpop.f32.mrb[0].mxu0
    %v323 = vadd.f32 %v196, %v322
    %v324 = vpop.f32.mrb[0].mxu0
    %v325 = vpop.f32.mrb[0].mxu0
    %326 = vdwg.mxu0
    %v327 = vlaneseq
    %v328 = vand.u32 %v327, 127
    %v329 = vadd.s32 %v328, 128
    %v330 = vadd.s32 %v328, 256
    %v331 = vadd.s32 %v328, 384
    %s332 = smul.u32 0, 512
    %v333 = vstv %s332
    %v334 = vadd.s32 %v328, %v333
    %v335 = vadd.s32 %v329, %v333
    %v336 = vadd.s32 %v330, %v333
    %v337 = vadd.s32 %v331, %v333
    %v338 = vld [vmem:[#allocation5] sm:$0xff]
    %v339 = vld [vmem:[%s7] sm:$0xff]
    %340 = vset.pattern.permute.xlu0 0
    %341 = vperm.xlu0 %340, %v339
    %v342 = vpop.permute.xlu0 %341
    %vm343 = vcmp.eq.s32.totalorder %v334, %v342
    %vm344 = vcmp.eq.s32.totalorder %v335, %v342
    %vm345 = vcmp.eq.s32.totalorder %v336, %v342
    %vm346 = vcmp.eq.s32.totalorder %v337, %v342
    %v347 = vsel %vm343, %v280, 0.0
    %v348 = vsel %vm344, %v282, 0.0
    %v349 = vsel %vm345, %v321, 0.0
    %v350 = vsel %vm346, %v323, 0.0
    %v351 = vadd.f32 %v347, %v348
    %v352 = vadd.f32 %v351, %v349
    %v353 = vadd.f32 %v352, %v350
    %354 = vadd.xlane.f32.xlu0 %v353
    %v355 = vpop.xlane.xlu0 %354
    %v356 = vadd.f32 %v338, %v355
    %vm357 = vcmask 7168
    %358 = vst.msk [vmem:[#allocation5] sm:$0xff] %vm357, %v356
    %v359 = vld [vmem:[#allocation3] sm:$0xff]
    %v360 = vmax.f32 %v280, %v282
    %v361 = vmax.f32 %v321, %v323
    %v362 = vmax.f32 %v360, %v361
    %363 = vmax.xlane.f32.xlu0 %v362
    %v364 = vpop.xlane.xlu0 %363
    %v365 = vmax.f32 %v359, %v364
    %v366 = vld [vmem:[#allocation4] sm:$0xff]
    %v367 = vsub.f32 %v359, %v365
    %v368 = vmul.f32 %v367, 1.442695
    %v369 = vpow.pop %v368
    %v370 = vmul.f32 %v366, %v369
    %372 = vset.pattern.permute.xlu0 0
    %373 = vperm.xlu0 %372, %v365
    %v374 = vpop.permute.xlu0 %373
    %v376 = vsub.f32 %v280, %v374
    %v377 = vsub.f32 %v282, %v374
    %v378 = vsub.f32 %v321, %v374
    %v379 = vsub.f32 %v323, %v374
    %v380 = vmul.f32 %v376, 1.442695
    %v381 = vpow.pop %v380
    %v382 = vmul.f32 %v377, 1.442695
    %v383 = vpow.pop %v382
    %v384 = vmul.f32 %v378, 1.442695
    %v385 = vpow.pop %v384
    %v386 = vmul.f32 %v379, 1.442695
    %v387 = vpow.pop %v386
    %v388 = vadd.f32 %v381, %v383
    %v389 = vadd.f32 %v388, %v385
    %v390 = vadd.f32 %v389, %v387
    %391 = vadd.xlane.f32.xlu0 %v390
    %v392 = vpop.xlane.xlu0 %391
    %v393 = vadd.f32 %v370, %v392
    %394 = vst.msk [vmem:[#allocation4] sm:$0xff] %vm357, %v393
    %395 = vst.msk [vmem:[#allocation3] sm:$0xff] %vm357, %v365
    // Predicated region
    $region42: #{bert_further_forward.3} parent=1 // pred_check
      %p396 = pneg %p34
    $region43: #{bert_further_forward.3} parent=1 // pred_check_branch
      %398 = sbr.rel (%p396) target = $region45
    $region44: #{bert_further_forward.3} parent=1 // pred_region
      %v399 = vld [vmem:[#allocation3] sm:$0xff]
      %v400 = vld [vmem:[#allocation4] sm:$0xff]
      %v401 = vlog2.pop %v400
      %v402 = vmul.f32 %v401, 0.6931472
      %v403 = vadd.f32 %v399, %v402
      %v404 = vld [vmem:[#allocation5] sm:$0xff]
      %v405 = vsub.f32 %v403, %v404
      %v406 = vld [vmem:[%s8] sm:$0xff]
      %v407 = vmul.f32 %v405, %v406
      %v408 = vsel %vm357, %v407, 0.0
      %409 = vadd.xlane.f32.xlu0 %v408
      %v410 = vpop.xlane.xlu0 %409
      %v411 = vrot.slane %v410, 4
      %v412 = vadd.f32 %v410, %v411
      %v413 = vrot.slane %v412, 2
      %v414 = vadd.f32 %v412, %v413
      %v415 = vrot.slane %v414, 1
      %v416 = vadd.f32 %v414, %v415
      %s417 = vtos %v416
      %v418 = vsel %vm357, %v406, 0.0
      %419 = vadd.xlane.f32.xlu0 %v418
      %v420 = vpop.xlane.xlu0 %419
      %v421 = vrot.slane %v420, 4
      %v422 = vadd.f32 %v420, %v421
      %v423 = vrot.slane %v422, 2
      %v424 = vadd.f32 %v422, %v423
      %v425 = vrot.slane %v424, 1
      %v426 = vadd.f32 %v424, %v425
      %s427 = vtos %v426
      %s428 = sadd.f32 %s427, 1e-05
      %v429 = vstv %s428
      %v430 = vrcp.pop %v429
      %s431 = vtos %v430
      %s432 = smul.f32 %s417, %s431
      %s433 = scalar_lea.smem [#allocation6], 0
      %434 = sst [smem:[%s433]] %s432
    $region45: #{bert_further_forward.3} parent=1 // pred_fallthru
      _
    // Predicated region
    $region46: #{bert_further_forward.3} parent=1 // pred_check
      _
    $region47: #{bert_further_forward.3} parent=1 // pred_check_branch
      %436 = sbr.rel (0) target = $region49
    $region48: #{bert_further_forward.3} parent=1 // pred_region
      %s438 = ssub.s32 16, 16
      %439 = vsyncadd [#allocation7], %s438
      %442 = dma.smem_to_hbm [#allocation6], 16, %s9, [#allocation7]
    $region49: #{bert_further_forward.3} parent=1 // pred_fallthru
      _
    // Predicated region
    $region50: #{bert_further_forward.3} parent=1 // pred_check
      _
    $region51: #{bert_further_forward.3} parent=1 // pred_check_branch
      %444 = sbr.rel (0) target = $region53
    $region52: #{bert_further_forward.3} parent=1 // pred_region
      %445 = dma.done [#allocation7], 16
    $region53: #{bert_further_forward.3} parent=1 // pred_fallthru
      _
    %446 = sfence
    %447 = vsyncpa [#allocation7], 1

// kernel: bert_further_forward.2
$region0: #{bert_further_forward.2}
  #allocation0 [shape = 'u32[]', space=smem, size = 0x4, offset = 0x4, fixed_abs, tag = 'smem constant byte address 0x4 - core index']
  #allocation1 [shape = 'u32[144,128]{1,0:T(1,128)}', space=vmem, size = 0x12000, scoped, tag = 'internal scratch']
  %s0 = inlined_call_operand.vmem [shape: s32[2,4], index: 0, kind: input, shape index: {}]
  %s1 = inlined_call_operand.vmem [shape: f32[32,32], index: 1, kind: input, shape index: {}]
  %s2 = inlined_call_operand.vmem [shape: f32[2,1,16], index: 2, kind: input, shape index: {}]
  %s3 = inlined_call_operand.vmem [shape: f32[1,32], index: 3, kind: input, shape index: {}]
  %s4 = inlined_call_operand.vmem [shape: f32[1,32], index: 4, kind: input, shape index: {}]
  %s5 = inlined_call_operand.vmem [shape: bf16[2,32,96], index: 5, kind: input, shape index: {}]
  %s6 = inlined_call_operand.vmem [shape: f32[2,1,96], index: 6, kind: input, shape index: {}]
  %s7 = inlined_call_operand.vmem [shape: bf16[2,32,32], index: 7, kind: input, shape index: {}]
  %s8 = inlined_call_operand.vmem [shape: f32[2,1,32], index: 8, kind: input, shape index: {}]
  %s9 = inlined_call_operand.vmem [shape: f32[2,1,32], index: 9, kind: input, shape index: {}]
  %s10 = inlined_call_operand.vmem [shape: f32[2,1,32], index: 10, kind: input, shape index: {}]
  %s11 = inlined_call_operand.vmem [shape: bf16[2,32,64], index: 11, kind: input, shape index: {}]
  %s12 = inlined_call_operand.vmem [shape: f32[2,1,64], index: 12, kind: input, shape index: {}]
  %s13 = inlined_call_operand.vmem [shape: bf16[2,64,32], index: 13, kind: input, shape index: {}]
  %s14 = inlined_call_operand.vmem [shape: f32[2,1,32], index: 14, kind: input, shape index: {}]
  %s15 = inlined_call_operand.vmem [shape: f32[2,1,32], index: 15, kind: input, shape index: {}]
  %s16 = inlined_call_operand.vmem [shape: f32[2,1,32], index: 16, kind: input, shape index: {}]
  %s17 = inlined_call_operand.vmem [shape: bf16[32,32], index: 17, kind: input, shape index: {}]
  %s18 = inlined_call_operand.vmem [shape: f32[1,32], index: 18, kind: input, shape index: {}]
  %s19 = inlined_call_operand.vmem [shape: bf16[32,2], index: 19, kind: input, shape index: {}]
  %s20 = inlined_call_operand.vmem [shape: f32[1,2], index: 20, kind: input, shape index: {}]
  %s21 = inlined_call_operand.vmem [shape: f32[8,32], index: 21, kind: output, shape index: {0}]
  %s22 = inlined_call_operand.vmem [shape: f32[2,2], index: 22, kind: output, shape index: {1}]
  %23 = xla_tuple %s21, %s22
  %s24 = sld [smem:[#allocation0]]
  $region106: #{bert_further_forward.2} parent=0
    _
  %s26 = ssub.s32 1, %s24
  %s27 = scalar_select 0, %s26, %s24
  $region1: #{bert_further_forward.2} parent=0
    #allocation2 [shape = 'u8[1024]{0}', space=smem, size = 0x400, scoped, tag = 'input window, operand 0, single buffered']
    #allocation3 [shape = 's32[1]{0}', space=sflag, size = 0x4, scoped, tag = 'scoped memory for bert_further_forward.2']
    %28 = vsyncpa [#allocation3], 0
    // Predicated region
    $region2: #{bert_further_forward.2} parent=1 // pred_check
      _
    $region3: #{bert_further_forward.2} parent=1 // pred_check_branch
      %30 = sbr.rel (0) target = $region5
    $region4: #{bert_further_forward.2} parent=1 // pred_region
      %s32 = ssub.s32 32, 32
      %33 = vsyncadd [#allocation3], %s32
      %s35 = sshll.u32 %s0, 4
      %s36 = int_to_ptr.vmem [resolvable:$true] %s35
      %38 = dma.vmem_to_smem %s36, 32, [#allocation2], [#allocation3]
    $region5: #{bert_further_forward.2} parent=1 // pred_fallthru
      _
    // Predicated region
    $region6: #{bert_further_forward.2} parent=1 // pred_check
      _
    $region7: #{bert_further_forward.2} parent=1 // pred_check_branch
      %40 = sbr.rel (0) target = $region9
    $region8: #{bert_further_forward.2} parent=1 // pred_region
      _
    $region9: #{bert_further_forward.2} parent=1 // pred_fallthru
      _
    // Predicated region
    $region10: #{bert_further_forward.2} parent=1 // pred_check
      _
    $region11: #{bert_further_forward.2} parent=1 // pred_check_branch
      %42 = sbr.rel (0) target = $region13
    $region12: #{bert_further_forward.2} parent=1 // pred_region
      _
    $region13: #{bert_further_forward.2} parent=1 // pred_fallthru
      _
    // Predicated region
    $region14: #{bert_further_forward.2} parent=1 // pred_check
      _
    $region15: #{bert_further_forward.2} parent=1 // pred_check_branch
      %44 = sbr.rel (0) target = $region17
    $region16: #{bert_further_forward.2} parent=1 // pred_region
      _
    $region17: #{bert_further_forward.2} parent=1 // pred_fallthru
      _
    // Predicated region
    $region18: #{bert_further_forward.2} parent=1 // pred_check
      _
    $region19: #{bert_further_forward.2} parent=1 // pred_check_branch
      %46 = sbr.rel (0) target = $region21
    $region20: #{bert_further_forward.2} parent=1 // pred_region
      _
    $region21: #{bert_further_forward.2} parent=1 // pred_fallthru
      _
    // Predicated region
    $region22: #{bert_further_forward.2} parent=1 // pred_check
      _
    $region23: #{bert_further_forward.2} parent=1 // pred_check_branch
      %48 = sbr.rel (0) target = $region25
    $region24: #{bert_further_forward.2} parent=1 // pred_region
      _
    $region25: #{bert_further_forward.2} parent=1 // pred_fallthru
      _
    // Predicated region
    $region26: #{bert_further_forward.2} parent=1 // pred_check
      _
    $region27: #{bert_further_forward.2} parent=1 // pred_check_branch
      %50 = sbr.rel (0) target = $region29
    $region28: #{bert_further_forward.2} parent=1 // pred_region
      _
    $region29: #{bert_further_forward.2} parent=1 // pred_fallthru
      _
    // Predicated region
    $region30: #{bert_further_forward.2} parent=1 // pred_check
      _
    $region31: #{bert_further_forward.2} parent=1 // pred_check_branch
      %52 = sbr.rel (0) target = $region33
    $region32: #{bert_further_forward.2} parent=1 // pred_region
      _
    $region33: #{bert_further_forward.2} parent=1 // pred_fallthru
      _
    // Predicated region
    $region34: #{bert_further_forward.2} parent=1 // pred_check
      _
    $region35: #{bert_further_forward.2} parent=1 // pred_check_branch
      %54 = sbr.rel (0) target = $region37
    $region36: #{bert_further_forward.2} parent=1 // pred_region
      _
    $region37: #{bert_further_forward.2} parent=1 // pred_fallthru
      _
    // Predicated region
    $region38: #{bert_further_forward.2} parent=1 // pred_check
      _
    $region39: #{bert_further_forward.2} parent=1 // pred_check_branch
      %56 = sbr.rel (0) target = $region41
    $region40: #{bert_further_forward.2} parent=1 // pred_region
      _
    $region41: #{bert_further_forward.2} parent=1 // pred_fallthru
      _
    // Predicated region
    $region42: #{bert_further_forward.2} parent=1 // pred_check
      _
    $region43: #{bert_further_forward.2} parent=1 // pred_check_branch
      %58 = sbr.rel (0) target = $region45
    $region44: #{bert_further_forward.2} parent=1 // pred_region
      _
    $region45: #{bert_further_forward.2} parent=1 // pred_fallthru
      _
    // Predicated region
    $region46: #{bert_further_forward.2} parent=1 // pred_check
      _
    $region47: #{bert_further_forward.2} parent=1 // pred_check_branch
      %60 = sbr.rel (0) target = $region49
    $region48: #{bert_further_forward.2} parent=1 // pred_region
      _
    $region49: #{bert_further_forward.2} parent=1 // pred_fallthru
      _
    // Predicated region
    $region50: #{bert_further_forward.2} parent=1 // pred_check
      _
    $region51: #{bert_further_forward.2} parent=1 // pred_check_branch
      %62 = sbr.rel (0) target = $region53
    $region52: #{bert_further_forward.2} parent=1 // pred_region
      _
    $region53: #{bert_further_forward.2} parent=1 // pred_fallthru
      _
    // Predicated region
    $region54: #{bert_further_forward.2} parent=1 // pred_check
      _
    $region55: #{bert_further_forward.2} parent=1 // pred_check_branch
      %64 = sbr.rel (0) target = $region57
    $region56: #{bert_further_forward.2} parent=1 // pred_region
      _
    $region57: #{bert_further_forward.2} parent=1 // pred_fallthru
      _
    // Predicated region
    $region58: #{bert_further_forward.2} parent=1 // pred_check
      _
    $region59: #{bert_further_forward.2} parent=1 // pred_check_branch
      %66 = sbr.rel (0) target = $region61
    $region60: #{bert_further_forward.2} parent=1 // pred_region
      _
    $region61: #{bert_further_forward.2} parent=1 // pred_fallthru
      _
    // Predicated region
    $region62: #{bert_further_forward.2} parent=1 // pred_check
      _
    $region63: #{bert_further_forward.2} parent=1 // pred_check_branch
      %68 = sbr.rel (0) target = $region65
    $region64: #{bert_further_forward.2} parent=1 // pred_region
      _
    $region65: #{bert_further_forward.2} parent=1 // pred_fallthru
      _
    // Predicated region
    $region66: #{bert_further_forward.2} parent=1 // pred_check
      _
    $region67: #{bert_further_forward.2} parent=1 // pred_check_branch
      %70 = sbr.rel (0) target = $region69
    $region68: #{bert_further_forward.2} parent=1 // pred_region
      _
    $region69: #{bert_further_forward.2} parent=1 // pred_fallthru
      _
    // Predicated region
    $region70: #{bert_further_forward.2} parent=1 // pred_check
      _
    $region71: #{bert_further_forward.2} parent=1 // pred_check_branch
      %72 = sbr.rel (0) target = $region73
    $region72: #{bert_further_forward.2} parent=1 // pred_region
      _
    $region73: #{bert_further_forward.2} parent=1 // pred_fallthru
      _
    // Predicated region
    $region74: #{bert_further_forward.2} parent=1 // pred_check
      _
    $region75: #{bert_further_forward.2} parent=1 // pred_check_branch
      %74 = sbr.rel (0) target = $region77
    $region76: #{bert_further_forward.2} parent=1 // pred_region
      _
    $region77: #{bert_further_forward.2} parent=1 // pred_fallthru
      _
    // Predicated region
    $region78: #{bert_further_forward.2} parent=1 // pred_check
      _
    $region79: #{bert_further_forward.2} parent=1 // pred_check_branch
      %76 = sbr.rel (0) target = $region81
    $region80: #{bert_further_forward.2} parent=1 // pred_region
      _
    $region81: #{bert_further_forward.2} parent=1 // pred_fallthru
      _
    // Predicated region
    $region82: #{bert_further_forward.2} parent=1 // pred_check
      _
    $region83: #{bert_further_forward.2} parent=1 // pred_check_branch
      %78 = sbr.rel (0) target = $region85
    $region84: #{bert_further_forward.2} parent=1 // pred_region
      _
    $region85: #{bert_further_forward.2} parent=1 // pred_fallthru
      _
    // Predicated region
    $region86: #{bert_further_forward.2} parent=1 // pred_check
      _
    $region87: #{bert_further_forward.2} parent=1 // pred_check_branch
      %80 = sbr.rel (0) target = $region89
    $region88: #{bert_further_forward.2} parent=1 // pred_region
      %81 = dma.done [#allocation3], 32
    $region89: #{bert_further_forward.2} parent=1 // pred_fallthru
      _
    %82 = sfence
    %v84 = vld [vmem:[%s1] sm:$0xff]
    %v85 = vld [vmem:[%s1 + $0x8] sm:$0xff]
    %v86 = vld [vmem:[%s1 + $0x10] sm:$0xff]
    %v87 = vld [vmem:[%s1 + $0x18] sm:$0xff]
    %v88 = vld [vmem:[%s3] sm:$0x1]
    %v89 = vld [vmem:[%s4] sm:$0x1]
    %vm90 = vcmask 261120
    %v91 = vsel %vm90, %v84, 0.0
    %92 = vadd.xlane.f32.xlu0 %v91
    %v93 = vpop.xlane.xlu0 %92
    %v94 = vsel %vm90, %v85, 0.0
    %95 = vadd.xlane.f32.xlu0 %v94
    %v96 = vpop.xlane.xlu0 %95
    %v97 = vsel %vm90, %v86, 0.0
    %98 = vadd.xlane.f32.xlu0 %v97
    %v99 = vpop.xlane.xlu0 %98
    %v100 = vsel %vm90, %v87, 0.0
    %101 = vadd.xlane.f32.xlu0 %v100
    %v102 = vpop.xlane.xlu0 %101
    %v103 = vrcp.pop 32.0
    %v104 = vmul.f32 %v93, %v103
    %v105 = vmul.f32 %v96, %v103
    %v106 = vmul.f32 %v99, %v103
    %v107 = vmul.f32 %v102, %v103
    %v108 = vsub.f32 %v84, %v104
    %v109 = vsub.f32 %v85, %v105
    %v110 = vsub.f32 %v86, %v106
    %v111 = vsub.f32 %v87, %v107
    %v112 = vmul.f32 %v108, %v108
    %v113 = vmul.f32 %v109, %v109
    %v114 = vmul.f32 %v110, %v110
    %v115 = vmul.f32 %v111, %v111
    %v116 = vsel %vm90, %v112, 0.0
    %117 = vadd.xlane.f32.xlu0 %v116
    %v118 = vpop.xlane.xlu0 %117
    %v119 = vsel %vm90, %v113, 0.0
    %120 = vadd.xlane.f32.xlu0 %v119
    %v121 = vpop.xlane.xlu0 %120
    %v122 = vsel %vm90, %v114, 0.0
    %123 = vadd.xlane.f32.xlu0 %v122
    %v124 = vpop.xlane.xlu0 %123
    %v125 = vsel %vm90, %v115, 0.0
    %126 = vadd.xlane.f32.xlu0 %v125
    %v127 = vpop.xlane.xlu0 %126
    %v128 = vmul.f32 %v118, %v103
    %v129 = vmul.f32 %v121, %v103
    %v130 = vmul.f32 %v124, %v103
    %v131 = vmul.f32 %v127, %v103
    %v132 = vadd.f32 %v128, 1e-12
    %v133 = vadd.f32 %v129, 1e-12
    %v134 = vadd.f32 %v130, 1e-12
    %v135 = vadd.f32 %v131, 1e-12
    %v136 = vrsqrt.pop %v132
    %v137 = vrsqrt.pop %v133
    %v138 = vrsqrt.pop %v134
    %v139 = vrsqrt.pop %v135
    %v140 = vmul.f32 %v108, %v136
    %v141 = vmul.f32 %v109, %v137
    %v142 = vmul.f32 %v110, %v138
    %v143 = vmul.f32 %v111, %v139
    %v145 = vlaneseq
    %v146 = vshrl.u32 %v145, 7
    %v147 = vsub.s32 0, %v146
    %v148 = vrot.slane %v88, %v147
    %v150 = vmul.f32 %v140, %v148
    %v151 = vmul.f32 %v141, %v148
    %v152 = vmul.f32 %v142, %v148
    %v153 = vmul.f32 %v143, %v148
    %v155 = vlaneseq
    %v156 = vshrl.u32 %v155, 7
    %v157 = vsub.s32 0, %v156
    %v158 = vrot.slane %v89, %v157
    %v160 = vadd.f32 %v150, %v158
    %v161 = vadd.f32 %v151, %v158
    %v162 = vadd.f32 %v152, %v158
    %v163 = vadd.f32 %v153, %v158
    %v164 = vld [vmem:[%s5] sm:$0xf]
    %v165 = vld [vmem:[%s5 + $0x4] sm:$0xf]
    %v166 = vld [vmem:[%s5 + $0x8] sm:$0xf]
    %v167 = vld [vmem:[%s5 + $0xc] sm:$0xf]
    %v168 = vpack.c.bf16 %v161, %v160
    %v169 = vpack.c.bf16 %v163, %v162
    %v170 = vld [vmem:[%s6] sm:$0x1]
    %v172 = vlaneseq
    %v173 = vshrl.u32 %v172, 7
    %v174 = vsub.s32 0, %v173
    %v175 = vrot.slane %v170, %v174
    %v181 = vunpack.c.l.b16 %v164
    %v182 = vunpack.c.l.b16 %v165
    %v183 = vunpack.c.l.b16 %v166
    %v184 = vunpack.c.l.b16 %v167
    %v185 = vpack.c.b16 %v182, %v181
    %v186 = vpack.c.b16 %v184, %v183
    %v190 = vsel %vm90, %v168, 0
    %v193 = vsel %vm90, %v169, 0
    %195 = vmatprep.subr.bf16.mxu0 0
    %196 = vmatpush1.bf16.msra.mxu0 %v185
    %197 = vmatprep.subr.bf16.mxu0 0
    %198 = vmatpush1.bf16.msra.mxu0 %v186
    %199 = vmatprep.subr.bf16.mxu0 0
    %200 = vmatpush1.bf16.msra.mxu0 0
    %201 = vmatprep.subr.bf16.mxu0 0
    %202 = vmatpush1.bf16.msra.mxu0 0
    %203 = vmatprep.subr.bf16.mxu0 0
    %204 = vmatpush1.bf16.msra.mxu0 0
    %205 = vmatprep.subr.bf16.mxu0 0
    %206 = vmatpush1.bf16.msra.mxu0 0
    %207 = vmatprep.subr.bf16.mxu0 0
    %208 = vmatpush1.bf16.msra.mxu0 0
    %209 = vmatprep.subr.bf16.mxu0 0
    %210 = vmatpush1.bf16.msra.mxu0 0
    %211 = vmatprep.subr.bf16.mxu0 0
    %212 = vmatpush1.bf16.msra.mxu0 0
    %213 = vmatprep.subr.bf16.mxu0 0
    %214 = vmatpush1.bf16.msra.mxu0 0
    %215 = vmatprep.subr.bf16.mxu0 0
    %216 = vmatpush1.bf16.msra.mxu0 0
    %217 = vmatprep.subr.bf16.mxu0 0
    %218 = vmatpush1.bf16.msra.mxu0 0
    %219 = vmatprep.subr.bf16.mxu0 0
    %220 = vmatpush1.bf16.msra.mxu0 0
    %221 = vmatprep.subr.bf16.mxu0 0
    %222 = vmatpush1.bf16.msra.mxu0 0
    %223 = vmatprep.subr.bf16.mxu0 0
    %224 = vmatpush1.bf16.msra.mxu0 0
    %225 = vmatprep.subr.bf16.mxu0 0
    %226 = vmatpush1.bf16.msra.mxu0 0
    %227 = vmatprep.mubr.bf16.mxu0 0
    %228 = vmatmul.mubr.bf16.gmra.mrb[0].mxu0 %v190
    %v229 = vpop.f32.mrb[0].mxu0
    %v230 = vadd.f32 %v175, %v229
    %v231 = vpop.f32.mrb[0].mxu0
    %v232 = vpop.f32.mrb[0].mxu0
    %v233 = vadd.f32 %v175, %v232
    %v234 = vpop.f32.mrb[0].mxu0
    %235 = vmatprep.mubr.bf16.mxu0 0
    %236 = vmatmul.mubr.bf16.gmra.mrb[0].mxu0 %v193
    %v237 = vpop.f32.mrb[0].mxu0
    %v238 = vadd.f32 %v175, %v237
    %v239 = vpop.f32.mrb[0].mxu0
    %v240 = vpop.f32.mrb[0].mxu0
    %v241 = vadd.f32 %v175, %v240
    %v242 = vpop.f32.mrb[0].mxu0
    %243 = vdwg.mxu0
    %v244 = vld [vmem:[%s2] sm:$0x1]
    %v245 = vpack.c.bf16 %v233, %v230
    %247 = vrot.lane.b32.xlu0 %v245, 96
    %v248 = vpop.permute.xlu0 %247
    %vm249 = vcmask 64512
    %v251 = vsel %vm249, %v245, 0
    %v254 = vsel %vm249, %v248, 0
    %256 = vmatprep.subr.bf16.mxu0 0
    %257 = vmatpush1.bf16.xpose.msra.mxu0 %v254
    %258 = vmatprep.subr.bf16.mxu0 0
    %259 = vmatpush1.bf16.xpose.msra.mxu0 0
    %260 = vmatprep.subr.bf16.mxu0 0
    %261 = vmatpush1.bf16.xpose.msra.mxu0 0
    %262 = vmatprep.subr.bf16.mxu0 0
    %263 = vmatpush1.bf16.xpose.msra.mxu0 0
    %264 = vmatprep.subr.bf16.mxu0 0
    %265 = vmatpush1.bf16.xpose.msra.mxu0 0
    %266 = vmatprep.subr.bf16.mxu0 0
    %267 = vmatpush1.bf16.xpose.msra.mxu0 0
    %268 = vmatprep.subr.bf16.mxu0 0
    %269 = vmatpush1.bf16.xpose.msra.mxu0 0
    %270 = vmatprep.subr.bf16.mxu0 0
    %271 = vmatpush1.bf16.xpose.msra.mxu0 0
    %272 = vmatprep.subr.bf16.mxu0 0
    %273 = vmatpush1.bf16.xpose.msra.mxu0 0
    %274 = vmatprep.subr.bf16.mxu0 0
    %275 = vmatpush1.bf16.xpose.msra.mxu0 0
    %276 = vmatprep.subr.bf16.mxu0 0
    %277 = vmatpush1.bf16.xpose.msra.mxu0 0
    %278 = vmatprep.subr.bf16.mxu0 0
    %279 = vmatpush1.bf16.xpose.msra.mxu0 0
    %280 = vmatprep.subr.bf16.mxu0 0
    %281 = vmatpush1.bf16.xpose.msra.mxu0 0
    %282 = vmatprep.subr.bf16.mxu0 0
    %283 = vmatpush1.bf16.xpose.msra.mxu0 0
    %284 = vmatprep.subr.bf16.mxu0 0
    %285 = vmatpush1.bf16.xpose.msra.mxu0 0
    %286 = vmatprep.subr.bf16.mxu0 0
    %287 = vmatpush1.bf16.xpose.msra.mxu0 0
    %288 = vmatprep.mubr.bf16.mxu0 0
    %289 = vmatmul.mubr.bf16.gmra.mrb[0].mxu0 %v251
    %v290 = vpop.f32.mrb[0].mxu0
    %v291 = vadd.f32 0.0, %v290
    %v292 = vpop.f32.mrb[0].mxu0
    %v293 = vpop.f32.mrb[0].mxu0
    %v294 = vadd.f32 0.0, %v293
    %v295 = vpop.f32.mrb[0].mxu0
    %296 = vdwg.mxu0
    %v297 = vmul.f32 %v291, 0.35355338
    %v298 = vmul.f32 %v294, 0.35355338
    %v300 = vlaneseq
    %v301 = vshrl.u32 %v300, 7
    %v302 = vsub.s32 0, %v301
    %v303 = vrot.slane %v244, %v302
    %v305 = vadd.f32 %v297, %v303
    %v306 = vadd.f32 %v298, %v303
    %vm307 = vcmask 130048
    %v308 = vsel %vm307, %v305, -inf
    %309 = vmax.xlane.f32.xlu0 %v308
    %v310 = vpop.xlane.xlu0 %309
    %v311 = vsel %vm307, %v306, -inf
    %312 = vmax.xlane.f32.xlu0 %v311
    %v313 = vpop.xlane.xlu0 %312
    %v314 = vsub.f32 %v305, %v310
    %v315 = vsub.f32 %v306, %v313
    %v316 = vmul.f32 %v314, 1.442695
    %v317 = vpow.pop %v316
    %v318 = vmul.f32 %v315, 1.442695
    %v319 = vpow.pop %v318
    %v320 = vsel %vm307, %v317, 0.0
    %321 = vadd.xlane.f32.xlu0 %v320
    %v322 = vpop.xlane.xlu0 %321
    %v323 = vsel %vm307, %v319, 0.0
    %324 = vadd.xlane.f32.xlu0 %v323
    %v325 = vpop.xlane.xlu0 %324
    %v326 = vrcp.pop %v322
    %v327 = vmul.f32 %v317, %v326
    %v328 = vrcp.pop %v325
    %v329 = vmul.f32 %v319, %v328
    %v330 = vpack.c.bf16 %v329, %v327
    %331 = vrot.lane.b32.xlu0 %v245, 64
    %v332 = vpop.permute.xlu0 %331
    %v335 = vsel %vm307, %v330, 0
    %337 = vmatprep.subr.bf16.mxu0 0
    %338 = vmatpush1.bf16.msra.mxu0 %v332
    %339 = vmatprep.subr.bf16.mxu0 0
    %340 = vmatpush1.bf16.msra.mxu0 0
    %341 = vmatprep.subr.bf16.mxu0 0
    %342 = vmatpush1.bf16.msra.mxu0 0
    %343 = vmatprep.subr.bf16.mxu0 0
    %344 = vmatpush1.bf16.msra.mxu0 0
    %345 = vmatprep.subr.bf16.mxu0 0
    %346 = vmatpush1.bf16.msra.mxu0 0
    %347 = vmatprep.subr.bf16.mxu0 0
    %348 = vmatpush1.bf16.msra.mxu0 0
    %349 = vmatprep.subr.bf16.mxu0 0
    %350 = vmatpush1.bf16.msra.mxu0 0
    %351 = vmatprep.subr.bf16.mxu0 0
    %352 = vmatpush1.bf16.msra.mxu0 0
    %353 = vmatprep.subr.bf16.mxu0 0
    %354 = vmatpush1.bf16.msra.mxu0 0
    %355 = vmatprep.subr.bf16.mxu0 0
    %356 = vmatpush1.bf16.msra.mxu0 0
    %357 = vmatprep.subr.bf16.mxu0 0
    %358 = vmatpush1.bf16.msra.mxu0 0
    %359 = vmatprep.subr.bf16.mxu0 0
    %360 = vmatpush1.bf16.msra.mxu0 0
    %361 = vmatprep.subr.bf16.mxu0 0
    %362 = vmatpush1.bf16.msra.mxu0 0
    %363 = vmatprep.subr.bf16.mxu0 0
    %364 = vmatpush1.bf16.msra.mxu0 0
    %365 = vmatprep.subr.bf16.mxu0 0
    %366 = vmatpush1.bf16.msra.mxu0 0
    %367 = vmatprep.subr.bf16.mxu0 0
    %368 = vmatpush1.bf16.msra.mxu0 0
    %369 = vmatprep.mubr.bf16.mxu0 0
    %370 = vmatmul.mubr.bf16.gmra.mrb[0].mxu0 %v335
    %v371 = vpop.f32.mrb[0].mxu0
    %v372 = vadd.f32 0.0, %v371
    %v373 = vpop.f32.mrb[0].mxu0
    %v374 = vpop.f32.mrb[0].mxu0
    %v375 = vadd.f32 0.0, %v374
    %v376 = vpop.f32.mrb[0].mxu0
    %377 = vdwg.mxu0
    %378 = vrot.lane.b32.xlu0 %v245, 120
    %v379 = vpop.permute.xlu0 %378
    %380 = vrot.lane.b32.xlu0 %v245, 88
    %v381 = vpop.permute.xlu0 %380
    %v383 = vsel %vm249, %v379, 0
    %v386 = vsel %vm249, %v381, 0
    %388 = vmatprep.subr.bf16.mxu0 0
    %389 = vmatpush1.bf16.xpose.msra.mxu0 %v386
    %390 = vmatprep.subr.bf16.mxu0 0
    %391 = vmatpush1.bf16.xpose.msra.mxu0 0
    %392 = vmatprep.subr.bf16.mxu0 0
    %393 = vmatpush1.bf16.xpose.msra.mxu0 0
    %394 = vmatprep.subr.bf16.mxu0 0
    %395 = vmatpush1.bf16.xpose.msra.mxu0 0
    %396 = vmatprep.subr.bf16.mxu0 0
    %397 = vmatpush1.bf16.xpose.msra.mxu0 0
    %398 = vmatprep.subr.bf16.mxu0 0
    %399 = vmatpush1.bf16.xpose.msra.mxu0 0
    %400 = vmatprep.subr.bf16.mxu0 0
    %401 = vmatpush1.bf16.xpose.msra.mxu0 0
    %402 = vmatprep.subr.bf16.mxu0 0
    %403 = vmatpush1.bf16.xpose.msra.mxu0 0
    %404 = vmatprep.subr.bf16.mxu0 0
    %405 = vmatpush1.bf16.xpose.msra.mxu0 0
    %406 = vmatprep.subr.bf16.mxu0 0
    %407 = vmatpush1.bf16.xpose.msra.mxu0 0
    %408 = vmatprep.subr.bf16.mxu0 0
    %409 = vmatpush1.bf16.xpose.msra.mxu0 0
    %410 = vmatprep.subr.bf16.mxu0 0
    %411 = vmatpush1.bf16.xpose.msra.mxu0 0
    %412 = vmatprep.subr.bf16.mxu0 0
    %413 = vmatpush1.bf16.xpose.msra.mxu0 0
    %414 = vmatprep.subr.bf16.mxu0 0
    %415 = vmatpush1.bf16.xpose.msra.mxu0 0
    %416 = vmatprep.subr.bf16.mxu0 0
    %417 = vmatpush1.bf16.xpose.msra.mxu0 0
    %418 = vmatprep.subr.bf16.mxu0 0
    %419 = vmatpush1.bf16.xpose.msra.mxu0 0
    %420 = vmatprep.mubr.bf16.mxu0 0
    %421 = vmatmul.mubr.bf16.gmra.mrb[0].mxu0 %v383
    %v422 = vpop.f32.mrb[0].mxu0
    %v423 = vadd.f32 0.0, %v422
    %v424 = vpop.f32.mrb[0].mxu0
    %v425 = vpop.f32.mrb[0].mxu0
    %v426 = vadd.f32 0.0, %v425
    %v427 = vpop.f32.mrb[0].mxu0
    %428 = vdwg.mxu0
    %v429 = vmul.f32 %v423, 0.35355338
    %v430 = vmul.f32 %v426, 0.35355338
    %v431 = vadd.f32 %v429, %v303
    %v432 = vadd.f32 %v430, %v303
    %v433 = vsel %vm307, %v431, -inf
    %434 = vmax.xlane.f32.xlu0 %v433
    %v435 = vpop.xlane.xlu0 %434
    %v436 = vsel %vm307, %v432, -inf
    %437 = vmax.xlane.f32.xlu0 %v436
    %v438 = vpop.xlane.xlu0 %437
    %v439 = vsub.f32 %v431, %v435
    %v440 = vsub.f32 %v432, %v438
    %v441 = vmul.f32 %v439, 1.442695
    %v442 = vpow.pop %v441
    %v443 = vmul.f32 %v440, 1.442695
    %v444 = vpow.pop %v443
    %v445 = vsel %vm307, %v442, 0.0
    %446 = vadd.xlane.f32.xlu0 %v445
    %v447 = vpop.xlane.xlu0 %446
    %v448 = vsel %vm307, %v444, 0.0
    %449 = vadd.xlane.f32.xlu0 %v448
    %v450 = vpop.xlane.xlu0 %449
    %v451 = vrcp.pop %v447
    %v452 = vmul.f32 %v442, %v451
    %v453 = vrcp.pop %v450
    %v454 = vmul.f32 %v444, %v453
    %v455 = vpack.c.bf16 %v454, %v452
    %456 = vrot.lane.b32.xlu0 %v245, 56
    %v457 = vpop.permute.xlu0 %456
    %v460 = vsel %vm307, %v455, 0
    %462 = vmatprep.subr.bf16.mxu0 0
    %463 = vmatpush1.bf16.msra.mxu0 %v457
    %464 = vmatprep.subr.bf16.mxu0 0
    %465 = vmatpush1.bf16.msra.mxu0 0
    %466 = vmatprep.subr.bf16.mxu0 0
    %467 = vmatpush1.bf16.msra.mxu0 0
    %468 = vmatprep.subr.bf16.mxu0 0
    %469 = vmatpush1.bf16.msra.mxu0 0
    %470 = vmatprep.subr.bf16.mxu0 0
    %471 = vmatpush1.bf16.msra.mxu0 0
    %472 = vmatprep.subr.bf16.mxu0 0
    %473 = vmatpush1.bf16.msra.mxu0 0
    %474 = vmatprep.subr.bf16.mxu0 0
    %475 = vmatpush1.bf16.msra.mxu0 0
    %476 = vmatprep.subr.bf16.mxu0 0
    %477 = vmatpush1.bf16.msra.mxu0 0
    %478 = vmatprep.subr.bf16.mxu0 0
    %479 = vmatpush1.bf16.msra.mxu0 0
    %480 = vmatprep.subr.bf16.mxu0 0
    %481 = vmatpush1.bf16.msra.mxu0 0
    %482 = vmatprep.subr.bf16.mxu0 0
    %483 = vmatpush1.bf16.msra.mxu0 0
    %484 = vmatprep.subr.bf16.mxu0 0
    %485 = vmatpush1.bf16.msra.mxu0 0
    %486 = vmatprep.subr.bf16.mxu0 0
    %487 = vmatpush1.bf16.msra.mxu0 0
    %488 = vmatprep.subr.bf16.mxu0 0
    %489 = vmatpush1.bf16.msra.mxu0 0
    %490 = vmatprep.subr.bf16.mxu0 0
    %491 = vmatpush1.bf16.msra.mxu0 0
    %492 = vmatprep.subr.bf16.mxu0 0
    %493 = vmatpush1.bf16.msra.mxu0 0
    %494 = vmatprep.mubr.bf16.mxu0 0
    %495 = vmatmul.mubr.bf16.gmra.mrb[0].mxu0 %v460
    %v496 = vpop.f32.mrb[0].mxu0
    %v497 = vadd.f32 0.0, %v496
    %v498 = vpop.f32.mrb[0].mxu0
    %v499 = vpop.f32.mrb[0].mxu0
    %v500 = vadd.f32 0.0, %v499
    %v501 = vpop.f32.mrb[0].mxu0
    %502 = vdwg.mxu0
    %503 = vrot.lane.b32.xlu0 %v245, 112
    %v504 = vpop.permute.xlu0 %503
    %505 = vrot.lane.b32.xlu0 %v245, 80
    %v506 = vpop.permute.xlu0 %505
    %v508 = vsel %vm249, %v504, 0
    %v511 = vsel %vm249, %v506, 0
    %513 = vmatprep.subr.bf16.mxu0 0
    %514 = vmatpush1.bf16.xpose.msra.mxu0 %v511
    %515 = vmatprep.subr.bf16.mxu0 0
    %516 = vmatpush1.bf16.xpose.msra.mxu0 0
    %517 = vmatprep.subr.bf16.mxu0 0
    %518 = vmatpush1.bf16.xpose.msra.mxu0 0
    %519 = vmatprep.subr.bf16.mxu0 0
    %520 = vmatpush1.bf16.xpose.msra.mxu0 0
    %521 = vmatprep.subr.bf16.mxu0 0
    %522 = vmatpush1.bf16.xpose.msra.mxu0 0
    %523 = vmatprep.subr.bf16.mxu0 0
    %524 = vmatpush1.bf16.xpose.msra.mxu0 0
    %525 = vmatprep.subr.bf16.mxu0 0
    %526 = vmatpush1.bf16.xpose.msra.mxu0 0
    %527 = vmatprep.subr.bf16.mxu0 0
    %528 = vmatpush1.bf16.xpose.msra.mxu0 0
    %529 = vmatprep.subr.bf16.mxu0 0
    %530 = vmatpush1.bf16.xpose.msra.mxu0 0
    %531 = vmatprep.subr.bf16.mxu0 0
    %532 = vmatpush1.bf16.xpose.msra.mxu0 0
    %533 = vmatprep.subr.bf16.mxu0 0
    %534 = vmatpush1.bf16.xpose.msra.mxu0 0
    %535 = vmatprep.subr.bf16.mxu0 0
    %536 = vmatpush1.bf16.xpose.msra.mxu0 0
    %537 = vmatprep.subr.bf16.mxu0 0
    %538 = vmatpush1.bf16.xpose.msra.mxu0 0
    %539 = vmatprep.subr.bf16.mxu0 0
    %540 = vmatpush1.bf16.xpose.msra.mxu0 0
    %541 = vmatprep.subr.bf16.mxu0 0
    %542 = vmatpush1.bf16.xpose.msra.mxu0 0
    %543 = vmatprep.subr.bf16.mxu0 0
    %544 = vmatpush1.bf16.xpose.msra.mxu0 0
    %545 = vmatprep.mubr.bf16.mxu0 0
    %546 = vmatmul.mubr.bf16.gmra.mrb[0].mxu0 %v508
    %v547 = vpop.f32.mrb[0].mxu0
    %v548 = vadd.f32 0.0, %v547
    %v549 = vpop.f32.mrb[0].mxu0
    %v550 = vpop.f32.mrb[0].mxu0
    %v551 = vadd.f32 0.0, %v550
    %v552 = vpop.f32.mrb[0].mxu0
    %553 = vdwg.mxu0
    %v554 = vmul.f32 %v548, 0.35355338
    %v555 = vmul.f32 %v551, 0.35355338
    %v556 = vadd.f32 %v554, %v303
    %v557 = vadd.f32 %v555, %v303
    %v558 = vsel %vm307, %v556, -inf
    %559 = vmax.xlane.f32.xlu0 %v558
    %v560 = vpop.xlane.xlu0 %559
    %v561 = vsel %vm307, %v557, -inf
    %562 = vmax.xlane.f32.xlu0 %v561
    %v563 = vpop.xlane.xlu0 %562
    %v564 = vsub.f32 %v556, %v560
    %v565 = vsub.f32 %v557, %v563
    %v566 = vmul.f32 %v564, 1.442695
    %v567 = vpow.pop %v566
    %v568 = vmul.f32 %v565, 1.442695
    %v569 = vpow.pop %v568
    %v570 = vsel %vm307, %v567, 0.0
    %571 = vadd.xlane.f32.xlu0 %v570
    %v572 = vpop.xlane.xlu0 %571
    %v573 = vsel %vm307, %v569, 0.0
    %574 = vadd.xlane.f32.xlu0 %v573
    %v575 = vpop.xlane.xlu0 %574
    %v576 = vrcp.pop %v572
    %v577 = vmul.f32 %v567, %v576
    %v578 = vrcp.pop %v575
    %v579 = vmul.f32 %v569, %v578
    %v580 = vpack.c.bf16 %v579, %v577
    %581 = vrot.lane.b32.xlu0 %v245, 48
    %v582 = vpop.permute.xlu0 %581
    %v585 = vsel %vm307, %v580, 0
    %587 = vmatprep.subr.bf16.mxu0 0
    %588 = vmatpush1.bf16.msra.mxu0 %v582
    %589 = vmatprep.subr.bf16.mxu0 0
    %590 = vmatpush1.bf16.msra.mxu0 0
    %591 = vmatprep.subr.bf16.mxu0 0
    %592 = vmatpush1.bf16.msra.mxu0 0
    %593 = vmatprep.subr.bf16.mxu0 0
    %594 = vmatpush1.bf16.msra.mxu0 0
    %595 = vmatprep.subr.bf16.mxu0 0
    %596 = vmatpush1.bf16.msra.mxu0 0
    %597 = vmatprep.subr.bf16.mxu0 0
    %598 = vmatpush1.bf16.msra.mxu0 0
    %599 = vmatprep.subr.bf16.mxu0 0
    %600 = vmatpush1.bf16.msra.mxu0 0
    %601 = vmatprep.subr.bf16.mxu0 0
    %602 = vmatpush1.bf16.msra.mxu0 0
    %603 = vmatprep.subr.bf16.mxu0 0
    %604 = vmatpush1.bf16.msra.mxu0 0
    %605 = vmatprep.subr.bf16.mxu0 0
    %606 = vmatpush1.bf16.msra.mxu0 0
    %607 = vmatprep.subr.bf16.mxu0 0
    %608 = vmatpush1.bf16.msra.mxu0 0
    %609 = vmatprep.subr.bf16.mxu0 0
    %610 = vmatpush1.bf16.msra.mxu0 0
    %611 = vmatprep.subr.bf16.mxu0 0
    %612 = vmatpush1.bf16.msra.mxu0 0
    %613 = vmatprep.subr.bf16.mxu0 0
    %614 = vmatpush1.bf16.msra.mxu0 0
    %615 = vmatprep.subr.bf16.mxu0 0
    %616 = vmatpush1.bf16.msra.mxu0 0
    %617 = vmatprep.subr.bf16.mxu0 0
    %618 = vmatpush1.bf16.msra.mxu0 0
    %619 = vmatprep.mubr.bf16.mxu0 0
    %620 = vmatmul.mubr.bf16.gmra.mrb[0].mxu0 %v585
    %v621 = vpop.f32.mrb[0].mxu0
    %v622 = vadd.f32 0.0, %v621
    %v623 = vpop.f32.mrb[0].mxu0
    %v624 = vpop.f32.mrb[0].mxu0
    %v625 = vadd.f32 0.0, %v624
    %v626 = vpop.f32.mrb[0].mxu0
    %627 = vdwg.mxu0
    %628 = vrot.lane.b32.xlu0 %v245, 104
    %v629 = vpop.permute.xlu0 %628
    %630 = vrot.lane.b32.xlu0 %v245, 72
    %v631 = vpop.permute.xlu0 %630
    %v633 = vsel %vm249, %v629, 0
    %v636 = vsel %vm249, %v631, 0
    %638 = vmatprep.subr.bf16.mxu0 0
    %639 = vmatpush1.bf16.xpose.msra.mxu0 %v636
    %640 = vmatprep.subr.bf16.mxu0 0
    %641 = vmatpush1.bf16.xpose.msra.mxu0 0
    %642 = vmatprep.subr.bf16.mxu0 0
    %643 = vmatpush1.bf16.xpose.msra.mxu0 0
    %644 = vmatprep.subr.bf16.mxu0 0
    %645 = vmatpush1.bf16.xpose.msra.mxu0 0
    %646 = vmatprep.subr.bf16.mxu0 0
    %647 = vmatpush1.bf16.xpose.msra.mxu0 0
    %648 = vmatprep.subr.bf16.mxu0 0
    %649 = vmatpush1.bf16.xpose.msra.mxu0 0
    %650 = vmatprep.subr.bf16.mxu0 0
    %651 = vmatpush1.bf16.xpose.msra.mxu0 0
    %652 = vmatprep.subr.bf16.mxu0 0
    %653 = vmatpush1.bf16.xpose.msra.mxu0 0
    %654 = vmatprep.subr.bf16.mxu0 0
    %655 = vmatpush1.bf16.xpose.msra.mxu0 0
    %656 = vmatprep.subr.bf16.mxu0 0
    %657 = vmatpush1.bf16.xpose.msra.mxu0 0
    %658 = vmatprep.subr.bf16.mxu0 0
    %659 = vmatpush1.bf16.xpose.msra.mxu0 0
    %660 = vmatprep.subr.bf16.mxu0 0
    %661 = vmatpush1.bf16.xpose.msra.mxu0 0
    %662 = vmatprep.subr.bf16.mxu0 0
    %663 = vmatpush1.bf16.xpose.msra.mxu0 0
    %664 = vmatprep.subr.bf16.mxu0 0
    %665 = vmatpush1.bf16.xpose.msra.mxu0 0
    %666 = vmatprep.subr.bf16.mxu0 0
    %667 = vmatpush1.bf16.xpose.msra.mxu0 0
    %668 = vmatprep.subr.bf16.mxu0 0
    %669 = vmatpush1.bf16.xpose.msra.mxu0 0
    %670 = vmatprep.mubr.bf16.mxu0 0
    %671 = vmatmul.mubr.bf16.gmra.mrb[0].mxu0 %v633
    %v672 = vpop.f32.mrb[0].mxu0
    %v673 = vadd.f32 0.0, %v672
    %v674 = vpop.f32.mrb[0].mxu0
    %v675 = vpop.f32.mrb[0].mxu0
    %v676 = vadd.f32 0.0, %v675
    %v677 = vpop.f32.mrb[0].mxu0
    %678 = vdwg.mxu0
    %v679 = vmul.f32 %v673, 0.35355338
    %v680 = vmul.f32 %v676, 0.35355338
    %v681 = vadd.f32 %v679, %v303
    %v682 = vadd.f32 %v680, %v303
    %v683 = vsel %vm307, %v681, -inf
    %684 = vmax.xlane.f32.xlu0 %v683
    %v685 = vpop.xlane.xlu0 %684
    %v686 = vsel %vm307, %v682, -inf
    %687 = vmax.xlane.f32.xlu0 %v686
    %v688 = vpop.xlane.xlu0 %687
    %v689 = vsub.f32 %v681, %v685
    %v690 = vsub.f32 %v682, %v688
    %v691 = vmul.f32 %v689, 1.442695
    %v692 = vpow.pop %v691
    %v693 = vmul.f32 %v690, 1.442695
    %v694 = vpow.pop %v693
    %v695 = vsel %vm307, %v692, 0.0
    %696 = vadd.xlane.f32.xlu0 %v695
    %v697 = vpop.xlane.xlu0 %696
    %v698 = vsel %vm307, %v694, 0.0
    %699 = vadd.xlane.f32.xlu0 %v698
    %v700 = vpop.xlane.xlu0 %699
    %v701 = vrcp.pop %v697
    %v702 = vmul.f32 %v692, %v701
    %v703 = vrcp.pop %v700
    %v704 = vmul.f32 %v694, %v703
    %v705 = vpack.c.bf16 %v704, %v702
    %706 = vrot.lane.b32.xlu0 %v245, 40
    %v707 = vpop.permute.xlu0 %706
    %v710 = vsel %vm307, %v705, 0
    %712 = vmatprep.subr.bf16.mxu0 0
    %713 = vmatpush1.bf16.msra.mxu0 %v707
    %714 = vmatprep.subr.bf16.mxu0 0
    %715 = vmatpush1.bf16.msra.mxu0 0
    %716 = vmatprep.subr.bf16.mxu0 0
    %717 = vmatpush1.bf16.msra.mxu0 0
    %718 = vmatprep.subr.bf16.mxu0 0
    %719 = vmatpush1.bf16.msra.mxu0 0
    %720 = vmatprep.subr.bf16.mxu0 0
    %721 = vmatpush1.bf16.msra.mxu0 0
    %722 = vmatprep.subr.bf16.mxu0 0
    %723 = vmatpush1.bf16.msra.mxu0 0
    %724 = vmatprep.subr.bf16.mxu0 0
    %725 = vmatpush1.bf16.msra.mxu0 0
    %726 = vmatprep.subr.bf16.mxu0 0
    %727 = vmatpush1.bf16.msra.mxu0 0
    %728 = vmatprep.subr.bf16.mxu0 0
    %729 = vmatpush1.bf16.msra.mxu0 0
    %730 = vmatprep.subr.bf16.mxu0 0
    %731 = vmatpush1.bf16.msra.mxu0 0
    %732 = vmatprep.subr.bf16.mxu0 0
    %733 = vmatpush1.bf16.msra.mxu0 0
    %734 = vmatprep.subr.bf16.mxu0 0
    %735 = vmatpush1.bf16.msra.mxu0 0
    %736 = vmatprep.subr.bf16.mxu0 0
    %737 = vmatpush1.bf16.msra.mxu0 0
    %738 = vmatprep.subr.bf16.mxu0 0
    %739 = vmatpush1.bf16.msra.mxu0 0
    %740 = vmatprep.subr.bf16.mxu0 0
    %741 = vmatpush1.bf16.msra.mxu0 0
    %742 = vmatprep.subr.bf16.mxu0 0
    %743 = vmatpush1.bf16.msra.mxu0 0
    %744 = vmatprep.mubr.bf16.mxu0 0
    %745 = vmatmul.mubr.bf16.gmra.mrb[0].mxu0 %v710
    %v746 = vpop.f32.mrb[0].mxu0
    %v747 = vadd.f32 0.0, %v746
    %v748 = vpop.f32.mrb[0].mxu0
    %v749 = vpop.f32.mrb[0].mxu0
    %v750 = vadd.f32 0.0, %v749
    %v751 = vpop.f32.mrb[0].mxu0
    %752 = vdwg.mxu0
    %755 = vrot.lane.b32.xlu0 %v497, 8
    %v756 = vpop.permute.xlu0 %755
    %757 = vrot.lane.b32.xlu0 %v500, 8
    %v758 = vpop.permute.xlu0 %757
    %763 = vrot.lane.b32.xlu0 %v622, 16
    %v764 = vpop.permute.xlu0 %763
    %765 = vrot.lane.b32.xlu0 %v625, 16
    %v766 = vpop.permute.xlu0 %765
    %771 = vrot.lane.b32.xlu0 %v747, 24
    %v772 = vpop.permute.xlu0 %771
    %773 = vrot.lane.b32.xlu0 %v750, 24
    %v774 = vpop.permute.xlu0 %773
    %v777 = vsel %vm249, %v372, %v756
    %v778 = vsel %vm249, %v375, %v758
    %v779 = vsel %vm307, %v777, %v764
    %v780 = vsel %vm307, %v778, %v766
    %vm781 = vcmask 195584
    %v782 = vsel %vm781, %v779, %v772
    %v783 = vsel %vm781, %v780, %v774
    %s784 = scalar_lea.vmem %s2, 1
    %v785 = vld [vmem:[%s784] sm:$0x1]
    %v786 = vpack.c.bf16 %v241, %v238
    %788 = vrot.lane.b32.xlu0 %v786, 96
    %v789 = vpop.permute.xlu0 %788
    %v791 = vsel %vm249, %v786, 0
    %v794 = vsel %vm249, %v789, 0
    %796 = vmatprep.subr.bf16.mxu0 0
    %797 = vmatpush1.bf16.xpose.msra.mxu0 %v794
    %798 = vmatprep.subr.bf16.mxu0 0
    %799 = vmatpush1.bf16.xpose.msra.mxu0 0
    %800 = vmatprep.subr.bf16.mxu0 0
    %801 = vmatpush1.bf16.xpose.msra.mxu0 0
    %802 = vmatprep.subr.bf16.mxu0 0
    %803 = vmatpush1.bf16.xpose.msra.mxu0 0
    %804 = vmatprep.subr.bf16.mxu0 0
    %805 = vmatpush1.bf16.xpose.msra.mxu0 0
    %806 = vmatprep.subr.bf16.mxu0 0
    %807 = vmatpush1.bf16.xpose.msra.mxu0 0
    %808 = vmatprep.subr.bf16.mxu0 0
    %809 = vmatpush1.bf16.xpose.msra.mxu0 0
    %810 = vmatprep.subr.bf16.mxu0 0
    %811 = vmatpush1.bf16.xpose.msra.mxu0 0
    %812 = vmatprep.subr.bf16.mxu0 0
    %813 = vmatpush1.bf16.xpose.msra.mxu0 0
    %814 = vmatprep.subr.bf16.mxu0 0
    %815 = vmatpush1.bf16.xpose.msra.mxu0 0
    %816 = vmatprep.subr.bf16.mxu0 0
    %817 = vmatpush1.bf16.xpose.msra.mxu0 0
    %818 = vmatprep.subr.bf16.mxu0 0
    %819 = vmatpush1.bf16.xpose.msra.mxu0 0
    %820 = vmatprep.subr.bf16.mxu0 0
    %821 = vmatpush1.bf16.xpose.msra.mxu0 0
    %822 = vmatprep.subr.bf16.mxu0 0
    %823 = vmatpush1.bf16.xpose.msra.mxu0 0
    %824 = vmatprep.subr.bf16.mxu0 0
    %825 = vmatpush1.bf16.xpose.msra.mxu0 0
    %826 = vmatprep.subr.bf16.mxu0 0
    %827 = vmatpush1.bf16.xpose.msra.mxu0 0
    %828 = vmatprep.mubr.bf16.mxu0 0
    %829 = vmatmul.mubr.bf16.gmra.mrb[0].mxu0 %v791
    %v830 = vpop.f32.mrb[0].mxu0
    %v831 = vadd.f32 0.0, %v830
    %v832 = vpop.f32.mrb[0].mxu0
    %v833 = vpop.f32.mrb[0].mxu0
    %v834 = vadd.f32 0.0, %v833
    %v835 = vpop.f32.mrb[0].mxu0
    %836 = vdwg.mxu0
    %v837 = vmul.f32 %v831, 0.35355338
    %v838 = vmul.f32 %v834, 0.35355338
    %v840 = vlaneseq
    %v841 = vshrl.u32 %v840, 7
    %v842 = vsub.s32 0, %v841
    %v843 = vrot.slane %v785, %v842
    %v845 = vadd.f32 %v837, %v843
    %v846 = vadd.f32 %v838, %v843
    %v847 = vsel %vm307, %v845, -inf
    %848 = vmax.xlane.f32.xlu0 %v847
    %v849 = vpop.xlane.xlu0 %848
    %v850 = vsel %vm307, %v846, -inf
    %851 = vmax.xlane.f32.xlu0 %v850
    %v852 = vpop.xlane.xlu0 %851
    %v853 = vsub.f32 %v845, %v849
    %v854 = vsub.f32 %v846, %v852
    %v855 = vmul.f32 %v853, 1.442695
    %v856 = vpow.pop %v855
    %v857 = vmul.f32 %v854, 1.442695
    %v858 = vpow.pop %v857
    %v859 = vsel %vm307, %v856, 0.0
    %860 = vadd.xlane.f32.xlu0 %v859
    %v861 = vpop.xlane.xlu0 %860
    %v862 = vsel %vm307, %v858, 0.0
    %863 = vadd.xlane.f32.xlu0 %v862
    %v864 = vpop.xlane.xlu0 %863
    %v865 = vrcp.pop %v861
    %v866 = vmul.f32 %v856, %v865
    %v867 = vrcp.pop %v864
    %v868 = vmul.f32 %v858, %v867
    %v869 = vpack.c.bf16 %v868, %v866
    %870 = vrot.lane.b32.xlu0 %v786, 64
    %v871 = vpop.permute.xlu0 %870
    %v874 = vsel %vm307, %v869, 0
    %876 = vmatprep.subr.bf16.mxu0 0
    %877 = vmatpush1.bf16.msra.mxu0 %v871
    %878 = vmatprep.subr.bf16.mxu0 0
    %879 = vmatpush1.bf16.msra.mxu0 0
    %880 = vmatprep.subr.bf16.mxu0 0
    %881 = vmatpush1.bf16.msra.mxu0 0
    %882 = vmatprep.subr.bf16.mxu0 0
    %883 = vmatpush1.bf16.msra.mxu0 0
    %884 = vmatprep.subr.bf16.mxu0 0
    %885 = vmatpush1.bf16.msra.mxu0 0
    %886 = vmatprep.subr.bf16.mxu0 0
    %887 = vmatpush1.bf16.msra.mxu0 0
    %888 = vmatprep.subr.bf16.mxu0 0
    %889 = vmatpush1.bf16.msra.mxu0 0
    %890 = vmatprep.subr.bf16.mxu0 0
    %891 = vmatpush1.bf16.msra.mxu0 0
    %892 = vmatprep.subr.bf16.mxu0 0
    %893 = vmatpush1.bf16.msra.mxu0 0
    %894 = vmatprep.subr.bf16.mxu0 0
    %895 = vmatpush1.bf16.msra.mxu0 0
    %896 = vmatprep.subr.bf16.mxu0 0
    %897 = vmatpush1.bf16.msra.mxu0 0
    %898 = vmatprep.subr.bf16.mxu0 0
    %899 = vmatpush1.bf16.msra.mxu0 0
    %900 = vmatprep.subr.bf16.mxu0 0
    %901 = vmatpush1.bf16.msra.mxu0 0
    %902 = vmatprep.subr.bf16.mxu0 0
    %903 = vmatpush1.bf16.msra.mxu0 0
    %904 = vmatprep.subr.bf16.mxu0 0
    %905 = vmatpush1.bf16.msra.mxu0 0
    %906 = vmatprep.subr.bf16.mxu0 0
    %907 = vmatpush1.bf16.msra.mxu0 0
    %908 = vmatprep.mubr.bf16.mxu0 0
    %909 = vmatmul.mubr.bf16.gmra.mrb[0].mxu0 %v874
    %v910 = vpop.f32.mrb[0].mxu0
    %v911 = vadd.f32 0.0, %v910
    %v912 = vpop.f32.mrb[0].mxu0
    %v913 = vpop.f32.mrb[0].mxu0
    %v914 = vadd.f32 0.0, %v913
    %v915 = vpop.f32.mrb[0].mxu0
    %916 = vdwg.mxu0
    %917 = vrot.lane.b32.xlu0 %v786, 120
    %v918 = vpop.permute.xlu0 %917
    %919 = vrot.lane.b32.xlu0 %v786, 88
    %v920 = vpop.permute.xlu0 %919
    %v922 = vsel %vm249, %v918, 0
    %v925 = vsel %vm249, %v920, 0
    %927 = vmatprep.subr.bf16.mxu0 0
    %928 = vmatpush1.bf16.xpose.msra.mxu0 %v925
    %929 = vmatprep.subr.bf16.mxu0 0
    %930 = vmatpush1.bf16.xpose.msra.mxu0 0
    %931 = vmatprep.subr.bf16.mxu0 0
    %932 = vmatpush1.bf16.xpose.msra.mxu0 0
    %933 = vmatprep.subr.bf16.mxu0 0
    %934 = vmatpush1.bf16.xpose.msra.mxu0 0
    %935 = vmatprep.subr.bf16.mxu0 0
    %936 = vmatpush1.bf16.xpose.msra.mxu0 0
    %937 = vmatprep.subr.bf16.mxu0 0
    %938 = vmatpush1.bf16.xpose.msra.mxu0 0
    %939 = vmatprep.subr.bf16.mxu0 0
    %940 = vmatpush1.bf16.xpose.msra.mxu0 0
    %941 = vmatprep.subr.bf16.mxu0 0
    %942 = vmatpush1.bf16.xpose.msra.mxu0 0
    %943 = vmatprep.subr.bf16.mxu0 0
    %944 = vmatpush1.bf16.xpose.msra.mxu0 0
    %945 = vmatprep.subr.bf16.mxu0 0
    %946 = vmatpush1.bf16.xpose.msra.mxu0 0
    %947 = vmatprep.subr.bf16.mxu0 0
    %948 = vmatpush1.bf16.xpose.msra.mxu0 0
    %949 = vmatprep.subr.bf16.mxu0 0
    %950 = vmatpush1.bf16.xpose.msra.mxu0 0
    %951 = vmatprep.subr.bf16.mxu0 0
    %952 = vmatpush1.bf16.xpose.msra.mxu0 0
    %953 = vmatprep.subr.bf16.mxu0 0
    %954 = vmatpush1.bf16.xpose.msra.mxu0 0
    %955 = vmatprep.subr.bf16.mxu0 0
    %956 = vmatpush1.bf16.xpose.msra.mxu0 0
    %957 = vmatprep.subr.bf16.mxu0 0
    %958 = vmatpush1.bf16.xpose.msra.mxu0 0
    %959 = vmatprep.mubr.bf16.mxu0 0
    %960 = vmatmul.mubr.bf16.gmra.mrb[0].mxu0 %v922
    %v961 = vpop.f32.mrb[0].mxu0
    %v962 = vadd.f32 0.0, %v961
    %v963 = vpop.f32.mrb[0].mxu0
    %v964 = vpop.f32.mrb[0].mxu0
    %v965 = vadd.f32 0.0, %v964
    %v966 = vpop.f32.mrb[0].mxu0
    %967 = vdwg.mxu0
    %v968 = vmul.f32 %v962, 0.35355338
    %v969 = vmul.f32 %v965, 0.35355338
    %v970 = vadd.f32 %v968, %v843
    %v971 = vadd.f32 %v969, %v843
    %v972 = vsel %vm307, %v970, -inf
    %973 = vmax.xlane.f32.xlu0 %v972
    %v974 = vpop.xlane.xlu0 %973
    %v975 = vsel %vm307, %v971, -inf
    %976 = vmax.xlane.f32.xlu0 %v975
    %v977 = vpop.xlane.xlu0 %976
    %v978 = vsub.f32 %v970, %v974
    %v979 = vsub.f32 %v971, %v977
    %v980 = vmul.f32 %v978, 1.442695
    %v981 = vpow.pop %v980
    %v982 = vmul.f32 %v979, 1.442695
    %v983 = vpow.pop %v982
    %v984 = vsel %vm307, %v981, 0.0
    %985 = vadd.xlane.f32.xlu0 %v984
    %v986 = vpop.xlane.xlu0 %985
    %v987 = vsel %vm307, %v983, 0.0
    %988 = vadd.xlane.f32.xlu0 %v987
    %v989 = vpop.xlane.xlu0 %988
    %v990 = vrcp.pop %v986
    %v991 = vmul.f32 %v981, %v990
    %v992 = vrcp.pop %v989
    %v993 = vmul.f32 %v983, %v992
    %v994 = vpack.c.bf16 %v993, %v991
    %995 = vrot.lane.b32.xlu0 %v786, 56
    %v996 = vpop.permute.xlu0 %995
    %v999 = vsel %vm307, %v994, 0
    %1001 = vmatprep.subr.bf16.mxu0 0
    %1002 = vmatpush1.bf16.msra.mxu0 %v996
    %1003 = vmatprep.subr.bf16.mxu0 0
    %1004 = vmatpush1.bf16.msra.mxu0 0
    %1005 = vmatprep.subr.bf16.mxu0 0
    %1006 = vmatpush1.bf16.msra.mxu0 0
    %1007 = vmatprep.subr.bf16.mxu0 0
    %1008 = vmatpush1.bf16.msra.mxu0 0
    %1009 = vmatprep.subr.bf16.mxu0 0
    %1010 = vmatpush1.bf16.msra.mxu0 0
    %1011 = vmatprep.subr.bf16.mxu0 0
    %1012 = vmatpush1.bf16.msra.mxu0 0
    %1013 = vmatprep.subr.bf16.mxu0 0
    %1014 = vmatpush1.bf16.msra.mxu0 0
    %1015 = vmatprep.subr.bf16.mxu0 0
    %1016 = vmatpush1.bf16.msra.mxu0 0
    %1017 = vmatprep.subr.bf16.mxu0 0
    %1018 = vmatpush1.bf16.msra.mxu0 0
    %1019 = vmatprep.subr.bf16.mxu0 0
    %1020 = vmatpush1.bf16.msra.mxu0 0
    %1021 = vmatprep.subr.bf16.mxu0 0
    %1022 = vmatpush1.bf16.msra.mxu0 0
    %1023 = vmatprep.subr.bf16.mxu0 0
    %1024 = vmatpush1.bf16.msra.mxu0 0
    %1025 = vmatprep.subr.bf16.mxu0 0
    %1026 = vmatpush1.bf16.msra.mxu0 0
    %1027 = vmatprep.subr.bf16.mxu0 0
    %1028 = vmatpush1.bf16.msra.mxu0 0
    %1029 = vmatprep.subr.bf16.mxu0 0
    %1030 = vmatpush1.bf16.msra.mxu0 0
    %1031 = vmatprep.subr.bf16.mxu0 0
    %1032 = vmatpush1.bf16.msra.mxu0 0
    %1033 = vmatprep.mubr.bf16.mxu0 0
    %1034 = vmatmul.mubr.bf16.gmra.mrb[0].mxu0 %v999
    %v1035 = vpop.f32.mrb[0].mxu0
    %v1036 = vadd.f32 0.0, %v1035
    %v1037 = vpop.f32.mrb[0].mxu0
    %v1038 = vpop.f32.mrb[0].mxu0
    %v1039 = vadd.f32 0.0, %v1038
    %v1040 = vpop.f32.mrb[0].mxu0
    %1041 = vdwg.mxu0
    %1042 = vrot.lane.b32.xlu0 %v786, 112
    %v1043 = vpop.permute.xlu0 %1042
    %1044 = vrot.lane.b32.xlu0 %v786, 80
    %v1045 = vpop.permute.xlu0 %1044
    %v1047 = vsel %vm249, %v1043, 0
    %v1050 = vsel %vm249, %v1045, 0
    %1052 = vmatprep.subr.bf16.mxu0 0
    %1053 = vmatpush1.bf16.xpose.msra.mxu0 %v1050
    %1054 = vmatprep.subr.bf16.mxu0 0
    %1055 = vmatpush1.bf16.xpose.msra.mxu0 0
    %1056 = vmatprep.subr.bf16.mxu0 0
    %1057 = vmatpush1.bf16.xpose.msra.mxu0 0
    %1058 = vmatprep.subr.bf16.mxu0 0
    %1059 = vmatpush1.bf16.xpose.msra.mxu0 0
    %1060 = vmatprep.subr.bf16.mxu0 0
    %1061 = vmatpush1.bf16.xpose.msra.mxu0 0
    %1062 = vmatprep.subr.bf16.mxu0 0
    %1063 = vmatpush1.bf16.xpose.msra.mxu0 0
    %1064 = vmatprep.subr.bf16.mxu0 0
    %1065 = vmatpush1.bf16.xpose.msra.mxu0 0
    %1066 = vmatprep.subr.bf16.mxu0 0
    %1067 = vmatpush1.bf16.xpose.msra.mxu0 0
    %1068 = vmatprep.subr.bf16.mxu0 0
    %1069 = vmatpush1.bf16.xpose.msra.mxu0 0
    %1070 = vmatprep.subr.bf16.mxu0 0
    %1071 = vmatpush1.bf16.xpose.msra.mxu0 0
    %1072 = vmatprep.subr.bf16.mxu0 0
    %1073 = vmatpush1.bf16.xpose.msra.mxu0 0
    %1074 = vmatprep.subr.bf16.mxu0 0
    %1075 = vmatpush1.bf16.xpose.msra.mxu0 0
    %1076 = vmatprep.subr.bf16.mxu0 0
    %1077 = vmatpush1.bf16.xpose.msra.mxu0 0
    %1078 = vmatprep.subr.bf16.mxu0 0
    %1079 = vmatpush1.bf16.xpose.msra.mxu0 0
    %1080 = vmatprep.subr.bf16.mxu0 0
    %1081 = vmatpush1.bf16.xpose.msra.mxu0 0
    %1082 = vmatprep.subr.bf16.mxu0 0
    %1083 = vmatpush1.bf16.xpose.msra.mxu0 0
    %1084 = vmatprep.mubr.bf16.mxu0 0
    %1085 = vmatmul.mubr.bf16.gmra.mrb[0].mxu0 %v1047
    %v1086 = vpop.f32.mrb[0].mxu0
    %v1087 = vadd.f32 0.0, %v1086
    %v1088 = vpop.f32.mrb[0].mxu0
    %v1089 = vpop.f32.mrb[0].mxu0
    %v1090 = vadd.f32 0.0, %v1089
    %v1091 = vpop.f32.mrb[0].mxu0
    %1092 = vdwg.mxu0
    %v1093 = vmul.f32 %v1087, 0.35355338
    %v1094 = vmul.f32 %v1090, 0.35355338
    %v1095 = vadd.f32 %v1093, %v843
    %v1096 = vadd.f32 %v1094, %v843
    %v1097 = vsel %vm307, %v1095, -inf
    %1098 = vmax.xlane.f32.xlu0 %v1097
    %v1099 = vpop.xlane.xlu0 %1098
    %v1100 = vsel %vm307, %v1096, -inf
    %1101 = vmax.xlane.f32.xlu0 %v1100
    %v1102 = vpop.xlane.xlu0 %1101
    %v1103 = vsub.f32 %v1095, %v1099
    %v1104 = vsub.f32 %v1096, %v1102
    %v1105 = vmul.f32 %v1103, 1.442695
    %v1106 = vpow.pop %v1105
    %v1107 = vmul.f32 %v1104, 1.442695
    %v1108 = vpow.pop %v1107
    %v1109 = vsel %vm307, %v1106, 0.0
    %1110 = vadd.xlane.f32.xlu0 %v1109
    %v1111 = vpop.xlane.xlu0 %1110
    %v1112 = vsel %vm307, %v1108, 0.0
    %1113 = vadd.xlane.f32.xlu0 %v1112
    %v1114 = vpop.xlane.xlu0 %1113
    %v1115 = vrcp.pop %v1111
    %v1116 = vmul.f32 %v1106, %v1115
    %v1117 = vrcp.pop %v1114
    %v1118 = vmul.f32 %v1108, %v1117
    %v1119 = vpack.c.bf16 %v1118, %v1116
    %1120 = vrot.lane.b32.xlu0 %v786, 48
    %v1121 = vpop.permute.xlu0 %1120
    %v1124 = vsel %vm307, %v1119, 0
    %1126 = vmatprep.subr.bf16.mxu0 0
    %1127 = vmatpush1.bf16.msra.mxu0 %v1121
    %1128 = vmatprep.subr.bf16.mxu0 0
    %1129 = vmatpush1.bf16.msra.mxu0 0
    %1130 = vmatprep.subr.bf16.mxu0 0
    %1131 = vmatpush1.bf16.msra.mxu0 0
    %1132 = vmatprep.subr.bf16.mxu0 0
    %1133 = vmatpush1.bf16.msra.mxu0 0
    %1134 = vmatprep.subr.bf16.mxu0 0
    %1135 = vmatpush1.bf16.msra.mxu0 0
    %1136 = vmatprep.subr.bf16.mxu0 0
    %1137 = vmatpush1.bf16.msra.mxu0 0
    %1138 = vmatprep.subr.bf16.mxu0 0
    %1139 = vmatpush1.bf16.msra.mxu0 0
    %1140 = vmatprep.subr.bf16.mxu0 0
    %1141 = vmatpush1.bf16.msra.mxu0 0
    %1142 = vmatprep.subr.bf16.mxu0 0
    %1143 = vmatpush1.bf16.msra.mxu0 0
    %1144 = vmatprep.subr.bf16.mxu0 0
    %1145 = vmatpush1.bf16.msra.mxu0 0
    %1146 = vmatprep.subr.bf16.mxu0 0
    %1147 = vmatpush1.bf16.msra.mxu0 0
    %1148 = vmatprep.subr.bf16.mxu0 0
    %1149 = vmatpush1.bf16.msra.mxu0 0
    %1150 = vmatprep.subr.bf16.mxu0 0
    %1151 = vmatpush1.bf16.msra.mxu0 0
    %1152 = vmatprep.subr.bf16.mxu0 0
    %1153 = vmatpush1.bf16.msra.mxu0 0
    %1154 = vmatprep.subr.bf16.mxu0 0
    %1155 = vmatpush1.bf16.msra.mxu0 0
    %1156 = vmatprep.subr.bf16.mxu0 0
    %1157 = vmatpush1.bf16.msra.mxu0 0
    %1158 = vmatprep.mubr.bf16.mxu0 0
    %1159 = vmatmul.mubr.bf16.gmra.mrb[0].mxu0 %v1124
    %v1160 = vpop.f32.mrb[0].mxu0
    %v1161 = vadd.f32 0.0, %v1160
    %v1162 = vpop.f32.mrb[0].mxu0
    %v1163 = vpop.f32.mrb[0].mxu0
    %v1164 = vadd.f32 0.0, %v1163
    %v1165 = vpop.f32.mrb[0].mxu0
    %1166 = vdwg.mxu0
    %1167 = vrot.lane.b32.xlu0 %v786, 104
    %v1168 = vpop.permute.xlu0 %1167
    %1169 = vrot.lane.b32.xlu0 %v786, 72
    %v1170 = vpop.permute.xlu0 %1169
    %v1172 = vsel %vm249, %v1168, 0
    %v1175 = vsel %vm249, %v1170, 0
    %1177 = vmatprep.subr.bf16.mxu0 0
    %1178 = vmatpush1.bf16.xpose.msra.mxu0 %v1175
    %1179 = vmatprep.subr.bf16.mxu0 0
    %1180 = vmatpush1.bf16.xpose.msra.mxu0 0
    %1181 = vmatprep.subr.bf16.mxu0 0
    %1182 = vmatpush1.bf16.xpose.msra.mxu0 0
    %1183 = vmatprep.subr.bf16.mxu0 0
    %1184 = vmatpush1.bf16.xpose.msra.mxu0 0
    %1185 = vmatprep.subr.bf16.mxu0 0
    %1186 = vmatpush1.bf16.xpose.msra.mxu0 0
    %1187 = vmatprep.subr.bf16.mxu0 0
    %1188 = vmatpush1.bf16.xpose.msra.mxu0 0
    %1189 = vmatprep.subr.bf16.mxu0 0
    %1190 = vmatpush1.bf16.xpose.msra.mxu0 0
    %1191 = vmatprep.subr.bf16.mxu0 0
    %1192 = vmatpush1.bf16.xpose.msra.mxu0 0
    %1193 = vmatprep.subr.bf16.mxu0 0
    %1194 = vmatpush1.bf16.xpose.msra.mxu0 0
    %1195 = vmatprep.subr.bf16.mxu0 0
    %1196 = vmatpush1.bf16.xpose.msra.mxu0 0
    %1197 = vmatprep.subr.bf16.mxu0 0
    %1198 = vmatpush1.bf16.xpose.msra.mxu0 0
    %1199 = vmatprep.subr.bf16.mxu0 0
    %1200 = vmatpush1.bf16.xpose.msra.mxu0 0
    %1201 = vmatprep.subr.bf16.mxu0 0
    %1202 = vmatpush1.bf16.xpose.msra.mxu0 0
    %1203 = vmatprep.subr.bf16.mxu0 0
    %1204 = vmatpush1.bf16.xpose.msra.mxu0 0
    %1205 = vmatprep.subr.bf16.mxu0 0
    %1206 = vmatpush1.bf16.xpose.msra.mxu0 0
    %1207 = vmatprep.subr.bf16.mxu0 0
    %1208 = vmatpush1.bf16.xpose.msra.mxu0 0
    %1209 = vmatprep.mubr.bf16.mxu0 0
    %1210 = vmatmul.mubr.bf16.gmra.mrb[0].mxu0 %v1172
    %v1211 = vpop.f32.mrb[0].mxu0
    %v1212 = vadd.f32 0.0, %v1211
    %v1213 = vpop.f32.mrb[0].mxu0
    %v1214 = vpop.f32.mrb[0].mxu0
    %v1215 = vadd.f32 0.0, %v1214
    %v1216 = vpop.f32.mrb[0].mxu0
    %1217 = vdwg.mxu0
    %v1218 = vmul.f32 %v1212, 0.35355338
    %v1219 = vmul.f32 %v1215, 0.35355338
    %v1220 = vadd.f32 %v1218, %v843
    %v1221 = vadd.f32 %v1219, %v843
    %v1222 = vsel %vm307, %v1220, -inf
    %1223 = vmax.xlane.f32.xlu0 %v1222
    %v1224 = vpop.xlane.xlu0 %1223
    %v1225 = vsel %vm307, %v1221, -inf
    %1226 = vmax.xlane.f32.xlu0 %v1225
    %v1227 = vpop.xlane.xlu0 %1226
    %v1228 = vsub.f32 %v1220, %v1224
    %v1229 = vsub.f32 %v1221, %v1227
    %v1230 = vmul.f32 %v1228, 1.442695
    %v1231 = vpow.pop %v1230
    %v1232 = vmul.f32 %v1229, 1.442695
    %v1233 = vpow.pop %v1232
    %v1234 = vsel %vm307, %v1231, 0.0
    %1235 = vadd.xlane.f32.xlu0 %v1234
    %v1236 = vpop.xlane.xlu0 %1235
    %v1237 = vsel %vm307, %v1233, 0.0
    %1238 = vadd.xlane.f32.xlu0 %v1237
    %v1239 = vpop.xlane.xlu0 %1238
    %v1240 = vrcp.pop %v1236
    %v1241 = vmul.f32 %v1231, %v1240
    %v1242 = vrcp.pop %v1239
    %v1243 = vmul.f32 %v1233, %v1242
    %v1244 = vpack.c.bf16 %v1243, %v1241
    %1245 = vrot.lane.b32.xlu0 %v786, 40
    %v1246 = vpop.permute.xlu0 %1245
    %v1249 = vsel %vm307, %v1244, 0
    %1251 = vmatprep.subr.bf16.mxu0 0
    %1252 = vmatpush1.bf16.msra.mxu0 %v1246
    %1253 = vmatprep.subr.bf16.mxu0 0
    %1254 = vmatpush1.bf16.msra.mxu0 0
    %1255 = vmatprep.subr.bf16.mxu0 0
    %1256 = vmatpush1.bf16.msra.mxu0 0
    %1257 = vmatprep.subr.bf16.mxu0 0
    %1258 = vmatpush1.bf16.msra.mxu0 0
    %1259 = vmatprep.subr.bf16.mxu0 0
    %1260 = vmatpush1.bf16.msra.mxu0 0
    %1261 = vmatprep.subr.bf16.mxu0 0
    %1262 = vmatpush1.bf16.msra.mxu0 0
    %1263 = vmatprep.subr.bf16.mxu0 0
    %1264 = vmatpush1.bf16.msra.mxu0 0
    %1265 = vmatprep.subr.bf16.mxu0 0
    %1266 = vmatpush1.bf16.msra.mxu0 0
    %1267 = vmatprep.subr.bf16.mxu0 0
    %1268 = vmatpush1.bf16.msra.mxu0 0
    %1269 = vmatprep.subr.bf16.mxu0 0
    %1270 = vmatpush1.bf16.msra.mxu0 0
    %1271 = vmatprep.subr.bf16.mxu0 0
    %1272 = vmatpush1.bf16.msra.mxu0 0
    %1273 = vmatprep.subr.bf16.mxu0 0
    %1274 = vmatpush1.bf16.msra.mxu0 0
    %1275 = vmatprep.subr.bf16.mxu0 0
    %1276 = vmatpush1.bf16.msra.mxu0 0
    %1277 = vmatprep.subr.bf16.mxu0 0
    %1278 = vmatpush1.bf16.msra.mxu0 0
    %1279 = vmatprep.subr.bf16.mxu0 0
    %1280 = vmatpush1.bf16.msra.mxu0 0
    %1281 = vmatprep.subr.bf16.mxu0 0
    %1282 = vmatpush1.bf16.msra.mxu0 0
    %1283 = vmatprep.mubr.bf16.mxu0 0
    %1284 = vmatmul.mubr.bf16.gmra.mrb[0].mxu0 %v1249
    %v1285 = vpop.f32.mrb[0].mxu0
    %v1286 = vadd.f32 0.0, %v1285
    %v1287 = vpop.f32.mrb[0].mxu0
    %v1288 = vpop.f32.mrb[0].mxu0
    %v1289 = vadd.f32 0.0, %v1288
    %v1290 = vpop.f32.mrb[0].mxu0
    %1291 = vdwg.mxu0
    %1294 = vrot.lane.b32.xlu0 %v1036, 8
    %v1295 = vpop.permute.xlu0 %1294
    %1296 = vrot.lane.b32.xlu0 %v1039, 8
    %v1297 = vpop.permute.xlu0 %1296
    %1302 = vrot.lane.b32.xlu0 %v1161, 16
    %v1303 = vpop.permute.xlu0 %1302
    %1304 = vrot.lane.b32.xlu0 %v1164, 16
    %v1305 = vpop.permute.xlu0 %1304
    %1310 = vrot.lane.b32.xlu0 %v1286, 24
    %v1311 = vpop.permute.xlu0 %1310
    %1312 = vrot.lane.b32.xlu0 %v1289, 24
    %v1313 = vpop.permute.xlu0 %1312
    %v1316 = vsel %vm249, %v911, %v1295
    %v1317 = vsel %vm249, %v914, %v1297
    %v1318 = vsel %vm307, %v1316, %v1303
    %v1319 = vsel %vm307, %v1317, %v1305
    %v1320 = vsel %vm781, %v1318, %v1311
    %v1321 = vsel %vm781, %v1319, %v1313
    %v1322 = vld [vmem:[%s7] sm:$0xf]
    %v1323 = vld [vmem:[%s7 + $0x4] sm:$0xf]
    %v1324 = vld [vmem:[%s7 + $0x8] sm:$0xf]
    %v1325 = vld [vmem:[%s7 + $0xc] sm:$0xf]
    %v1326 = vpack.c.bf16 %v783, %v782
    %v1327 = vpack.c.bf16 %v1321, %v1320
    %v1328 = vld [vmem:[%s8] sm:$0x1]
    %v1330 = vlaneseq
    %v1331 = vshrl.u32 %v1330, 7
    %v1332 = vsub.s32 0, %v1331
    %v1333 = vrot.slane %v1328, %v1332
    %v1339 = vunpack.c.l.b16 %v1322
    %v1340 = vunpack.c.l.b16 %v1323
    %v1341 = vunpack.c.l.b16 %v1324
    %v1342 = vunpack.c.l.b16 %v1325
    %v1343 = vpack.c.b16 %v1340, %v1339
    %v1344 = vpack.c.b16 %v1342, %v1341
    %v1348 = vsel %vm90, %v1326, 0
    %v1351 = vsel %vm90, %v1327, 0
    %1353 = vmatprep.subr.bf16.mxu0 0
    %1354 = vmatpush1.bf16.msra.mxu0 %v1343
    %1355 = vmatprep.subr.bf16.mxu0 0
    %1356 = vmatpush1.bf16.msra.mxu0 %v1344
    %1357 = vmatprep.subr.bf16.mxu0 0
    %1358 = vmatpush1.bf16.msra.mxu0 0
    %1359 = vmatprep.subr.bf16.mxu0 0
    %1360 = vmatpush1.bf16.msra.mxu0 0
    %1361 = vmatprep.subr.bf16.mxu0 0
    %1362 = vmatpush1.bf16.msra.mxu0 0
    %1363 = vmatprep.subr.bf16.mxu0 0
    %1364 = vmatpush1.bf16.msra.mxu0 0
    %1365 = vmatprep.subr.bf16.mxu0 0
    %1366 = vmatpush1.bf16.msra.mxu0 0
    %1367 = vmatprep.subr.bf16.mxu0 0
    %1368 = vmatpush1.bf16.msra.mxu0 0
    %1369 = vmatprep.subr.bf16.mxu0 0
    %1370 = vmatpush1.bf16.msra.mxu0 0
    %1371 = vmatprep.subr.bf16.mxu0 0
    %1372 = vmatpush1.bf16.msra.mxu0 0
    %1373 = vmatprep.subr.bf16.mxu0 0
    %1374 = vmatpush1.bf16.msra.mxu0 0
    %1375 = vmatprep.subr.bf16.mxu0 0
    %1376 = vmatpush1.bf16.msra.mxu0 0
    %1377 = vmatprep.subr.bf16.mxu0 0
    %1378 = vmatpush1.bf16.msra.mxu0 0
    %1379 = vmatprep.subr.bf16.mxu0 0
    %1380 = vmatpush1.bf16.msra.mxu0 0
    %1381 = vmatprep.subr.bf16.mxu0 0
    %1382 = vmatpush1.bf16.msra.mxu0 0
    %1383 = vmatprep.subr.bf16.mxu0 0
    %1384 = vmatpush1.bf16.msra.mxu0 0
    %1385 = vmatprep.mubr.bf16.mxu0 0
    %1386 = vmatmul.mubr.bf16.gmra.mrb[0].mxu0 %v1348
    %v1387 = vpop.f32.mrb[0].mxu0
    %v1388 = vadd.f32 %v1333, %v1387
    %v1389 = vpop.f32.mrb[0].mxu0
    %v1390 = vpop.f32.mrb[0].mxu0
    %v1391 = vadd.f32 %v1333, %v1390
    %v1392 = vpop.f32.mrb[0].mxu0
    %1393 = vmatprep.mubr.bf16.mxu0 0
    %1394 = vmatmul.mubr.bf16.gmra.mrb[0].mxu0 %v1351
    %v1395 = vpop.f32.mrb[0].mxu0
    %v1396 = vadd.f32 %v1333, %v1395
    %v1397 = vpop.f32.mrb[0].mxu0
    %v1398 = vpop.f32.mrb[0].mxu0
    %v1399 = vadd.f32 %v1333, %v1398
    %v1400 = vpop.f32.mrb[0].mxu0
    %1401 = vdwg.mxu0
    %v1402 = vadd.f32 %v1388, %v160
    %v1403 = vadd.f32 %v1391, %v161
    %v1404 = vadd.f32 %v1396, %v162
    %v1405 = vadd.f32 %v1399, %v163
    %v1406 = vld [vmem:[%s9] sm:$0x1]
    %v1407 = vld [vmem:[%s10] sm:$0x1]
    %v1408 = vsel %vm90, %v1402, 0.0
    %1409 = vadd.xlane.f32.xlu0 %v1408
    %v1410 = vpop.xlane.xlu0 %1409
    %v1411 = vsel %vm90, %v1403, 0.0
    %1412 = vadd.xlane.f32.xlu0 %v1411
    %v1413 = vpop.xlane.xlu0 %1412
    %v1414 = vsel %vm90, %v1404, 0.0
    %1415 = vadd.xlane.f32.xlu0 %v1414
    %v1416 = vpop.xlane.xlu0 %1415
    %v1417 = vsel %vm90, %v1405, 0.0
    %1418 = vadd.xlane.f32.xlu0 %v1417
    %v1419 = vpop.xlane.xlu0 %1418
    %v1420 = vmul.f32 %v1410, %v103
    %v1421 = vmul.f32 %v1413, %v103
    %v1422 = vmul.f32 %v1416, %v103
    %v1423 = vmul.f32 %v1419, %v103
    %v1424 = vsub.f32 %v1402, %v1420
    %v1425 = vsub.f32 %v1403, %v1421
    %v1426 = vsub.f32 %v1404, %v1422
    %v1427 = vsub.f32 %v1405, %v1423
    %v1428 = vmul.f32 %v1424, %v1424
    %v1429 = vmul.f32 %v1425, %v1425
    %v1430 = vmul.f32 %v1426, %v1426
    %v1431 = vmul.f32 %v1427, %v1427
    %v1432 = vsel %vm90, %v1428, 0.0
    %1433 = vadd.xlane.f32.xlu0 %v1432
    %v1434 = vpop.xlane.xlu0 %1433
    %v1435 = vsel %vm90, %v1429, 0.0
    %1436 = vadd.xlane.f32.xlu0 %v1435
    %v1437 = vpop.xlane.xlu0 %1436
    %v1438 = vsel %vm90, %v1430, 0.0
    %1439 = vadd.xlane.f32.xlu0 %v1438
    %v1440 = vpop.xlane.xlu0 %1439
    %v1441 = vsel %vm90, %v1431, 0.0
    %1442 = vadd.xlane.f32.xlu0 %v1441
    %v1443 = vpop.xlane.xlu0 %1442
    %v1444 = vmul.f32 %v1434, %v103
    %v1445 = vmul.f32 %v1437, %v103
    %v1446 = vmul.f32 %v1440, %v103
    %v1447 = vmul.f32 %v1443, %v103
    %v1448 = vadd.f32 %v1444, 1e-12
    %v1449 = vadd.f32 %v1445, 1e-12
    %v1450 = vadd.f32 %v1446, 1e-12
    %v1451 = vadd.f32 %v1447, 1e-12
    %v1452 = vrsqrt.pop %v1448
    %v1453 = vrsqrt.pop %v1449
    %v1454 = vrsqrt.pop %v1450
    %v1455 = vrsqrt.pop %v1451
    %v1456 = vmul.f32 %v1424, %v1452
    %v1457 = vmul.f32 %v1425, %v1453
    %v1458 = vmul.f32 %v1426, %v1454
    %v1459 = vmul.f32 %v1427, %v1455
    %v1461 = vlaneseq
    %v1462 = vshrl.u32 %v1461, 7
    %v1463 = vsub.s32 0, %v1462
    %v1464 = vrot.slane %v1406, %v1463
    %v1466 = vmul.f32 %v1456, %v1464
    %v1467 = vmul.f32 %v1457, %v1464
    %v1468 = vmul.f32 %v1458, %v1464
    %v1469 = vmul.f32 %v1459, %v1464
    %v1471 = vlaneseq
    %v1472 = vshrl.u32 %v1471, 7
    %v1473 = vsub.s32 0, %v1472
    %v1474 = vrot.slane %v1407, %v1473
    %v1476 = vadd.f32 %v1466, %v1474
    %v1477 = vadd.f32 %v1467, %v1474
    %v1478 = vadd.f32 %v1468, %v1474
    %v1479 = vadd.f32 %v1469, %v1474
    %v1480 = vld [vmem:[%s11] sm:$0xf]
    %v1481 = vld [vmem:[%s11 + $0x4] sm:$0xf]
    %v1482 = vld [vmem:[%s11 + $0x8] sm:$0xf]
    %v1483 = vld [vmem:[%s11 + $0xc] sm:$0xf]
    %v1484 = vpack.c.bf16 %v1477, %v1476
    %v1485 = vpack.c.bf16 %v1479, %v1478
    %v1486 = vld [vmem:[%s12] sm:$0x1]
    %v1488 = vlaneseq
    %v1489 = vshrl.u32 %v1488, 7
    %v1490 = vsub.s32 0, %v1489
    %v1491 = vrot.slane %v1486, %v1490
    %v1497 = vunpack.c.l.b16 %v1480
    %v1498 = vunpack.c.l.b16 %v1481
    %v1499 = vunpack.c.l.b16 %v1482
    %v1500 = vunpack.c.l.b16 %v1483
    %v1501 = vpack.c.b16 %v1498, %v1497
    %v1502 = vpack.c.b16 %v1500, %v1499
    %v1506 = vsel %vm90, %v1484, 0
    %v1509 = vsel %vm90, %v1485, 0
    %1511 = vmatprep.subr.bf16.mxu0 0
    %1512 = vmatpush1.bf16.msra.mxu0 %v1501
    %1513 = vmatprep.subr.bf16.mxu0 0
    %1514 = vmatpush1.bf16.msra.mxu0 %v1502
    %1515 = vmatprep.subr.bf16.mxu0 0
    %1516 = vmatpush1.bf16.msra.mxu0 0
    %1517 = vmatprep.subr.bf16.mxu0 0
    %1518 = vmatpush1.bf16.msra.mxu0 0
    %1519 = vmatprep.subr.bf16.mxu0 0
    %1520 = vmatpush1.bf16.msra.mxu0 0
    %1521 = vmatprep.subr.bf16.mxu0 0
    %1522 = vmatpush1.bf16.msra.mxu0 0
    %1523 = vmatprep.subr.bf16.mxu0 0
    %1524 = vmatpush1.bf16.msra.mxu0 0
    %1525 = vmatprep.subr.bf16.mxu0 0
    %1526 = vmatpush1.bf16.msra.mxu0 0
    %1527 = vmatprep.subr.bf16.mxu0 0
    %1528 = vmatpush1.bf16.msra.mxu0 0
    %1529 = vmatprep.subr.bf16.mxu0 0
    %1530 = vmatpush1.bf16.msra.mxu0 0
    %1531 = vmatprep.subr.bf16.mxu0 0
    %1532 = vmatpush1.bf16.msra.mxu0 0
    %1533 = vmatprep.subr.bf16.mxu0 0
    %1534 = vmatpush1.bf16.msra.mxu0 0
    %1535 = vmatprep.subr.bf16.mxu0 0
    %1536 = vmatpush1.bf16.msra.mxu0 0
    %1537 = vmatprep.subr.bf16.mxu0 0
    %1538 = vmatpush1.bf16.msra.mxu0 0
    %1539 = vmatprep.subr.bf16.mxu0 0
    %1540 = vmatpush1.bf16.msra.mxu0 0
    %1541 = vmatprep.subr.bf16.mxu0 0
    %1542 = vmatpush1.bf16.msra.mxu0 0
    %1543 = vmatprep.mubr.bf16.mxu0 0
    %1544 = vmatmul.mubr.bf16.gmra.mrb[0].mxu0 %v1506
    %v1545 = vpop.f32.mrb[0].mxu0
    %v1546 = vadd.f32 %v1491, %v1545
    %v1547 = vpop.f32.mrb[0].mxu0
    %v1548 = vpop.f32.mrb[0].mxu0
    %v1549 = vadd.f32 %v1491, %v1548
    %v1550 = vpop.f32.mrb[0].mxu0
    %1551 = vmatprep.mubr.bf16.mxu0 0
    %1552 = vmatmul.mubr.bf16.gmra.mrb[0].mxu0 %v1509
    %v1553 = vpop.f32.mrb[0].mxu0
    %v1554 = vadd.f32 %v1491, %v1553
    %v1555 = vpop.f32.mrb[0].mxu0
    %v1556 = vpop.f32.mrb[0].mxu0
    %v1557 = vadd.f32 %v1491, %v1556
    %v1558 = vpop.f32.mrb[0].mxu0
    %1559 = vdwg.mxu0
    %v1560 = vmul.f32 %v1546, 0.5
    %v1561 = vmul.f32 %v1549, 0.5
    %v1562 = vmul.f32 %v1554, 0.5
    %v1563 = vmul.f32 %v1557, 0.5
    %v1564 = vmul.f32 %v1546, 0.70710677
    %v1565 = vmul.f32 %v1549, 0.70710677
    %v1566 = vmul.f32 %v1554, 0.70710677
    %v1567 = vmul.f32 %v1557, 0.70710677
    %vm1568 = vcmp.ge.f32.partialorder %v1564, 0.0
    %vm1569 = vcmp.ge.f32.partialorder %v1565, 0.0
    %vm1570 = vcmp.ge.f32.partialorder %v1566, 0.0
    %vm1571 = vcmp.ge.f32.partialorder %v1567, 0.0
    %v1572 = vsel %vm1568, 1.0, -1.0
    %v1573 = vsel %vm1569, 1.0, -1.0
    %v1574 = vsel %vm1570, 1.0, -1.0
    %v1575 = vsel %vm1571, 1.0, -1.0
    %v1576 = vand.u32 2147483647, %v1564
    %v1577 = vand.u32 2147483647, %v1565
    %v1578 = vand.u32 2147483647, %v1566
    %v1579 = vand.u32 2147483647, %v1567
    %v1580 = vmul.f32 %v1576, 0.3275911
    %v1581 = vmul.f32 %v1577, 0.3275911
    %v1582 = vmul.f32 %v1578, 0.3275911
    %v1583 = vmul.f32 %v1579, 0.3275911
    %v1584 = vadd.f32 %v1580, 1.0
    %v1585 = vadd.f32 %v1581, 1.0
    %v1586 = vadd.f32 %v1582, 1.0
    %v1587 = vadd.f32 %v1583, 1.0
    %v1588 = vrcp.pop %v1584
    %v1589 = vmul.f32 1.0, %v1588
    %v1590 = vrcp.pop %v1585
    %v1591 = vmul.f32 1.0, %v1590
    %v1592 = vrcp.pop %v1586
    %v1593 = vmul.f32 1.0, %v1592
    %v1594 = vrcp.pop %v1587
    %v1595 = vmul.f32 1.0, %v1594
    %v1596 = vmul.f32 %v1589, 1.0614054
    %v1597 = vmul.f32 %v1591, 1.0614054
    %v1598 = vmul.f32 %v1593, 1.0614054
    %v1599 = vmul.f32 %v1595, 1.0614054
    %v1600 = vadd.f32 %v1596, -1.4531521
    %v1601 = vadd.f32 %v1597, -1.4531521
    %v1602 = vadd.f32 %v1598, -1.4531521
    %v1603 = vadd.f32 %v1599, -1.4531521
    %v1604 = vmul.f32 %v1600, %v1589
    %v1605 = vmul.f32 %v1601, %v1591
    %v1606 = vmul.f32 %v1602, %v1593
    %v1607 = vmul.f32 %v1603, %v1595
    %v1608 = vadd.f32 %v1604, 1.4214138
    %v1609 = vadd.f32 %v1605, 1.4214138
    %v1610 = vadd.f32 %v1606, 1.4214138
    %v1611 = vadd.f32 %v1607, 1.4214138
    %v1612 = vmul.f32 %v1608, %v1589
    %v1613 = vmul.f32 %v1609, %v1591
    %v1614 = vmul.f32 %v1610, %v1593
    %v1615 = vmul.f32 %v1611, %v1595
    %v1616 = vadd.f32 %v1612, -0.28449672
    %v1617 = vadd.f32 %v1613, -0.28449672
    %v1618 = vadd.f32 %v1614, -0.28449672
    %v1619 = vadd.f32 %v1615, -0.28449672
    %v1620 = vmul.f32 %v1616, %v1589
    %v1621 = vmul.f32 %v1617, %v1591
    %v1622 = vmul.f32 %v1618, %v1593
    %v1623 = vmul.f32 %v1619, %v1595
    %v1624 = vadd.f32 %v1620, 0.2548296
    %v1625 = vadd.f32 %v1621, 0.2548296
    %v1626 = vadd.f32 %v1622, 0.2548296
    %v1627 = vadd.f32 %v1623, 0.2548296
    %v1628 = vmul.f32 %v1624, %v1589
    %v1629 = vmul.f32 %v1625, %v1591
    %v1630 = vmul.f32 %v1626, %v1593
    %v1631 = vmul.f32 %v1627, %v1595
    %v1632 = vsub.f32 0.0, %v1576
    %v1633 = vsub.f32 0.0, %v1577
    %v1634 = vsub.f32 0.0, %v1578
    %v1635 = vsub.f32 0.0, %v1579
    %v1636 = vmul.f32 %v1632, %v1576
    %v1637 = vmul.f32 %v1633, %v1577
    %v1638 = vmul.f32 %v1634, %v1578
    %v1639 = vmul.f32 %v1635, %v1579
    %v1640 = vmul.f32 %v1636, 1.442695
    %v1641 = vpow.pop %v1640
    %v1642 = vmul.f32 %v1637, 1.442695
    %v1643 = vpow.pop %v1642
    %v1644 = vmul.f32 %v1638, 1.442695
    %v1645 = vpow.pop %v1644
    %v1646 = vmul.f32 %v1639, 1.442695
    %v1647 = vpow.pop %v1646
    %v1648 = vmul.f32 %v1628, %v1641
    %v1649 = vmul.f32 %v1629, %v1643
    %v1650 = vmul.f32 %v1630, %v1645
    %v1651 = vmul.f32 %v1631, %v1647
    %v1652 = vsub.f32 1.0, %v1648
    %v1653 = vsub.f32 1.0, %v1649
    %v1654 = vsub.f32 1.0, %v1650
    %v1655 = vsub.f32 1.0, %v1651
    %v1656 = vmul.f32 %v1572, %v1652
    %v1657 = vmul.f32 %v1573, %v1653
    %v1658 = vmul.f32 %v1574, %v1654
    %v1659 = vmul.f32 %v1575, %v1655
    %v1660 = vadd.f32 %v1656, 1.0
    %v1661 = vadd.f32 %v1657, 1.0
    %v1662 = vadd.f32 %v1658, 1.0
    %v1663 = vadd.f32 %v1659, 1.0
    %v1664 = vmul.f32 %v1560, %v1660
    %v1665 = vmul.f32 %v1561, %v1661
    %v1666 = vmul.f32 %v1562, %v1662
    %v1667 = vmul.f32 %v1563, %v1663
    %v1668 = vld [vmem:[%s13] sm:$0xf]
    %v1669 = vld [vmem:[%s13 + $0x4] sm:$0xf]
    %v1670 = vld [vmem:[%s13 + $0x8] sm:$0xf]
    %v1671 = vld [vmem:[%s13 + $0xc] sm:$0xf]
    %v1672 = vld [vmem:[%s13 + $0x10] sm:$0xf]
    %v1673 = vld [vmem:[%s13 + $0x14] sm:$0xf]
    %v1674 = vld [vmem:[%s13 + $0x18] sm:$0xf]
    %v1675 = vld [vmem:[%s13 + $0x1c] sm:$0xf]
    %v1676 = vpack.c.bf16 %v1665, %v1664
    %v1677 = vpack.c.bf16 %v1667, %v1666
    %v1678 = vld [vmem:[%s14] sm:$0x1]
    %v1680 = vlaneseq
    %v1681 = vshrl.u32 %v1680, 7
    %v1682 = vsub.s32 0, %v1681
    %v1683 = vrot.slane %v1678, %v1682
    %v1693 = vunpack.c.l.b16 %v1668
    %v1694 = vunpack.c.l.b16 %v1669
    %v1695 = vunpack.c.l.b16 %v1670
    %v1696 = vunpack.c.l.b16 %v1671
    %v1697 = vunpack.c.l.b16 %v1672
    %v1698 = vunpack.c.l.b16 %v1673
    %v1699 = vunpack.c.l.b16 %v1674
    %v1700 = vunpack.c.l.b16 %v1675
    %v1701 = vpack.c.b16 %v1694, %v1693
    %v1702 = vpack.c.b16 %v1696, %v1695
    %v1703 = vpack.c.b16 %v1698, %v1697
    %v1704 = vpack.c.b16 %v1700, %v1699
    %vm1709 = vcmask 523264
    %v1711 = vsel %vm1709, %v1676, 0
    %v1714 = vsel %vm1709, %v1677, 0
    %1716 = vmatprep.subr.bf16.mxu0 0
    %1717 = vmatpush1.bf16.msra.mxu0 %v1701
    %1718 = vmatprep.subr.bf16.mxu0 0
    %1719 = vmatpush1.bf16.msra.mxu0 %v1702
    %1720 = vmatprep.subr.bf16.mxu0 0
    %1721 = vmatpush1.bf16.msra.mxu0 %v1703
    %1722 = vmatprep.subr.bf16.mxu0 0
    %1723 = vmatpush1.bf16.msra.mxu0 %v1704
    %1724 = vmatprep.subr.bf16.mxu0 0
    %1725 = vmatpush1.bf16.msra.mxu0 0
    %1726 = vmatprep.subr.bf16.mxu0 0
    %1727 = vmatpush1.bf16.msra.mxu0 0
    %1728 = vmatprep.subr.bf16.mxu0 0
    %1729 = vmatpush1.bf16.msra.mxu0 0
    %1730 = vmatprep.subr.bf16.mxu0 0
    %1731 = vmatpush1.bf16.msra.mxu0 0
    %1732 = vmatprep.subr.bf16.mxu0 0
    %1733 = vmatpush1.bf16.msra.mxu0 0
    %1734 = vmatprep.subr.bf16.mxu0 0
    %1735 = vmatpush1.bf16.msra.mxu0 0
    %1736 = vmatprep.subr.bf16.mxu0 0
    %1737 = vmatpush1.bf16.msra.mxu0 0
    %1738 = vmatprep.subr.bf16.mxu0 0
    %1739 = vmatpush1.bf16.msra.mxu0 0
    %1740 = vmatprep.subr.bf16.mxu0 0
    %1741 = vmatpush1.bf16.msra.mxu0 0
    %1742 = vmatprep.subr.bf16.mxu0 0
    %1743 = vmatpush1.bf16.msra.mxu0 0
    %1744 = vmatprep.subr.bf16.mxu0 0
    %1745 = vmatpush1.bf16.msra.mxu0 0
    %1746 = vmatprep.subr.bf16.mxu0 0
    %1747 = vmatpush1.bf16.msra.mxu0 0
    %1748 = vmatprep.mubr.bf16.mxu0 0
    %1749 = vmatmul.mubr.bf16.gmra.mrb[0].mxu0 %v1711
    %v1750 = vpop.f32.mrb[0].mxu0
    %v1751 = vadd.f32 %v1683, %v1750
    %v1752 = vpop.f32.mrb[0].mxu0
    %v1753 = vpop.f32.mrb[0].mxu0
    %v1754 = vadd.f32 %v1683, %v1753
    %v1755 = vpop.f32.mrb[0].mxu0
    %1756 = vmatprep.mubr.bf16.mxu0 0
    %1757 = vmatmul.mubr.bf16.gmra.mrb[0].mxu0 %v1714
    %v1758 = vpop.f32.mrb[0].mxu0
    %v1759 = vadd.f32 %v1683, %v1758
    %v1760 = vpop.f32.mrb[0].mxu0
    %v1761 = vpop.f32.mrb[0].mxu0
    %v1762 = vadd.f32 %v1683, %v1761
    %v1763 = vpop.f32.mrb[0].mxu0
    %1764 = vdwg.mxu0
    %v1765 = vadd.f32 %v1751, %v1476
    %v1766 = vadd.f32 %v1754, %v1477
    %v1767 = vadd.f32 %v1759, %v1478
    %v1768 = vadd.f32 %v1762, %v1479
    %v1769 = vld [vmem:[%s15] sm:$0x1]
    %v1770 = vld [vmem:[%s16] sm:$0x1]
    %v1771 = vsel %vm90, %v1765, 0.0
    %1772 = vadd.xlane.f32.xlu0 %v1771
    %v1773 = vpop.xlane.xlu0 %1772
    %v1774 = vsel %vm90, %v1766, 0.0
    %1775 = vadd.xlane.f32.xlu0 %v1774
    %v1776 = vpop.xlane.xlu0 %1775
    %v1777 = vsel %vm90, %v1767, 0.0
    %1778 = vadd.xlane.f32.xlu0 %v1777
    %v1779 = vpop.xlane.xlu0 %1778
    %v1780 = vsel %vm90, %v1768, 0.0
    %1781 = vadd.xlane.f32.xlu0 %v1780
    %v1782 = vpop.xlane.xlu0 %1781
    %v1783 = vmul.f32 %v1773, %v103
    %v1784 = vmul.f32 %v1776, %v103
    %v1785 = vmul.f32 %v1779, %v103
    %v1786 = vmul.f32 %v1782, %v103
    %v1787 = vsub.f32 %v1765, %v1783
    %v1788 = vsub.f32 %v1766, %v1784
    %v1789 = vsub.f32 %v1767, %v1785
    %v1790 = vsub.f32 %v1768, %v1786
    %v1791 = vmul.f32 %v1787, %v1787
    %v1792 = vmul.f32 %v1788, %v1788
    %v1793 = vmul.f32 %v1789, %v1789
    %v1794 = vmul.f32 %v1790, %v1790
    %v1795 = vsel %vm90, %v1791, 0.0
    %1796 = vadd.xlane.f32.xlu0 %v1795
    %v1797 = vpop.xlane.xlu0 %1796
    %v1798 = vsel %vm90, %v1792, 0.0
    %1799 = vadd.xlane.f32.xlu0 %v1798
    %v1800 = vpop.xlane.xlu0 %1799
    %v1801 = vsel %vm90, %v1793, 0.0
    %1802 = vadd.xlane.f32.xlu0 %v1801
    %v1803 = vpop.xlane.xlu0 %1802
    %v1804 = vsel %vm90, %v1794, 0.0
    %1805 = vadd.xlane.f32.xlu0 %v1804
    %v1806 = vpop.xlane.xlu0 %1805
    %v1807 = vmul.f32 %v1797, %v103
    %v1808 = vmul.f32 %v1800, %v103
    %v1809 = vmul.f32 %v1803, %v103
    %v1810 = vmul.f32 %v1806, %v103
    %v1811 = vadd.f32 %v1807, 1e-12
    %v1812 = vadd.f32 %v1808, 1e-12
    %v1813 = vadd.f32 %v1809, 1e-12
    %v1814 = vadd.f32 %v1810, 1e-12
    %v1815 = vrsqrt.pop %v1811
    %v1816 = vrsqrt.pop %v1812
    %v1817 = vrsqrt.pop %v1813
    %v1818 = vrsqrt.pop %v1814
    %v1819 = vmul.f32 %v1787, %v1815
    %v1820 = vmul.f32 %v1788, %v1816
    %v1821 = vmul.f32 %v1789, %v1817
    %v1822 = vmul.f32 %v1790, %v1818
    %v1824 = vlaneseq
    %v1825 = vshrl.u32 %v1824, 7
    %v1826 = vsub.s32 0, %v1825
    %v1827 = vrot.slane %v1769, %v1826
    %v1829 = vmul.f32 %v1819, %v1827
    %v1830 = vmul.f32 %v1820, %v1827
    %v1831 = vmul.f32 %v1821, %v1827
    %v1832 = vmul.f32 %v1822, %v1827
    %v1834 = vlaneseq
    %v1835 = vshrl.u32 %v1834, 7
    %v1836 = vsub.s32 0, %v1835
    %v1837 = vrot.slane %v1770, %v1836
    %v1839 = vadd.f32 %v1829, %v1837
    %v1840 = vadd.f32 %v1830, %v1837
    %v1841 = vadd.f32 %v1831, %v1837
    %v1842 = vadd.f32 %v1832, %v1837
    %s1843 = scalar_lea.vmem %s5, 16
    %v1844 = vld [vmem:[%s1843] sm:$0xf]
    %v1845 = vld [vmem:[%s1843 + $0x4] sm:$0xf]
    %v1846 = vld [vmem:[%s1843 + $0x8] sm:$0xf]
    %v1847 = vld [vmem:[%s1843 + $0xc] sm:$0xf]
    %v1848 = vpack.c.bf16 %v1840, %v1839
    %v1849 = vpack.c.bf16 %v1842, %v1841
    %s1850 = scalar_lea.vmem %s6, 1
    %v1851 = vld [vmem:[%s1850] sm:$0x1]
    %v1853 = vlaneseq
    %v1854 = vshrl.u32 %v1853, 7
    %v1855 = vsub.s32 0, %v1854
    %v1856 = vrot.slane %v1851, %v1855
    %v1862 = vunpack.c.l.b16 %v1844
    %v1863 = vunpack.c.l.b16 %v1845
    %v1864 = vunpack.c.l.b16 %v1846
    %v1865 = vunpack.c.l.b16 %v1847
    %v1866 = vpack.c.b16 %v1863, %v1862
    %v1867 = vpack.c.b16 %v1865, %v1864
    %v1871 = vsel %vm90, %v1848, 0
    %v1874 = vsel %vm90, %v1849, 0
    %1876 = vmatprep.subr.bf16.mxu0 0
    %1877 = vmatpush1.bf16.msra.mxu0 %v1866
    %1878 = vmatprep.subr.bf16.mxu0 0
    %1879 = vmatpush1.bf16.msra.mxu0 %v1867
    %1880 = vmatprep.subr.bf16.mxu0 0
    %1881 = vmatpush1.bf16.msra.mxu0 0
    %1882 = vmatprep.subr.bf16.mxu0 0
    %1883 = vmatpush1.bf16.msra.mxu0 0
    %1884 = vmatprep.subr.bf16.mxu0 0
    %1885 = vmatpush1.bf16.msra.mxu0 0
    %1886 = vmatprep.subr.bf16.mxu0 0
    %1887 = vmatpush1.bf16.msra.mxu0 0
    %1888 = vmatprep.subr.bf16.mxu0 0
    %1889 = vmatpush1.bf16.msra.mxu0 0
    %1890 = vmatprep.subr.bf16.mxu0 0
    %1891 = vmatpush1.bf16.msra.mxu0 0
    %1892 = vmatprep.subr.bf16.mxu0 0
    %1893 = vmatpush1.bf16.msra.mxu0 0
    %1894 = vmatprep.subr.bf16.mxu0 0
    %1895 = vmatpush1.bf16.msra.mxu0 0
    %1896 = vmatprep.subr.bf16.mxu0 0
    %1897 = vmatpush1.bf16.msra.mxu0 0
    %1898 = vmatprep.subr.bf16.mxu0 0
    %1899 = vmatpush1.bf16.msra.mxu0 0
    %1900 = vmatprep.subr.bf16.mxu0 0
    %1901 = vmatpush1.bf16.msra.mxu0 0
    %1902 = vmatprep.subr.bf16.mxu0 0
    %1903 = vmatpush1.bf16.msra.mxu0 0
    %1904 = vmatprep.subr.bf16.mxu0 0
    %1905 = vmatpush1.bf16.msra.mxu0 0
    %1906 = vmatprep.subr.bf16.mxu0 0
    %1907 = vmatpush1.bf16.msra.mxu0 0
    %1908 = vmatprep.mubr.bf16.mxu0 0
    %1909 = vmatmul.mubr.bf16.gmra.mrb[0].mxu0 %v1871
    %v1910 = vpop.f32.mrb[0].mxu0
    %v1911 = vadd.f32 %v1856, %v1910
    %v1912 = vpop.f32.mrb[0].mxu0
    %v1913 = vpop.f32.mrb[0].mxu0
    %v1914 = vadd.f32 %v1856, %v1913
    %v1915 = vpop.f32.mrb[0].mxu0
    %1916 = vmatprep.mubr.bf16.mxu0 0
    %1917 = vmatmul.mubr.bf16.gmra.mrb[0].mxu0 %v1874
    %v1918 = vpop.f32.mrb[0].mxu0
    %v1919 = vadd.f32 %v1856, %v1918
    %v1920 = vpop.f32.mrb[0].mxu0
    %v1921 = vpop.f32.mrb[0].mxu0
    %v1922 = vadd.f32 %v1856, %v1921
    %v1923 = vpop.f32.mrb[0].mxu0
    %1924 = vdwg.mxu0
    %v1925 = vpack.c.bf16 %v1914, %v1911
    %1927 = vrot.lane.b32.xlu0 %v1925, 96
    %v1928 = vpop.permute.xlu0 %1927
    %v1930 = vsel %vm249, %v1925, 0
    %v1933 = vsel %vm249, %v1928, 0
    %1935 = vmatprep.subr.bf16.mxu0 0
    %1936 = vmatpush1.bf16.xpose.msra.mxu0 %v1933
    %1937 = vmatprep.subr.bf16.mxu0 0
    %1938 = vmatpush1.bf16.xpose.msra.mxu0 0
    %1939 = vmatprep.subr.bf16.mxu0 0
    %1940 = vmatpush1.bf16.xpose.msra.mxu0 0
    %1941 = vmatprep.subr.bf16.mxu0 0
    %1942 = vmatpush1.bf16.xpose.msra.mxu0 0
    %1943 = vmatprep.subr.bf16.mxu0 0
    %1944 = vmatpush1.bf16.xpose.msra.mxu0 0
    %1945 = vmatprep.subr.bf16.mxu0 0
    %1946 = vmatpush1.bf16.xpose.msra.mxu0 0
    %1947 = vmatprep.subr.bf16.mxu0 0
    %1948 = vmatpush1.bf16.xpose.msra.mxu0 0
    %1949 = vmatprep.subr.bf16.mxu0 0
    %1950 = vmatpush1.bf16.xpose.msra.mxu0 0
    %1951 = vmatprep.subr.bf16.mxu0 0
    %1952 = vmatpush1.bf16.xpose.msra.mxu0 0
    %1953 = vmatprep.subr.bf16.mxu0 0
    %1954 = vmatpush1.bf16.xpose.msra.mxu0 0
    %1955 = vmatprep.subr.bf16.mxu0 0
    %1956 = vmatpush1.bf16.xpose.msra.mxu0 0
    %1957 = vmatprep.subr.bf16.mxu0 0
    %1958 = vmatpush1.bf16.xpose.msra.mxu0 0
    %1959 = vmatprep.subr.bf16.mxu0 0
    %1960 = vmatpush1.bf16.xpose.msra.mxu0 0
    %1961 = vmatprep.subr.bf16.mxu0 0
    %1962 = vmatpush1.bf16.xpose.msra.mxu0 0
    %1963 = vmatprep.subr.bf16.mxu0 0
    %1964 = vmatpush1.bf16.xpose.msra.mxu0 0
    %1965 = vmatprep.subr.bf16.mxu0 0
    %1966 = vmatpush1.bf16.xpose.msra.mxu0 0
    %1967 = vmatprep.mubr.bf16.mxu0 0
    %1968 = vmatmul.mubr.bf16.gmra.mrb[0].mxu0 %v1930
    %v1969 = vpop.f32.mrb[0].mxu0
    %v1970 = vadd.f32 0.0, %v1969
    %v1971 = vpop.f32.mrb[0].mxu0
    %v1972 = vpop.f32.mrb[0].mxu0
    %v1973 = vadd.f32 0.0, %v1972
    %v1974 = vpop.f32.mrb[0].mxu0
    %1975 = vdwg.mxu0
    %v1976 = vmul.f32 %v1970, 0.35355338
    %v1977 = vmul.f32 %v1973, 0.35355338
    %v1978 = vadd.f32 %v1976, %v303
    %v1979 = vadd.f32 %v1977, %v303
    %v1980 = vsel %vm307, %v1978, -inf
    %1981 = vmax.xlane.f32.xlu0 %v1980
    %v1982 = vpop.xlane.xlu0 %1981
    %v1983 = vsel %vm307, %v1979, -inf
    %1984 = vmax.xlane.f32.xlu0 %v1983
    %v1985 = vpop.xlane.xlu0 %1984
    %v1986 = vsub.f32 %v1978, %v1982
    %v1987 = vsub.f32 %v1979, %v1985
    %v1988 = vmul.f32 %v1986, 1.442695
    %v1989 = vpow.pop %v1988
    %v1990 = vmul.f32 %v1987, 1.442695
    %v1991 = vpow.pop %v1990
    %v1992 = vsel %vm307, %v1989, 0.0
    %1993 = vadd.xlane.f32.xlu0 %v1992
    %v1994 = vpop.xlane.xlu0 %1993
    %v1995 = vsel %vm307, %v1991, 0.0
    %1996 = vadd.xlane.f32.xlu0 %v1995
    %v1997 = vpop.xlane.xlu0 %1996
    %v1998 = vrcp.pop %v1994
    %v1999 = vmul.f32 %v1989, %v1998
    %v2000 = vrcp.pop %v1997
    %v2001 = vmul.f32 %v1991, %v2000
    %v2002 = vpack.c.bf16 %v2001, %v1999
    %2003 = vrot.lane.b32.xlu0 %v1925, 64
    %v2004 = vpop.permute.xlu0 %2003
    %v2007 = vsel %vm307, %v2002, 0
    %2009 = vmatprep.subr.bf16.mxu0 0
    %2010 = vmatpush1.bf16.msra.mxu0 %v2004
    %2011 = vmatprep.subr.bf16.mxu0 0
    %2012 = vmatpush1.bf16.msra.mxu0 0
    %2013 = vmatprep.subr.bf16.mxu0 0
    %2014 = vmatpush1.bf16.msra.mxu0 0
    %2015 = vmatprep.subr.bf16.mxu0 0
    %2016 = vmatpush1.bf16.msra.mxu0 0
    %2017 = vmatprep.subr.bf16.mxu0 0
    %2018 = vmatpush1.bf16.msra.mxu0 0
    %2019 = vmatprep.subr.bf16.mxu0 0
    %2020 = vmatpush1.bf16.msra.mxu0 0
    %2021 = vmatprep.subr.bf16.mxu0 0
    %2022 = vmatpush1.bf16.msra.mxu0 0
    %2023 = vmatprep.subr.bf16.mxu0 0
    %2024 = vmatpush1.bf16.msra.mxu0 0
    %2025 = vmatprep.subr.bf16.mxu0 0
    %2026 = vmatpush1.bf16.msra.mxu0 0
    %2027 = vmatprep.subr.bf16.mxu0 0
    %2028 = vmatpush1.bf16.msra.mxu0 0
    %2029 = vmatprep.subr.bf16.mxu0 0
    %2030 = vmatpush1.bf16.msra.mxu0 0
    %2031 = vmatprep.subr.bf16.mxu0 0
    %2032 = vmatpush1.bf16.msra.mxu0 0
    %2033 = vmatprep.subr.bf16.mxu0 0
    %2034 = vmatpush1.bf16.msra.mxu0 0
    %2035 = vmatprep.subr.bf16.mxu0 0
    %2036 = vmatpush1.bf16.msra.mxu0 0
    %2037 = vmatprep.subr.bf16.mxu0 0
    %2038 = vmatpush1.bf16.msra.mxu0 0
    %2039 = vmatprep.subr.bf16.mxu0 0
    %2040 = vmatpush1.bf16.msra.mxu0 0
    %2041 = vmatprep.mubr.bf16.mxu0 0
    %2042 = vmatmul.mubr.bf16.gmra.mrb[0].mxu0 %v2007
    %v2043 = vpop.f32.mrb[0].mxu0
    %v2044 = vadd.f32 0.0, %v2043
    %v2045 = vpop.f32.mrb[0].mxu0
    %v2046 = vpop.f32.mrb[0].mxu0
    %v2047 = vadd.f32 0.0, %v2046
    %v2048 = vpop.f32.mrb[0].mxu0
    %2049 = vdwg.mxu0
    %2050 = vrot.lane.b32.xlu0 %v1925, 120
    %v2051 = vpop.permute.xlu0 %2050
    %2052 = vrot.lane.b32.xlu0 %v1925, 88
    %v2053 = vpop.permute.xlu0 %2052
    %v2055 = vsel %vm249, %v2051, 0
    %v2058 = vsel %vm249, %v2053, 0
    %2060 = vmatprep.subr.bf16.mxu0 0
    %2061 = vmatpush1.bf16.xpose.msra.mxu0 %v2058
    %2062 = vmatprep.subr.bf16.mxu0 0
    %2063 = vmatpush1.bf16.xpose.msra.mxu0 0
    %2064 = vmatprep.subr.bf16.mxu0 0
    %2065 = vmatpush1.bf16.xpose.msra.mxu0 0
    %2066 = vmatprep.subr.bf16.mxu0 0
    %2067 = vmatpush1.bf16.xpose.msra.mxu0 0
    %2068 = vmatprep.subr.bf16.mxu0 0
    %2069 = vmatpush1.bf16.xpose.msra.mxu0 0
    %2070 = vmatprep.subr.bf16.mxu0 0
    %2071 = vmatpush1.bf16.xpose.msra.mxu0 0
    %2072 = vmatprep.subr.bf16.mxu0 0
    %2073 = vmatpush1.bf16.xpose.msra.mxu0 0
    %2074 = vmatprep.subr.bf16.mxu0 0
    %2075 = vmatpush1.bf16.xpose.msra.mxu0 0
    %2076 = vmatprep.subr.bf16.mxu0 0
    %2077 = vmatpush1.bf16.xpose.msra.mxu0 0
    %2078 = vmatprep.subr.bf16.mxu0 0
    %2079 = vmatpush1.bf16.xpose.msra.mxu0 0
    %2080 = vmatprep.subr.bf16.mxu0 0
    %2081 = vmatpush1.bf16.xpose.msra.mxu0 0
    %2082 = vmatprep.subr.bf16.mxu0 0
    %2083 = vmatpush1.bf16.xpose.msra.mxu0 0
    %2084 = vmatprep.subr.bf16.mxu0 0
    %2085 = vmatpush1.bf16.xpose.msra.mxu0 0
    %2086 = vmatprep.subr.bf16.mxu0 0
    %2087 = vmatpush1.bf16.xpose.msra.mxu0 0
    %2088 = vmatprep.subr.bf16.mxu0 0
    %2089 = vmatpush1.bf16.xpose.msra.mxu0 0
    %2090 = vmatprep.subr.bf16.mxu0 0
    %2091 = vmatpush1.bf16.xpose.msra.mxu0 0
    %2092 = vmatprep.mubr.bf16.mxu0 0
    %2093 = vmatmul.mubr.bf16.gmra.mrb[0].mxu0 %v2055
    %v2094 = vpop.f32.mrb[0].mxu0
    %v2095 = vadd.f32 0.0, %v2094
    %v2096 = vpop.f32.mrb[0].mxu0
    %v2097 = vpop.f32.mrb[0].mxu0
    %v2098 = vadd.f32 0.0, %v2097
    %v2099 = vpop.f32.mrb[0].mxu0
    %2100 = vdwg.mxu0
    %v2101 = vmul.f32 %v2095, 0.35355338
    %v2102 = vmul.f32 %v2098, 0.35355338
    %v2103 = vadd.f32 %v2101, %v303
    %v2104 = vadd.f32 %v2102, %v303
    %v2105 = vsel %vm307, %v2103, -inf
    %2106 = vmax.xlane.f32.xlu0 %v2105
    %v2107 = vpop.xlane.xlu0 %2106
    %v2108 = vsel %vm307, %v2104, -inf
    %2109 = vmax.xlane.f32.xlu0 %v2108
    %v2110 = vpop.xlane.xlu0 %2109
    %v2111 = vsub.f32 %v2103, %v2107
    %v2112 = vsub.f32 %v2104, %v2110
    %v2113 = vmul.f32 %v2111, 1.442695
    %v2114 = vpow.pop %v2113
    %v2115 = vmul.f32 %v2112, 1.442695
    %v2116 = vpow.pop %v2115
    %v2117 = vsel %vm307, %v2114, 0.0
    %2118 = vadd.xlane.f32.xlu0 %v2117
    %v2119 = vpop.xlane.xlu0 %2118
    %v2120 = vsel %vm307, %v2116, 0.0
    %2121 = vadd.xlane.f32.xlu0 %v2120
    %v2122 = vpop.xlane.xlu0 %2121
    %v2123 = vrcp.pop %v2119
    %v2124 = vmul.f32 %v2114, %v2123
    %v2125 = vrcp.pop %v2122
    %v2126 = vmul.f32 %v2116, %v2125
    %v2127 = vpack.c.bf16 %v2126, %v2124
    %2128 = vrot.lane.b32.xlu0 %v1925, 56
    %v2129 = vpop.permute.xlu0 %2128
    %v2132 = vsel %vm307, %v2127, 0
    %2134 = vmatprep.subr.bf16.mxu0 0
    %2135 = vmatpush1.bf16.msra.mxu0 %v2129
    %2136 = vmatprep.subr.bf16.mxu0 0
    %2137 = vmatpush1.bf16.msra.mxu0 0
    %2138 = vmatprep.subr.bf16.mxu0 0
    %2139 = vmatpush1.bf16.msra.mxu0 0
    %2140 = vmatprep.subr.bf16.mxu0 0
    %2141 = vmatpush1.bf16.msra.mxu0 0
    %2142 = vmatprep.subr.bf16.mxu0 0
    %2143 = vmatpush1.bf16.msra.mxu0 0
    %2144 = vmatprep.subr.bf16.mxu0 0
    %2145 = vmatpush1.bf16.msra.mxu0 0
    %2146 = vmatprep.subr.bf16.mxu0 0
    %2147 = vmatpush1.bf16.msra.mxu0 0
    %2148 = vmatprep.subr.bf16.mxu0 0
    %2149 = vmatpush1.bf16.msra.mxu0 0
    %2150 = vmatprep.subr.bf16.mxu0 0
    %2151 = vmatpush1.bf16.msra.mxu0 0
    %2152 = vmatprep.subr.bf16.mxu0 0
    %2153 = vmatpush1.bf16.msra.mxu0 0
    %2154 = vmatprep.subr.bf16.mxu0 0
    %2155 = vmatpush1.bf16.msra.mxu0 0
    %2156 = vmatprep.subr.bf16.mxu0 0
    %2157 = vmatpush1.bf16.msra.mxu0 0
    %2158 = vmatprep.subr.bf16.mxu0 0
    %2159 = vmatpush1.bf16.msra.mxu0 0
    %2160 = vmatprep.subr.bf16.mxu0 0
    %2161 = vmatpush1.bf16.msra.mxu0 0
    %2162 = vmatprep.subr.bf16.mxu0 0
    %2163 = vmatpush1.bf16.msra.mxu0 0
    %2164 = vmatprep.subr.bf16.mxu0 0
    %2165 = vmatpush1.bf16.msra.mxu0 0
    %2166 = vmatprep.mubr.bf16.mxu0 0
    %2167 = vmatmul.mubr.bf16.gmra.mrb[0].mxu0 %v2132
    %v2168 = vpop.f32.mrb[0].mxu0
    %v2169 = vadd.f32 0.0, %v2168
    %v2170 = vpop.f32.mrb[0].mxu0
    %v2171 = vpop.f32.mrb[0].mxu0
    %v2172 = vadd.f32 0.0, %v2171
    %v2173 = vpop.f32.mrb[0].mxu0
    %2174 = vdwg.mxu0
    %2175 = vrot.lane.b32.xlu0 %v1925, 112
    %v2176 = vpop.permute.xlu0 %2175
    %2177 = vrot.lane.b32.xlu0 %v1925, 80
    %v2178 = vpop.permute.xlu0 %2177
    %v2180 = vsel %vm249, %v2176, 0
    %v2183 = vsel %vm249, %v2178, 0
    %2185 = vmatprep.subr.bf16.mxu0 0
    %2186 = vmatpush1.bf16.xpose.msra.mxu0 %v2183
    %2187 = vmatprep.subr.bf16.mxu0 0
    %2188 = vmatpush1.bf16.xpose.msra.mxu0 0
    %2189 = vmatprep.subr.bf16.mxu0 0
    %2190 = vmatpush1.bf16.xpose.msra.mxu0 0
    %2191 = vmatprep.subr.bf16.mxu0 0
    %2192 = vmatpush1.bf16.xpose.msra.mxu0 0
    %2193 = vmatprep.subr.bf16.mxu0 0
    %2194 = vmatpush1.bf16.xpose.msra.mxu0 0
    %2195 = vmatprep.subr.bf16.mxu0 0
    %2196 = vmatpush1.bf16.xpose.msra.mxu0 0
    %2197 = vmatprep.subr.bf16.mxu0 0
    %2198 = vmatpush1.bf16.xpose.msra.mxu0 0
    %2199 = vmatprep.subr.bf16.mxu0 0
    %2200 = vmatpush1.bf16.xpose.msra.mxu0 0
    %2201 = vmatprep.subr.bf16.mxu0 0
    %2202 = vmatpush1.bf16.xpose.msra.mxu0 0
    %2203 = vmatprep.subr.bf16.mxu0 0
    %2204 = vmatpush1.bf16.xpose.msra.mxu0 0
    %2205 = vmatprep.subr.bf16.mxu0 0
    %2206 = vmatpush1.bf16.xpose.msra.mxu0 0
    %2207 = vmatprep.subr.bf16.mxu0 0
    %2208 = vmatpush1.bf16.xpose.msra.mxu0 0
    %2209 = vmatprep.subr.bf16.mxu0 0
    %2210 = vmatpush1.bf16.xpose.msra.mxu0 0
    %2211 = vmatprep.subr.bf16.mxu0 0
    %2212 = vmatpush1.bf16.xpose.msra.mxu0 0
    %2213 = vmatprep.subr.bf16.mxu0 0
    %2214 = vmatpush1.bf16.xpose.msra.mxu0 0
    %2215 = vmatprep.subr.bf16.mxu0 0
    %2216 = vmatpush1.bf16.xpose.msra.mxu0 0
    %2217 = vmatprep.mubr.bf16.mxu0 0
    %2218 = vmatmul.mubr.bf16.gmra.mrb[0].mxu0 %v2180
    %v2219 = vpop.f32.mrb[0].mxu0
    %v2220 = vadd.f32 0.0, %v2219
    %v2221 = vpop.f32.mrb[0].mxu0
    %v2222 = vpop.f32.mrb[0].mxu0
    %v2223 = vadd.f32 0.0, %v2222
    %v2224 = vpop.f32.mrb[0].mxu0
    %2225 = vdwg.mxu0
    %v2226 = vmul.f32 %v2220, 0.35355338
    %v2227 = vmul.f32 %v2223, 0.35355338
    %v2228 = vadd.f32 %v2226, %v303
    %v2229 = vadd.f32 %v2227, %v303
    %v2230 = vsel %vm307, %v2228, -inf
    %2231 = vmax.xlane.f32.xlu0 %v2230
    %v2232 = vpop.xlane.xlu0 %2231
    %v2233 = vsel %vm307, %v2229, -inf
    %2234 = vmax.xlane.f32.xlu0 %v2233
    %v2235 = vpop.xlane.xlu0 %2234
    %v2236 = vsub.f32 %v2228, %v2232
    %v2237 = vsub.f32 %v2229, %v2235
    %v2238 = vmul.f32 %v2236, 1.442695
    %v2239 = vpow.pop %v2238
    %v2240 = vmul.f32 %v2237, 1.442695
    %v2241 = vpow.pop %v2240
    %v2242 = vsel %vm307, %v2239, 0.0
    %2243 = vadd.xlane.f32.xlu0 %v2242
    %v2244 = vpop.xlane.xlu0 %2243
    %v2245 = vsel %vm307, %v2241, 0.0
    %2246 = vadd.xlane.f32.xlu0 %v2245
    %v2247 = vpop.xlane.xlu0 %2246
    %v2248 = vrcp.pop %v2244
    %v2249 = vmul.f32 %v2239, %v2248
    %v2250 = vrcp.pop %v2247
    %v2251 = vmul.f32 %v2241, %v2250
    %v2252 = vpack.c.bf16 %v2251, %v2249
    %2253 = vrot.lane.b32.xlu0 %v1925, 48
    %v2254 = vpop.permute.xlu0 %2253
    %v2257 = vsel %vm307, %v2252, 0
    %2259 = vmatprep.subr.bf16.mxu0 0
    %2260 = vmatpush1.bf16.msra.mxu0 %v2254
    %2261 = vmatprep.subr.bf16.mxu0 0
    %2262 = vmatpush1.bf16.msra.mxu0 0
    %2263 = vmatprep.subr.bf16.mxu0 0
    %2264 = vmatpush1.bf16.msra.mxu0 0
    %2265 = vmatprep.subr.bf16.mxu0 0
    %2266 = vmatpush1.bf16.msra.mxu0 0
    %2267 = vmatprep.subr.bf16.mxu0 0
    %2268 = vmatpush1.bf16.msra.mxu0 0
    %2269 = vmatprep.subr.bf16.mxu0 0
    %2270 = vmatpush1.bf16.msra.mxu0 0
    %2271 = vmatprep.subr.bf16.mxu0 0
    %2272 = vmatpush1.bf16.msra.mxu0 0
    %2273 = vmatprep.subr.bf16.mxu0 0
    %2274 = vmatpush1.bf16.msra.mxu0 0
    %2275 = vmatprep.subr.bf16.mxu0 0
    %2276 = vmatpush1.bf16.msra.mxu0 0
    %2277 = vmatprep.subr.bf16.mxu0 0
    %2278 = vmatpush1.bf16.msra.mxu0 0
    %2279 = vmatprep.subr.bf16.mxu0 0
    %2280 = vmatpush1.bf16.msra.mxu0 0
    %2281 = vmatprep.subr.bf16.mxu0 0
    %2282 = vmatpush1.bf16.msra.mxu0 0
    %2283 = vmatprep.subr.bf16.mxu0 0
    %2284 = vmatpush1.bf16.msra.mxu0 0
    %2285 = vmatprep.subr.bf16.mxu0 0
    %2286 = vmatpush1.bf16.msra.mxu0 0
    %2287 = vmatprep.subr.bf16.mxu0 0
    %2288 = vmatpush1.bf16.msra.mxu0 0
    %2289 = vmatprep.subr.bf16.mxu0 0
    %2290 = vmatpush1.bf16.msra.mxu0 0
    %2291 = vmatprep.mubr.bf16.mxu0 0
    %2292 = vmatmul.mubr.bf16.gmra.mrb[0].mxu0 %v2257
    %v2293 = vpop.f32.mrb[0].mxu0
    %v2294 = vadd.f32 0.0, %v2293
    %v2295 = vpop.f32.mrb[0].mxu0
    %v2296 = vpop.f32.mrb[0].mxu0
    %v2297 = vadd.f32 0.0, %v2296
    %v2298 = vpop.f32.mrb[0].mxu0
    %2299 = vdwg.mxu0
    %2300 = vrot.lane.b32.xlu0 %v1925, 104
    %v2301 = vpop.permute.xlu0 %2300
    %2302 = vrot.lane.b32.xlu0 %v1925, 72
    %v2303 = vpop.permute.xlu0 %2302
    %v2305 = vsel %vm249, %v2301, 0
    %v2308 = vsel %vm249, %v2303, 0
    %2310 = vmatprep.subr.bf16.mxu0 0
    %2311 = vmatpush1.bf16.xpose.msra.mxu0 %v2308
    %2312 = vmatprep.subr.bf16.mxu0 0
    %2313 = vmatpush1.bf16.xpose.msra.mxu0 0
    %2314 = vmatprep.subr.bf16.mxu0 0
    %2315 = vmatpush1.bf16.xpose.msra.mxu0 0
    %2316 = vmatprep.subr.bf16.mxu0 0
    %2317 = vmatpush1.bf16.xpose.msra.mxu0 0
    %2318 = vmatprep.subr.bf16.mxu0 0
    %2319 = vmatpush1.bf16.xpose.msra.mxu0 0
    %2320 = vmatprep.subr.bf16.mxu0 0
    %2321 = vmatpush1.bf16.xpose.msra.mxu0 0
    %2322 = vmatprep.subr.bf16.mxu0 0
    %2323 = vmatpush1.bf16.xpose.msra.mxu0 0
    %2324 = vmatprep.subr.bf16.mxu0 0
    %2325 = vmatpush1.bf16.xpose.msra.mxu0 0
    %2326 = vmatprep.subr.bf16.mxu0 0
    %2327 = vmatpush1.bf16.xpose.msra.mxu0 0
    %2328 = vmatprep.subr.bf16.mxu0 0
    %2329 = vmatpush1.bf16.xpose.msra.mxu0 0
    %2330 = vmatprep.subr.bf16.mxu0 0
    %2331 = vmatpush1.bf16.xpose.msra.mxu0 0
    %2332 = vmatprep.subr.bf16.mxu0 0
    %2333 = vmatpush1.bf16.xpose.msra.mxu0 0
    %2334 = vmatprep.subr.bf16.mxu0 0
    %2335 = vmatpush1.bf16.xpose.msra.mxu0 0
    %2336 = vmatprep.subr.bf16.mxu0 0
    %2337 = vmatpush1.bf16.xpose.msra.mxu0 0
    %2338 = vmatprep.subr.bf16.mxu0 0
    %2339 = vmatpush1.bf16.xpose.msra.mxu0 0
    %2340 = vmatprep.subr.bf16.mxu0 0
    %2341 = vmatpush1.bf16.xpose.msra.mxu0 0
    %2342 = vmatprep.mubr.bf16.mxu0 0
    %2343 = vmatmul.mubr.bf16.gmra.mrb[0].mxu0 %v2305
    %v2344 = vpop.f32.mrb[0].mxu0
    %v2345 = vadd.f32 0.0, %v2344
    %v2346 = vpop.f32.mrb[0].mxu0
    %v2347 = vpop.f32.mrb[0].mxu0
    %v2348 = vadd.f32 0.0, %v2347
    %v2349 = vpop.f32.mrb[0].mxu0
    %2350 = vdwg.mxu0
    %v2351 = vmul.f32 %v2345, 0.35355338
    %v2352 = vmul.f32 %v2348, 0.35355338
    %v2353 = vadd.f32 %v2351, %v303
    %v2354 = vadd.f32 %v2352, %v303
    %v2355 = vsel %vm307, %v2353, -inf
    %2356 = vmax.xlane.f32.xlu0 %v2355
    %v2357 = vpop.xlane.xlu0 %2356
    %v2358 = vsel %vm307, %v2354, -inf
    %2359 = vmax.xlane.f32.xlu0 %v2358
    %v2360 = vpop.xlane.xlu0 %2359
    %v2361 = vsub.f32 %v2353, %v2357
    %v2362 = vsub.f32 %v2354, %v2360
    %v2363 = vmul.f32 %v2361, 1.442695
    %v2364 = vpow.pop %v2363
    %v2365 = vmul.f32 %v2362, 1.442695
    %v2366 = vpow.pop %v2365
    %v2367 = vsel %vm307, %v2364, 0.0
    %2368 = vadd.xlane.f32.xlu0 %v2367
    %v2369 = vpop.xlane.xlu0 %2368
    %v2370 = vsel %vm307, %v2366, 0.0
    %2371 = vadd.xlane.f32.xlu0 %v2370
    %v2372 = vpop.xlane.xlu0 %2371
    %v2373 = vrcp.pop %v2369
    %v2374 = vmul.f32 %v2364, %v2373
    %v2375 = vrcp.pop %v2372
    %v2376 = vmul.f32 %v2366, %v2375
    %v2377 = vpack.c.bf16 %v2376, %v2374
    %2378 = vrot.lane.b32.xlu0 %v1925, 40
    %v2379 = vpop.permute.xlu0 %2378
    %v2382 = vsel %vm307, %v2377, 0
    %2384 = vmatprep.subr.bf16.mxu0 0
    %2385 = vmatpush1.bf16.msra.mxu0 %v2379
    %2386 = vmatprep.subr.bf16.mxu0 0
    %2387 = vmatpush1.bf16.msra.mxu0 0
    %2388 = vmatprep.subr.bf16.mxu0 0
    %2389 = vmatpush1.bf16.msra.mxu0 0
    %2390 = vmatprep.subr.bf16.mxu0 0
    %2391 = vmatpush1.bf16.msra.mxu0 0
    %2392 = vmatprep.subr.bf16.mxu0 0
    %2393 = vmatpush1.bf16.msra.mxu0 0
    %2394 = vmatprep.subr.bf16.mxu0 0
    %2395 = vmatpush1.bf16.msra.mxu0 0
    %2396 = vmatprep.subr.bf16.mxu0 0
    %2397 = vmatpush1.bf16.msra.mxu0 0
    %2398 = vmatprep.subr.bf16.mxu0 0
    %2399 = vmatpush1.bf16.msra.mxu0 0
    %2400 = vmatprep.subr.bf16.mxu0 0
    %2401 = vmatpush1.bf16.msra.mxu0 0
    %2402 = vmatprep.subr.bf16.mxu0 0
    %2403 = vmatpush1.bf16.msra.mxu0 0
    %2404 = vmatprep.subr.bf16.mxu0 0
    %2405 = vmatpush1.bf16.msra.mxu0 0
    %2406 = vmatprep.subr.bf16.mxu0 0
    %2407 = vmatpush1.bf16.msra.mxu0 0
    %2408 = vmatprep.subr.bf16.mxu0 0
    %2409 = vmatpush1.bf16.msra.mxu0 0
    %2410 = vmatprep.subr.bf16.mxu0 0
    %2411 = vmatpush1.bf16.msra.mxu0 0
    %2412 = vmatprep.subr.bf16.mxu0 0
    %2413 = vmatpush1.bf16.msra.mxu0 0
    %2414 = vmatprep.subr.bf16.mxu0 0
    %2415 = vmatpush1.bf16.msra.mxu0 0
    %2416 = vmatprep.mubr.bf16.mxu0 0
    %2417 = vmatmul.mubr.bf16.gmra.mrb[0].mxu0 %v2382
    %v2418 = vpop.f32.mrb[0].mxu0
    %v2419 = vadd.f32 0.0, %v2418
    %v2420 = vpop.f32.mrb[0].mxu0
    %v2421 = vpop.f32.mrb[0].mxu0
    %v2422 = vadd.f32 0.0, %v2421
    %v2423 = vpop.f32.mrb[0].mxu0
    %2424 = vdwg.mxu0
    %2427 = vrot.lane.b32.xlu0 %v2169, 8
    %v2428 = vpop.permute.xlu0 %2427
    %2429 = vrot.lane.b32.xlu0 %v2172, 8
    %v2430 = vpop.permute.xlu0 %2429
    %2435 = vrot.lane.b32.xlu0 %v2294, 16
    %v2436 = vpop.permute.xlu0 %2435
    %2437 = vrot.lane.b32.xlu0 %v2297, 16
    %v2438 = vpop.permute.xlu0 %2437
    %2443 = vrot.lane.b32.xlu0 %v2419, 24
    %v2444 = vpop.permute.xlu0 %2443
    %2445 = vrot.lane.b32.xlu0 %v2422, 24
    %v2446 = vpop.permute.xlu0 %2445
    %v2449 = vsel %vm249, %v2044, %v2428
    %v2450 = vsel %vm249, %v2047, %v2430
    %v2451 = vsel %vm307, %v2449, %v2436
    %v2452 = vsel %vm307, %v2450, %v2438
    %v2453 = vsel %vm781, %v2451, %v2444
    %v2454 = vsel %vm781, %v2452, %v2446
    %v2455 = vpack.c.bf16 %v1922, %v1919
    %2457 = vrot.lane.b32.xlu0 %v2455, 96
    %v2458 = vpop.permute.xlu0 %2457
    %v2460 = vsel %vm249, %v2455, 0
    %v2463 = vsel %vm249, %v2458, 0
    %2465 = vmatprep.subr.bf16.mxu0 0
    %2466 = vmatpush1.bf16.xpose.msra.mxu0 %v2463
    %2467 = vmatprep.subr.bf16.mxu0 0
    %2468 = vmatpush1.bf16.xpose.msra.mxu0 0
    %2469 = vmatprep.subr.bf16.mxu0 0
    %2470 = vmatpush1.bf16.xpose.msra.mxu0 0
    %2471 = vmatprep.subr.bf16.mxu0 0
    %2472 = vmatpush1.bf16.xpose.msra.mxu0 0
    %2473 = vmatprep.subr.bf16.mxu0 0
    %2474 = vmatpush1.bf16.xpose.msra.mxu0 0
    %2475 = vmatprep.subr.bf16.mxu0 0
    %2476 = vmatpush1.bf16.xpose.msra.mxu0 0
    %2477 = vmatprep.subr.bf16.mxu0 0
    %2478 = vmatpush1.bf16.xpose.msra.mxu0 0
    %2479 = vmatprep.subr.bf16.mxu0 0
    %2480 = vmatpush1.bf16.xpose.msra.mxu0 0
    %2481 = vmatprep.subr.bf16.mxu0 0
    %2482 = vmatpush1.bf16.xpose.msra.mxu0 0
    %2483 = vmatprep.subr.bf16.mxu0 0
    %2484 = vmatpush1.bf16.xpose.msra.mxu0 0
    %2485 = vmatprep.subr.bf16.mxu0 0
    %2486 = vmatpush1.bf16.xpose.msra.mxu0 0
    %2487 = vmatprep.subr.bf16.mxu0 0
    %2488 = vmatpush1.bf16.xpose.msra.mxu0 0
    %2489 = vmatprep.subr.bf16.mxu0 0
    %2490 = vmatpush1.bf16.xpose.msra.mxu0 0
    %2491 = vmatprep.subr.bf16.mxu0 0
    %2492 = vmatpush1.bf16.xpose.msra.mxu0 0
    %2493 = vmatprep.subr.bf16.mxu0 0
    %2494 = vmatpush1.bf16.xpose.msra.mxu0 0
    %2495 = vmatprep.subr.bf16.mxu0 0
    %2496 = vmatpush1.bf16.xpose.msra.mxu0 0
    %2497 = vmatprep.mubr.bf16.mxu0 0
    %2498 = vmatmul.mubr.bf16.gmra.mrb[0].mxu0 %v2460
    %v2499 = vpop.f32.mrb[0].mxu0
    %v2500 = vadd.f32 0.0, %v2499
    %v2501 = vpop.f32.mrb[0].mxu0
    %v2502 = vpop.f32.mrb[0].mxu0
    %v2503 = vadd.f32 0.0, %v2502
    %v2504 = vpop.f32.mrb[0].mxu0
    %2505 = vdwg.mxu0
    %v2506 = vmul.f32 %v2500, 0.35355338
    %v2507 = vmul.f32 %v2503, 0.35355338
    %v2508 = vadd.f32 %v2506, %v843
    %v2509 = vadd.f32 %v2507, %v843
    %v2510 = vsel %vm307, %v2508, -inf
    %2511 = vmax.xlane.f32.xlu0 %v2510
    %v2512 = vpop.xlane.xlu0 %2511
    %v2513 = vsel %vm307, %v2509, -inf
    %2514 = vmax.xlane.f32.xlu0 %v2513
    %v2515 = vpop.xlane.xlu0 %2514
    %v2516 = vsub.f32 %v2508, %v2512
    %v2517 = vsub.f32 %v2509, %v2515
    %v2518 = vmul.f32 %v2516, 1.442695
    %v2519 = vpow.pop %v2518
    %v2520 = vmul.f32 %v2517, 1.442695
    %v2521 = vpow.pop %v2520
    %v2522 = vsel %vm307, %v2519, 0.0
    %2523 = vadd.xlane.f32.xlu0 %v2522
    %v2524 = vpop.xlane.xlu0 %2523
    %v2525 = vsel %vm307, %v2521, 0.0
    %2526 = vadd.xlane.f32.xlu0 %v2525
    %v2527 = vpop.xlane.xlu0 %2526
    %v2528 = vrcp.pop %v2524
    %v2529 = vmul.f32 %v2519, %v2528
    %v2530 = vrcp.pop %v2527
    %v2531 = vmul.f32 %v2521, %v2530
    %v2532 = vpack.c.bf16 %v2531, %v2529
    %2533 = vrot.lane.b32.xlu0 %v2455, 64
    %v2534 = vpop.permute.xlu0 %2533
    %v2537 = vsel %vm307, %v2532, 0
    %2539 = vmatprep.subr.bf16.mxu0 0
    %2540 = vmatpush1.bf16.msra.mxu0 %v2534
    %2541 = vmatprep.subr.bf16.mxu0 0
    %2542 = vmatpush1.bf16.msra.mxu0 0
    %2543 = vmatprep.subr.bf16.mxu0 0
    %2544 = vmatpush1.bf16.msra.mxu0 0
    %2545 = vmatprep.subr.bf16.mxu0 0
    %2546 = vmatpush1.bf16.msra.mxu0 0
    %2547 = vmatprep.subr.bf16.mxu0 0
    %2548 = vmatpush1.bf16.msra.mxu0 0
    %2549 = vmatprep.subr.bf16.mxu0 0
    %2550 = vmatpush1.bf16.msra.mxu0 0
    %2551 = vmatprep.subr.bf16.mxu0 0
    %2552 = vmatpush1.bf16.msra.mxu0 0
    %2553 = vmatprep.subr.bf16.mxu0 0
    %2554 = vmatpush1.bf16.msra.mxu0 0
    %2555 = vmatprep.subr.bf16.mxu0 0
    %2556 = vmatpush1.bf16.msra.mxu0 0
    %2557 = vmatprep.subr.bf16.mxu0 0
    %2558 = vmatpush1.bf16.msra.mxu0 0
    %2559 = vmatprep.subr.bf16.mxu0 0
    %2560 = vmatpush1.bf16.msra.mxu0 0
    %2561 = vmatprep.subr.bf16.mxu0 0
    %2562 = vmatpush1.bf16.msra.mxu0 0
    %2563 = vmatprep.subr.bf16.mxu0 0
    %2564 = vmatpush1.bf16.msra.mxu0 0
    %2565 = vmatprep.subr.bf16.mxu0 0
    %2566 = vmatpush1.bf16.msra.mxu0 0
    %2567 = vmatprep.subr.bf16.mxu0 0
    %2568 = vmatpush1.bf16.msra.mxu0 0
    %2569 = vmatprep.subr.bf16.mxu0 0
    %2570 = vmatpush1.bf16.msra.mxu0 0
    %2571 = vmatprep.mubr.bf16.mxu0 0
    %2572 = vmatmul.mubr.bf16.gmra.mrb[0].mxu0 %v2537
    %v2573 = vpop.f32.mrb[0].mxu0
    %v2574 = vadd.f32 0.0, %v2573
    %v2575 = vpop.f32.mrb[0].mxu0
    %v2576 = vpop.f32.mrb[0].mxu0
    %v2577 = vadd.f32 0.0, %v2576
    %v2578 = vpop.f32.mrb[0].mxu0
    %2579 = vdwg.mxu0
    %2580 = vrot.lane.b32.xlu0 %v2455, 120
    %v2581 = vpop.permute.xlu0 %2580
    %2582 = vrot.lane.b32.xlu0 %v2455, 88
    %v2583 = vpop.permute.xlu0 %2582
    %v2585 = vsel %vm249, %v2581, 0
    %v2588 = vsel %vm249, %v2583, 0
    %2590 = vmatprep.subr.bf16.mxu0 0
    %2591 = vmatpush1.bf16.xpose.msra.mxu0 %v2588
    %2592 = vmatprep.subr.bf16.mxu0 0
    %2593 = vmatpush1.bf16.xpose.msra.mxu0 0
    %2594 = vmatprep.subr.bf16.mxu0 0
    %2595 = vmatpush1.bf16.xpose.msra.mxu0 0
    %2596 = vmatprep.subr.bf16.mxu0 0
    %2597 = vmatpush1.bf16.xpose.msra.mxu0 0
    %2598 = vmatprep.subr.bf16.mxu0 0
    %2599 = vmatpush1.bf16.xpose.msra.mxu0 0
    %2600 = vmatprep.subr.bf16.mxu0 0
    %2601 = vmatpush1.bf16.xpose.msra.mxu0 0
    %2602 = vmatprep.subr.bf16.mxu0 0
    %2603 = vmatpush1.bf16.xpose.msra.mxu0 0
    %2604 = vmatprep.subr.bf16.mxu0 0
    %2605 = vmatpush1.bf16.xpose.msra.mxu0 0
    %2606 = vmatprep.subr.bf16.mxu0 0
    %2607 = vmatpush1.bf16.xpose.msra.mxu0 0
    %2608 = vmatprep.subr.bf16.mxu0 0
    %2609 = vmatpush1.bf16.xpose.msra.mxu0 0
    %2610 = vmatprep.subr.bf16.mxu0 0
    %2611 = vmatpush1.bf16.xpose.msra.mxu0 0
    %2612 = vmatprep.subr.bf16.mxu0 0
    %2613 = vmatpush1.bf16.xpose.msra.mxu0 0
    %2614 = vmatprep.subr.bf16.mxu0 0
    %2615 = vmatpush1.bf16.xpose.msra.mxu0 0
    %2616 = vmatprep.subr.bf16.mxu0 0
    %2617 = vmatpush1.bf16.xpose.msra.mxu0 0
    %2618 = vmatprep.subr.bf16.mxu0 0
    %2619 = vmatpush1.bf16.xpose.msra.mxu0 0
    %2620 = vmatprep.subr.bf16.mxu0 0
    %2621 = vmatpush1.bf16.xpose.msra.mxu0 0
    %2622 = vmatprep.mubr.bf16.mxu0 0
    %2623 = vmatmul.mubr.bf16.gmra.mrb[0].mxu0 %v2585
    %v2624 = vpop.f32.mrb[0].mxu0
    %v2625 = vadd.f32 0.0, %v2624
    %v2626 = vpop.f32.mrb[0].mxu0
    %v2627 = vpop.f32.mrb[0].mxu0
    %v2628 = vadd.f32 0.0, %v2627
    %v2629 = vpop.f32.mrb[0].mxu0
    %2630 = vdwg.mxu0
    %v2631 = vmul.f32 %v2625, 0.35355338
    %v2632 = vmul.f32 %v2628, 0.35355338
    %v2633 = vadd.f32 %v2631, %v843
    %v2634 = vadd.f32 %v2632, %v843
    %v2635 = vsel %vm307, %v2633, -inf
    %2636 = vmax.xlane.f32.xlu0 %v2635
    %v2637 = vpop.xlane.xlu0 %2636
    %v2638 = vsel %vm307, %v2634, -inf
    %2639 = vmax.xlane.f32.xlu0 %v2638
    %v2640 = vpop.xlane.xlu0 %2639
    %v2641 = vsub.f32 %v2633, %v2637
    %v2642 = vsub.f32 %v2634, %v2640
    %v2643 = vmul.f32 %v2641, 1.442695
    %v2644 = vpow.pop %v2643
    %v2645 = vmul.f32 %v2642, 1.442695
    %v2646 = vpow.pop %v2645
    %v2647 = vsel %vm307, %v2644, 0.0
    %2648 = vadd.xlane.f32.xlu0 %v2647
    %v2649 = vpop.xlane.xlu0 %2648
    %v2650 = vsel %vm307, %v2646, 0.0
    %2651 = vadd.xlane.f32.xlu0 %v2650
    %v2652 = vpop.xlane.xlu0 %2651
    %v2653 = vrcp.pop %v2649
    %v2654 = vmul.f32 %v2644, %v2653
    %v2655 = vrcp.pop %v2652
    %v2656 = vmul.f32 %v2646, %v2655
    %v2657 = vpack.c.bf16 %v2656, %v2654
    %2658 = vrot.lane.b32.xlu0 %v2455, 56
    %v2659 = vpop.permute.xlu0 %2658
    %v2662 = vsel %vm307, %v2657, 0
    %2664 = vmatprep.subr.bf16.mxu0 0
    %2665 = vmatpush1.bf16.msra.mxu0 %v2659
    %2666 = vmatprep.subr.bf16.mxu0 0
    %2667 = vmatpush1.bf16.msra.mxu0 0
    %2668 = vmatprep.subr.bf16.mxu0 0
    %2669 = vmatpush1.bf16.msra.mxu0 0
    %2670 = vmatprep.subr.bf16.mxu0 0
    %2671 = vmatpush1.bf16.msra.mxu0 0
    %2672 = vmatprep.subr.bf16.mxu0 0
    %2673 = vmatpush1.bf16.msra.mxu0 0
    %2674 = vmatprep.subr.bf16.mxu0 0
    %2675 = vmatpush1.bf16.msra.mxu0 0
    %2676 = vmatprep.subr.bf16.mxu0 0
    %2677 = vmatpush1.bf16.msra.mxu0 0
    %2678 = vmatprep.subr.bf16.mxu0 0
    %2679 = vmatpush1.bf16.msra.mxu0 0
    %2680 = vmatprep.subr.bf16.mxu0 0
    %2681 = vmatpush1.bf16.msra.mxu0 0
    %2682 = vmatprep.subr.bf16.mxu0 0
    %2683 = vmatpush1.bf16.msra.mxu0 0
    %2684 = vmatprep.subr.bf16.mxu0 0
    %2685 = vmatpush1.bf16.msra.mxu0 0
    %2686 = vmatprep.subr.bf16.mxu0 0
    %2687 = vmatpush1.bf16.msra.mxu0 0
    %2688 = vmatprep.subr.bf16.mxu0 0
    %2689 = vmatpush1.bf16.msra.mxu0 0
    %2690 = vmatprep.subr.bf16.mxu0 0
    %2691 = vmatpush1.bf16.msra.mxu0 0
    %2692 = vmatprep.subr.bf16.mxu0 0
    %2693 = vmatpush1.bf16.msra.mxu0 0
    %2694 = vmatprep.subr.bf16.mxu0 0
    %2695 = vmatpush1.bf16.msra.mxu0 0
    %2696 = vmatprep.mubr.bf16.mxu0 0
    %2697 = vmatmul.mubr.bf16.gmra.mrb[0].mxu0 %v2662
    %v2698 = vpop.f32.mrb[0].mxu0
    %v2699 = vadd.f32 0.0, %v2698
    %v2700 = vpop.f32.mrb[0].mxu0
    %v2701 = vpop.f32.mrb[0].mxu0
    %v2702 = vadd.f32 0.0, %v2701
    %v2703 = vpop.f32.mrb[0].mxu0
    %2704 = vdwg.mxu0
    %2705 = vrot.lane.b32.xlu0 %v2455, 112
    %v2706 = vpop.permute.xlu0 %2705
    %2707 = vrot.lane.b32.xlu0 %v2455, 80
    %v2708 = vpop.permute.xlu0 %2707
    %v2710 = vsel %vm249, %v2706, 0
    %v2713 = vsel %vm249, %v2708, 0
    %2715 = vmatprep.subr.bf16.mxu0 0
    %2716 = vmatpush1.bf16.xpose.msra.mxu0 %v2713
    %2717 = vmatprep.subr.bf16.mxu0 0
    %2718 = vmatpush1.bf16.xpose.msra.mxu0 0
    %2719 = vmatprep.subr.bf16.mxu0 0
    %2720 = vmatpush1.bf16.xpose.msra.mxu0 0
    %2721 = vmatprep.subr.bf16.mxu0 0
    %2722 = vmatpush1.bf16.xpose.msra.mxu0 0
    %2723 = vmatprep.subr.bf16.mxu0 0
    %2724 = vmatpush1.bf16.xpose.msra.mxu0 0
    %2725 = vmatprep.subr.bf16.mxu0 0
    %2726 = vmatpush1.bf16.xpose.msra.mxu0 0
    %2727 = vmatprep.subr.bf16.mxu0 0
    %2728 = vmatpush1.bf16.xpose.msra.mxu0 0
    %2729 = vmatprep.subr.bf16.mxu0 0
    %2730 = vmatpush1.bf16.xpose.msra.mxu0 0
    %2731 = vmatprep.subr.bf16.mxu0 0
    %2732 = vmatpush1.bf16.xpose.msra.mxu0 0
    %2733 = vmatprep.subr.bf16.mxu0 0
    %2734 = vmatpush1.bf16.xpose.msra.mxu0 0
    %2735 = vmatprep.subr.bf16.mxu0 0
    %2736 = vmatpush1.bf16.xpose.msra.mxu0 0
    %2737 = vmatprep.subr.bf16.mxu0 0
    %2738 = vmatpush1.bf16.xpose.msra.mxu0 0
    %2739 = vmatprep.subr.bf16.mxu0 0
    %2740 = vmatpush1.bf16.xpose.msra.mxu0 0
    %2741 = vmatprep.subr.bf16.mxu0 0
    %2742 = vmatpush1.bf16.xpose.msra.mxu0 0
    %2743 = vmatprep.subr.bf16.mxu0 0
    %2744 = vmatpush1.bf16.xpose.msra.mxu0 0
    %2745 = vmatprep.subr.bf16.mxu0 0
    %2746 = vmatpush1.bf16.xpose.msra.mxu0 0
    %2747 = vmatprep.mubr.bf16.mxu0 0
    %2748 = vmatmul.mubr.bf16.gmra.mrb[0].mxu0 %v2710
    %v2749 = vpop.f32.mrb[0].mxu0
    %v2750 = vadd.f32 0.0, %v2749
    %v2751 = vpop.f32.mrb[0].mxu0
    %v2752 = vpop.f32.mrb[0].mxu0
    %v2753 = vadd.f32 0.0, %v2752
    %v2754 = vpop.f32.mrb[0].mxu0
    %2755 = vdwg.mxu0
    %v2756 = vmul.f32 %v2750, 0.35355338
    %v2757 = vmul.f32 %v2753, 0.35355338
    %v2758 = vadd.f32 %v2756, %v843
    %v2759 = vadd.f32 %v2757, %v843
    %v2760 = vsel %vm307, %v2758, -inf
    %2761 = vmax.xlane.f32.xlu0 %v2760
    %v2762 = vpop.xlane.xlu0 %2761
    %v2763 = vsel %vm307, %v2759, -inf
    %2764 = vmax.xlane.f32.xlu0 %v2763
    %v2765 = vpop.xlane.xlu0 %2764
    %v2766 = vsub.f32 %v2758, %v2762
    %v2767 = vsub.f32 %v2759, %v2765
    %v2768 = vmul.f32 %v2766, 1.442695
    %v2769 = vpow.pop %v2768
    %v2770 = vmul.f32 %v2767, 1.442695
    %v2771 = vpow.pop %v2770
    %v2772 = vsel %vm307, %v2769, 0.0
    %2773 = vadd.xlane.f32.xlu0 %v2772
    %v2774 = vpop.xlane.xlu0 %2773
    %v2775 = vsel %vm307, %v2771, 0.0
    %2776 = vadd.xlane.f32.xlu0 %v2775
    %v2777 = vpop.xlane.xlu0 %2776
    %v2778 = vrcp.pop %v2774
    %v2779 = vmul.f32 %v2769, %v2778
    %v2780 = vrcp.pop %v2777
    %v2781 = vmul.f32 %v2771, %v2780
    %v2782 = vpack.c.bf16 %v2781, %v2779
    %2783 = vrot.lane.b32.xlu0 %v2455, 48
    %v2784 = vpop.permute.xlu0 %2783
    %v2787 = vsel %vm307, %v2782, 0
    %2789 = vmatprep.subr.bf16.mxu0 0
    %2790 = vmatpush1.bf16.msra.mxu0 %v2784
    %2791 = vmatprep.subr.bf16.mxu0 0
    %2792 = vmatpush1.bf16.msra.mxu0 0
    %2793 = vmatprep.subr.bf16.mxu0 0
    %2794 = vmatpush1.bf16.msra.mxu0 0
    %2795 = vmatprep.subr.bf16.mxu0 0
    %2796 = vmatpush1.bf16.msra.mxu0 0
    %2797 = vmatprep.subr.bf16.mxu0 0
    %2798 = vmatpush1.bf16.msra.mxu0 0
    %2799 = vmatprep.subr.bf16.mxu0 0
    %2800 = vmatpush1.bf16.msra.mxu0 0
    %2801 = vmatprep.subr.bf16.mxu0 0
    %2802 = vmatpush1.bf16.msra.mxu0 0
    %2803 = vmatprep.subr.bf16.mxu0 0
    %2804 = vmatpush1.bf16.msra.mxu0 0
    %2805 = vmatprep.subr.bf16.mxu0 0
    %2806 = vmatpush1.bf16.msra.mxu0 0
    %2807 = vmatprep.subr.bf16.mxu0 0
    %2808 = vmatpush1.bf16.msra.mxu0 0
    %2809 = vmatprep.subr.bf16.mxu0 0
    %2810 = vmatpush1.bf16.msra.mxu0 0
    %2811 = vmatprep.subr.bf16.mxu0 0
    %2812 = vmatpush1.bf16.msra.mxu0 0
    %2813 = vmatprep.subr.bf16.mxu0 0
    %2814 = vmatpush1.bf16.msra.mxu0 0
    %2815 = vmatprep.subr.bf16.mxu0 0
    %2816 = vmatpush1.bf16.msra.mxu0 0
    %2817 = vmatprep.subr.bf16.mxu0 0
    %2818 = vmatpush1.bf16.msra.mxu0 0
    %2819 = vmatprep.subr.bf16.mxu0 0
    %2820 = vmatpush1.bf16.msra.mxu0 0
    %2821 = vmatprep.mubr.bf16.mxu0 0
    %2822 = vmatmul.mubr.bf16.gmra.mrb[0].mxu0 %v2787
    %v2823 = vpop.f32.mrb[0].mxu0
    %v2824 = vadd.f32 0.0, %v2823
    %v2825 = vpop.f32.mrb[0].mxu0
    %v2826 = vpop.f32.mrb[0].mxu0
    %v2827 = vadd.f32 0.0, %v2826
    %v2828 = vpop.f32.mrb[0].mxu0
    %2829 = vdwg.mxu0
    %2830 = vrot.lane.b32.xlu0 %v2455, 104
    %v2831 = vpop.permute.xlu0 %2830
    %2832 = vrot.lane.b32.xlu0 %v2455, 72
    %v2833 = vpop.permute.xlu0 %2832
    %v2835 = vsel %vm249, %v2831, 0
    %v2838 = vsel %vm249, %v2833, 0
    %2840 = vmatprep.subr.bf16.mxu0 0
    %2841 = vmatpush1.bf16.xpose.msra.mxu0 %v2838
    %2842 = vmatprep.subr.bf16.mxu0 0
    %2843 = vmatpush1.bf16.xpose.msra.mxu0 0
    %2844 = vmatprep.subr.bf16.mxu0 0
    %2845 = vmatpush1.bf16.xpose.msra.mxu0 0
    %2846 = vmatprep.subr.bf16.mxu0 0
    %2847 = vmatpush1.bf16.xpose.msra.mxu0 0
    %2848 = vmatprep.subr.bf16.mxu0 0
    %2849 = vmatpush1.bf16.xpose.msra.mxu0 0
    %2850 = vmatprep.subr.bf16.mxu0 0
    %2851 = vmatpush1.bf16.xpose.msra.mxu0 0
    %2852 = vmatprep.subr.bf16.mxu0 0
    %2853 = vmatpush1.bf16.xpose.msra.mxu0 0
    %2854 = vmatprep.subr.bf16.mxu0 0
    %2855 = vmatpush1.bf16.xpose.msra.mxu0 0
    %2856 = vmatprep.subr.bf16.mxu0 0
    %2857 = vmatpush1.bf16.xpose.msra.mxu0 0
    %2858 = vmatprep.subr.bf16.mxu0 0
    %2859 = vmatpush1.bf16.xpose.msra.mxu0 0
    %2860 = vmatprep.subr.bf16.mxu0 0
    %2861 = vmatpush1.bf16.xpose.msra.mxu0 0
    %2862 = vmatprep.subr.bf16.mxu0 0
    %2863 = vmatpush1.bf16.xpose.msra.mxu0 0
    %2864 = vmatprep.subr.bf16.mxu0 0
    %2865 = vmatpush1.bf16.xpose.msra.mxu0 0
    %2866 = vmatprep.subr.bf16.mxu0 0
    %2867 = vmatpush1.bf16.xpose.msra.mxu0 0
    %2868 = vmatprep.subr.bf16.mxu0 0
    %2869 = vmatpush1.bf16.xpose.msra.mxu0 0
    %2870 = vmatprep.subr.bf16.mxu0 0
    %2871 = vmatpush1.bf16.xpose.msra.mxu0 0
    %2872 = vmatprep.mubr.bf16.mxu0 0
    %2873 = vmatmul.mubr.bf16.gmra.mrb[0].mxu0 %v2835
    %v2874 = vpop.f32.mrb[0].mxu0
    %v2875 = vadd.f32 0.0, %v2874
    %v2876 = vpop.f32.mrb[0].mxu0
    %v2877 = vpop.f32.mrb[0].mxu0
    %v2878 = vadd.f32 0.0, %v2877
    %v2879 = vpop.f32.mrb[0].mxu0
    %2880 = vdwg.mxu0
    %v2881 = vmul.f32 %v2875, 0.35355338
    %v2882 = vmul.f32 %v2878, 0.35355338
    %v2883 = vadd.f32 %v2881, %v843
    %v2884 = vadd.f32 %v2882, %v843
    %v2885 = vsel %vm307, %v2883, -inf
    %2886 = vmax.xlane.f32.xlu0 %v2885
    %v2887 = vpop.xlane.xlu0 %2886
    %v2888 = vsel %vm307, %v2884, -inf
    %2889 = vmax.xlane.f32.xlu0 %v2888
    %v2890 = vpop.xlane.xlu0 %2889
    %v2891 = vsub.f32 %v2883, %v2887
    %v2892 = vsub.f32 %v2884, %v2890
    %v2893 = vmul.f32 %v2891, 1.442695
    %v2894 = vpow.pop %v2893
    %v2895 = vmul.f32 %v2892, 1.442695
    %v2896 = vpow.pop %v2895
    %v2897 = vsel %vm307, %v2894, 0.0
    %2898 = vadd.xlane.f32.xlu0 %v2897
    %v2899 = vpop.xlane.xlu0 %2898
    %v2900 = vsel %vm307, %v2896, 0.0
    %2901 = vadd.xlane.f32.xlu0 %v2900
    %v2902 = vpop.xlane.xlu0 %2901
    %v2903 = vrcp.pop %v2899
    %v2904 = vmul.f32 %v2894, %v2903
    %v2905 = vrcp.pop %v2902
    %v2906 = vmul.f32 %v2896, %v2905
    %v2907 = vpack.c.bf16 %v2906, %v2904
    %2908 = vrot.lane.b32.xlu0 %v2455, 40
    %v2909 = vpop.permute.xlu0 %2908
    %v2912 = vsel %vm307, %v2907, 0
    %2914 = vmatprep.subr.bf16.mxu0 0
    %2915 = vmatpush1.bf16.msra.mxu0 %v2909
    %2916 = vmatprep.subr.bf16.mxu0 0
    %2917 = vmatpush1.bf16.msra.mxu0 0
    %2918 = vmatprep.subr.bf16.mxu0 0
    %2919 = vmatpush1.bf16.msra.mxu0 0
    %2920 = vmatprep.subr.bf16.mxu0 0
    %2921 = vmatpush1.bf16.msra.mxu0 0
    %2922 = vmatprep.subr.bf16.mxu0 0
    %2923 = vmatpush1.bf16.msra.mxu0 0
    %2924 = vmatprep.subr.bf16.mxu0 0
    %2925 = vmatpush1.bf16.msra.mxu0 0
    %2926 = vmatprep.subr.bf16.mxu0 0
    %2927 = vmatpush1.bf16.msra.mxu0 0
    %2928 = vmatprep.subr.bf16.mxu0 0
    %2929 = vmatpush1.bf16.msra.mxu0 0
    %2930 = vmatprep.subr.bf16.mxu0 0
    %2931 = vmatpush1.bf16.msra.mxu0 0
    %2932 = vmatprep.subr.bf16.mxu0 0
    %2933 = vmatpush1.bf16.msra.mxu0 0
    %2934 = vmatprep.subr.bf16.mxu0 0
    %2935 = vmatpush1.bf16.msra.mxu0 0
    %2936 = vmatprep.subr.bf16.mxu0 0
    %2937 = vmatpush1.bf16.msra.mxu0 0
    %2938 = vmatprep.subr.bf16.mxu0 0
    %2939 = vmatpush1.bf16.msra.mxu0 0
    %2940 = vmatprep.subr.bf16.mxu0 0
    %2941 = vmatpush1.bf16.msra.mxu0 0
    %2942 = vmatprep.subr.bf16.mxu0 0
    %2943 = vmatpush1.bf16.msra.mxu0 0
    %2944 = vmatprep.subr.bf16.mxu0 0
    %2945 = vmatpush1.bf16.msra.mxu0 0
    %2946 = vmatprep.mubr.bf16.mxu0 0
    %2947 = vmatmul.mubr.bf16.gmra.mrb[0].mxu0 %v2912
    %v2948 = vpop.f32.mrb[0].mxu0
    %v2949 = vadd.f32 0.0, %v2948
    %v2950 = vpop.f32.mrb[0].mxu0
    %v2951 = vpop.f32.mrb[0].mxu0
    %v2952 = vadd.f32 0.0, %v2951
    %v2953 = vpop.f32.mrb[0].mxu0
    %2954 = vdwg.mxu0
    %2957 = vrot.lane.b32.xlu0 %v2699, 8
    %v2958 = vpop.permute.xlu0 %2957
    %2959 = vrot.lane.b32.xlu0 %v2702, 8
    %v2960 = vpop.permute.xlu0 %2959
    %2965 = vrot.lane.b32.xlu0 %v2824, 16
    %v2966 = vpop.permute.xlu0 %2965
    %2967 = vrot.lane.b32.xlu0 %v2827, 16
    %v2968 = vpop.permute.xlu0 %2967
    %2973 = vrot.lane.b32.xlu0 %v2949, 24
    %v2974 = vpop.permute.xlu0 %2973
    %2975 = vrot.lane.b32.xlu0 %v2952, 24
    %v2976 = vpop.permute.xlu0 %2975
    %v2979 = vsel %vm249, %v2574, %v2958
    %v2980 = vsel %vm249, %v2577, %v2960
    %v2981 = vsel %vm307, %v2979, %v2966
    %v2982 = vsel %vm307, %v2980, %v2968
    %v2983 = vsel %vm781, %v2981, %v2974
    %v2984 = vsel %vm781, %v2982, %v2976
    %s2985 = scalar_lea.vmem %s7, 16
    %v2986 = vld [vmem:[%s2985] sm:$0xf]
    %v2987 = vld [vmem:[%s2985 + $0x4] sm:$0xf]
    %v2988 = vld [vmem:[%s2985 + $0x8] sm:$0xf]
    %v2989 = vld [vmem:[%s2985 + $0xc] sm:$0xf]
    %v2990 = vpack.c.bf16 %v2454, %v2453
    %v2991 = vpack.c.bf16 %v2984, %v2983
    %s2992 = scalar_lea.vmem %s8, 1
    %v2993 = vld [vmem:[%s2992] sm:$0x1]
    %v2995 = vlaneseq
    %v2996 = vshrl.u32 %v2995, 7
    %v2997 = vsub.s32 0, %v2996
    %v2998 = vrot.slane %v2993, %v2997
    %v3004 = vunpack.c.l.b16 %v2986
    %v3005 = vunpack.c.l.b16 %v2987
    %v3006 = vunpack.c.l.b16 %v2988
    %v3007 = vunpack.c.l.b16 %v2989
    %v3008 = vpack.c.b16 %v3005, %v3004
    %v3009 = vpack.c.b16 %v3007, %v3006
    %v3013 = vsel %vm90, %v2990, 0
    %v3016 = vsel %vm90, %v2991, 0
    %3018 = vmatprep.subr.bf16.mxu0 0
    %3019 = vmatpush1.bf16.msra.mxu0 %v3008
    %3020 = vmatprep.subr.bf16.mxu0 0
    %3021 = vmatpush1.bf16.msra.mxu0 %v3009
    %3022 = vmatprep.subr.bf16.mxu0 0
    %3023 = vmatpush1.bf16.msra.mxu0 0
    %3024 = vmatprep.subr.bf16.mxu0 0
    %3025 = vmatpush1.bf16.msra.mxu0 0
    %3026 = vmatprep.subr.bf16.mxu0 0
    %3027 = vmatpush1.bf16.msra.mxu0 0
    %3028 = vmatprep.subr.bf16.mxu0 0
    %3029 = vmatpush1.bf16.msra.mxu0 0
    %3030 = vmatprep.subr.bf16.mxu0 0
    %3031 = vmatpush1.bf16.msra.mxu0 0
    %3032 = vmatprep.subr.bf16.mxu0 0
    %3033 = vmatpush1.bf16.msra.mxu0 0
    %3034 = vmatprep.subr.bf16.mxu0 0
    %3035 = vmatpush1.bf16.msra.mxu0 0
    %3036 = vmatprep.subr.bf16.mxu0 0
    %3037 = vmatpush1.bf16.msra.mxu0 0
    %3038 = vmatprep.subr.bf16.mxu0 0
    %3039 = vmatpush1.bf16.msra.mxu0 0
    %3040 = vmatprep.subr.bf16.mxu0 0
    %3041 = vmatpush1.bf16.msra.mxu0 0
    %3042 = vmatprep.subr.bf16.mxu0 0
    %3043 = vmatpush1.bf16.msra.mxu0 0
    %3044 = vmatprep.subr.bf16.mxu0 0
    %3045 = vmatpush1.bf16.msra.mxu0 0
    %3046 = vmatprep.subr.bf16.mxu0 0
    %3047 = vmatpush1.bf16.msra.mxu0 0
    %3048 = vmatprep.subr.bf16.mxu0 0
    %3049 = vmatpush1.bf16.msra.mxu0 0
    %3050 = vmatprep.mubr.bf16.mxu0 0
    %3051 = vmatmul.mubr.bf16.gmra.mrb[0].mxu0 %v3013
    %v3052 = vpop.f32.mrb[0].mxu0
    %v3053 = vadd.f32 %v2998, %v3052
    %v3054 = vpop.f32.mrb[0].mxu0
    %v3055 = vpop.f32.mrb[0].mxu0
    %v3056 = vadd.f32 %v2998, %v3055
    %v3057 = vpop.f32.mrb[0].mxu0
    %3058 = vmatprep.mubr.bf16.mxu0 0
    %3059 = vmatmul.mubr.bf16.gmra.mrb[0].mxu0 %v3016
    %v3060 = vpop.f32.mrb[0].mxu0
    %v3061 = vadd.f32 %v2998, %v3060
    %v3062 = vpop.f32.mrb[0].mxu0
    %v3063 = vpop.f32.mrb[0].mxu0
    %v3064 = vadd.f32 %v2998, %v3063
    %v3065 = vpop.f32.mrb[0].mxu0
    %3066 = vdwg.mxu0
    %v3067 = vadd.f32 %v3053, %v1839
    %v3068 = vadd.f32 %v3056, %v1840
    %v3069 = vadd.f32 %v3061, %v1841
    %v3070 = vadd.f32 %v3064, %v1842
    %s3071 = scalar_lea.vmem %s9, 1
    %v3072 = vld [vmem:[%s3071] sm:$0x1]
    %s3073 = scalar_lea.vmem %s10, 1
    %v3074 = vld [vmem:[%s3073] sm:$0x1]
    %v3075 = vsel %vm90, %v3067, 0.0
    %3076 = vadd.xlane.f32.xlu0 %v3075
    %v3077 = vpop.xlane.xlu0 %3076
    %v3078 = vsel %vm90, %v3068, 0.0
    %3079 = vadd.xlane.f32.xlu0 %v3078
    %v3080 = vpop.xlane.xlu0 %3079
    %v3081 = vsel %vm90, %v3069, 0.0
    %3082 = vadd.xlane.f32.xlu0 %v3081
    %v3083 = vpop.xlane.xlu0 %3082
    %v3084 = vsel %vm90, %v3070, 0.0
    %3085 = vadd.xlane.f32.xlu0 %v3084
    %v3086 = vpop.xlane.xlu0 %3085
    %v3087 = vmul.f32 %v3077, %v103
    %v3088 = vmul.f32 %v3080, %v103
    %v3089 = vmul.f32 %v3083, %v103
    %v3090 = vmul.f32 %v3086, %v103
    %v3091 = vsub.f32 %v3067, %v3087
    %v3092 = vsub.f32 %v3068, %v3088
    %v3093 = vsub.f32 %v3069, %v3089
    %v3094 = vsub.f32 %v3070, %v3090
    %v3095 = vmul.f32 %v3091, %v3091
    %v3096 = vmul.f32 %v3092, %v3092
    %v3097 = vmul.f32 %v3093, %v3093
    %v3098 = vmul.f32 %v3094, %v3094
    %v3099 = vsel %vm90, %v3095, 0.0
    %3100 = vadd.xlane.f32.xlu0 %v3099
    %v3101 = vpop.xlane.xlu0 %3100
    %v3102 = vsel %vm90, %v3096, 0.0
    %3103 = vadd.xlane.f32.xlu0 %v3102
    %v3104 = vpop.xlane.xlu0 %3103
    %v3105 = vsel %vm90, %v3097, 0.0
    %3106 = vadd.xlane.f32.xlu0 %v3105
    %v3107 = vpop.xlane.xlu0 %3106
    %v3108 = vsel %vm90, %v3098, 0.0
    %3109 = vadd.xlane.f32.xlu0 %v3108
    %v3110 = vpop.xlane.xlu0 %3109
    %v3111 = vmul.f32 %v3101, %v103
    %v3112 = vmul.f32 %v3104, %v103
    %v3113 = vmul.f32 %v3107, %v103
    %v3114 = vmul.f32 %v3110, %v103
    %v3115 = vadd.f32 %v3111, 1e-12
    %v3116 = vadd.f32 %v3112, 1e-12
    %v3117 = vadd.f32 %v3113, 1e-12
    %v3118 = vadd.f32 %v3114, 1e-12
    %v3119 = vrsqrt.pop %v3115
    %v3120 = vrsqrt.pop %v3116
    %v3121 = vrsqrt.pop %v3117
    %v3122 = vrsqrt.pop %v3118
    %v3123 = vmul.f32 %v3091, %v3119
    %v3124 = vmul.f32 %v3092, %v3120
    %v3125 = vmul.f32 %v3093, %v3121
    %v3126 = vmul.f32 %v3094, %v3122
    %v3128 = vlaneseq
    %v3129 = vshrl.u32 %v3128, 7
    %v3130 = vsub.s32 0, %v3129
    %v3131 = vrot.slane %v3072, %v3130
    %v3133 = vmul.f32 %v3123, %v3131
    %v3134 = vmul.f32 %v3124, %v3131
    %v3135 = vmul.f32 %v3125, %v3131
    %v3136 = vmul.f32 %v3126, %v3131
    %v3138 = vlaneseq
    %v3139 = vshrl.u32 %v3138, 7
    %v3140 = vsub.s32 0, %v3139
    %v3141 = vrot.slane %v3074, %v3140
    %v3143 = vadd.f32 %v3133, %v3141
    %v3144 = vadd.f32 %v3134, %v3141
    %v3145 = vadd.f32 %v3135, %v3141
    %v3146 = vadd.f32 %v3136, %v3141
    %s3147 = scalar_lea.vmem %s11, 16
    %v3148 = vld [vmem:[%s3147] sm:$0xf]
    %v3149 = vld [vmem:[%s3147 + $0x4] sm:$0xf]
    %v3150 = vld [vmem:[%s3147 + $0x8] sm:$0xf]
    %v3151 = vld [vmem:[%s3147 + $0xc] sm:$0xf]
    %v3152 = vpack.c.bf16 %v3144, %v3143
    %v3153 = vpack.c.bf16 %v3146, %v3145
    %s3154 = scalar_lea.vmem %s12, 1
    %v3155 = vld [vmem:[%s3154] sm:$0x1]
    %v3157 = vlaneseq
    %v3158 = vshrl.u32 %v3157, 7
    %v3159 = vsub.s32 0, %v3158
    %v3160 = vrot.slane %v3155, %v3159
    %v3166 = vunpack.c.l.b16 %v3148
    %v3167 = vunpack.c.l.b16 %v3149
    %v3168 = vunpack.c.l.b16 %v3150
    %v3169 = vunpack.c.l.b16 %v3151
    %v3170 = vpack.c.b16 %v3167, %v3166
    %v3171 = vpack.c.b16 %v3169, %v3168
    %v3175 = vsel %vm90, %v3152, 0
    %v3178 = vsel %vm90, %v3153, 0
    %3180 = vmatprep.subr.bf16.mxu0 0
    %3181 = vmatpush1.bf16.msra.mxu0 %v3170
    %3182 = vmatprep.subr.bf16.mxu0 0
    %3183 = vmatpush1.bf16.msra.mxu0 %v3171
    %3184 = vmatprep.subr.bf16.mxu0 0
    %3185 = vmatpush1.bf16.msra.mxu0 0
    %3186 = vmatprep.subr.bf16.mxu0 0
    %3187 = vmatpush1.bf16.msra.mxu0 0
    %3188 = vmatprep.subr.bf16.mxu0 0
    %3189 = vmatpush1.bf16.msra.mxu0 0
    %3190 = vmatprep.subr.bf16.mxu0 0
    %3191 = vmatpush1.bf16.msra.mxu0 0
    %3192 = vmatprep.subr.bf16.mxu0 0
    %3193 = vmatpush1.bf16.msra.mxu0 0
    %3194 = vmatprep.subr.bf16.mxu0 0
    %3195 = vmatpush1.bf16.msra.mxu0 0
    %3196 = vmatprep.subr.bf16.mxu0 0
    %3197 = vmatpush1.bf16.msra.mxu0 0
    %3198 = vmatprep.subr.bf16.mxu0 0
    %3199 = vmatpush1.bf16.msra.mxu0 0
    %3200 = vmatprep.subr.bf16.mxu0 0
    %3201 = vmatpush1.bf16.msra.mxu0 0
    %3202 = vmatprep.subr.bf16.mxu0 0
    %3203 = vmatpush1.bf16.msra.mxu0 0
    %3204 = vmatprep.subr.bf16.mxu0 0
    %3205 = vmatpush1.bf16.msra.mxu0 0
    %3206 = vmatprep.subr.bf16.mxu0 0
    %3207 = vmatpush1.bf16.msra.mxu0 0
    %3208 = vmatprep.subr.bf16.mxu0 0
    %3209 = vmatpush1.bf16.msra.mxu0 0
    %3210 = vmatprep.subr.bf16.mxu0 0
    %3211 = vmatpush1.bf16.msra.mxu0 0
    %3212 = vmatprep.mubr.bf16.mxu0 0
    %3213 = vmatmul.mubr.bf16.gmra.mrb[0].mxu0 %v3175
    %v3214 = vpop.f32.mrb[0].mxu0
    %v3215 = vadd.f32 %v3160, %v3214
    %v3216 = vpop.f32.mrb[0].mxu0
    %v3217 = vpop.f32.mrb[0].mxu0
    %v3218 = vadd.f32 %v3160, %v3217
    %v3219 = vpop.f32.mrb[0].mxu0
    %3220 = vmatprep.mubr.bf16.mxu0 0
    %3221 = vmatmul.mubr.bf16.gmra.mrb[0].mxu0 %v3178
    %v3222 = vpop.f32.mrb[0].mxu0
    %v3223 = vadd.f32 %v3160, %v3222
    %v3224 = vpop.f32.mrb[0].mxu0
    %v3225 = vpop.f32.mrb[0].mxu0
    %v3226 = vadd.f32 %v3160, %v3225
    %v3227 = vpop.f32.mrb[0].mxu0
    %3228 = vdwg.mxu0
    %v3229 = vmul.f32 %v3215, 0.5
    %v3230 = vmul.f32 %v3218, 0.5
    %v3231 = vmul.f32 %v3223, 0.5
    %v3232 = vmul.f32 %v3226, 0.5
    %v3233 = vmul.f32 %v3215, 0.70710677
    %v3234 = vmul.f32 %v3218, 0.70710677
    %v3235 = vmul.f32 %v3223, 0.70710677
    %v3236 = vmul.f32 %v3226, 0.70710677
    %vm3237 = vcmp.ge.f32.partialorder %v3233, 0.0
    %vm3238 = vcmp.ge.f32.partialorder %v3234, 0.0
    %vm3239 = vcmp.ge.f32.partialorder %v3235, 0.0
    %vm3240 = vcmp.ge.f32.partialorder %v3236, 0.0
    %v3241 = vsel %vm3237, 1.0, -1.0
    %v3242 = vsel %vm3238, 1.0, -1.0
    %v3243 = vsel %vm3239, 1.0, -1.0
    %v3244 = vsel %vm3240, 1.0, -1.0
    %v3245 = vand.u32 2147483647, %v3233
    %v3246 = vand.u32 2147483647, %v3234
    %v3247 = vand.u32 2147483647, %v3235
    %v3248 = vand.u32 2147483647, %v3236
    %v3249 = vmul.f32 %v3245, 0.3275911
    %v3250 = vmul.f32 %v3246, 0.3275911
    %v3251 = vmul.f32 %v3247, 0.3275911
    %v3252 = vmul.f32 %v3248, 0.3275911
    %v3253 = vadd.f32 %v3249, 1.0
    %v3254 = vadd.f32 %v3250, 1.0
    %v3255 = vadd.f32 %v3251, 1.0
    %v3256 = vadd.f32 %v3252, 1.0
    %v3257 = vrcp.pop %v3253
    %v3258 = vmul.f32 1.0, %v3257
    %v3259 = vrcp.pop %v3254
    %v3260 = vmul.f32 1.0, %v3259
    %v3261 = vrcp.pop %v3255
    %v3262 = vmul.f32 1.0, %v3261
    %v3263 = vrcp.pop %v3256
    %v3264 = vmul.f32 1.0, %v3263
    %v3265 = vmul.f32 %v3258, 1.0614054
    %v3266 = vmul.f32 %v3260, 1.0614054
    %v3267 = vmul.f32 %v3262, 1.0614054
    %v3268 = vmul.f32 %v3264, 1.0614054
    %v3269 = vadd.f32 %v3265, -1.4531521
    %v3270 = vadd.f32 %v3266, -1.4531521
    %v3271 = vadd.f32 %v3267, -1.4531521
    %v3272 = vadd.f32 %v3268, -1.4531521
    %v3273 = vmul.f32 %v3269, %v3258
    %v3274 = vmul.f32 %v3270, %v3260
    %v3275 = vmul.f32 %v3271, %v3262
    %v3276 = vmul.f32 %v3272, %v3264
    %v3277 = vadd.f32 %v3273, 1.4214138
    %v3278 = vadd.f32 %v3274, 1.4214138
    %v3279 = vadd.f32 %v3275, 1.4214138
    %v3280 = vadd.f32 %v3276, 1.4214138
    %v3281 = vmul.f32 %v3277, %v3258
    %v3282 = vmul.f32 %v3278, %v3260
    %v3283 = vmul.f32 %v3279, %v3262
    %v3284 = vmul.f32 %v3280, %v3264
    %v3285 = vadd.f32 %v3281, -0.28449672
    %v3286 = vadd.f32 %v3282, -0.28449672
    %v3287 = vadd.f32 %v3283, -0.28449672
    %v3288 = vadd.f32 %v3284, -0.28449672
    %v3289 = vmul.f32 %v3285, %v3258
    %v3290 = vmul.f32 %v3286, %v3260
    %v3291 = vmul.f32 %v3287, %v3262
    %v3292 = vmul.f32 %v3288, %v3264
    %v3293 = vadd.f32 %v3289, 0.2548296
    %v3294 = vadd.f32 %v3290, 0.2548296
    %v3295 = vadd.f32 %v3291, 0.2548296
    %v3296 = vadd.f32 %v3292, 0.2548296
    %v3297 = vmul.f32 %v3293, %v3258
    %v3298 = vmul.f32 %v3294, %v3260
    %v3299 = vmul.f32 %v3295, %v3262
    %v3300 = vmul.f32 %v3296, %v3264
    %v3301 = vsub.f32 0.0, %v3245
    %v3302 = vsub.f32 0.0, %v3246
    %v3303 = vsub.f32 0.0, %v3247
    %v3304 = vsub.f32 0.0, %v3248
    %v3305 = vmul.f32 %v3301, %v3245
    %v3306 = vmul.f32 %v3302, %v3246
    %v3307 = vmul.f32 %v3303, %v3247
    %v3308 = vmul.f32 %v3304, %v3248
    %v3309 = vmul.f32 %v3305, 1.442695
    %v3310 = vpow.pop %v3309
    %v3311 = vmul.f32 %v3306, 1.442695
    %v3312 = vpow.pop %v3311
    %v3313 = vmul.f32 %v3307, 1.442695
    %v3314 = vpow.pop %v3313
    %v3315 = vmul.f32 %v3308, 1.442695
    %v3316 = vpow.pop %v3315
    %v3317 = vmul.f32 %v3297, %v3310
    %v3318 = vmul.f32 %v3298, %v3312
    %v3319 = vmul.f32 %v3299, %v3314
    %v3320 = vmul.f32 %v3300, %v3316
    %v3321 = vsub.f32 1.0, %v3317
    %v3322 = vsub.f32 1.0, %v3318
    %v3323 = vsub.f32 1.0, %v3319
    %v3324 = vsub.f32 1.0, %v3320
    %v3325 = vmul.f32 %v3241, %v3321
    %v3326 = vmul.f32 %v3242, %v3322
    %v3327 = vmul.f32 %v3243, %v3323
    %v3328 = vmul.f32 %v3244, %v3324
    %v3329 = vadd.f32 %v3325, 1.0
    %v3330 = vadd.f32 %v3326, 1.0
    %v3331 = vadd.f32 %v3327, 1.0
    %v3332 = vadd.f32 %v3328, 1.0
    %v3333 = vmul.f32 %v3229, %v3329
    %v3334 = vmul.f32 %v3230, %v3330
    %v3335 = vmul.f32 %v3231, %v3331
    %v3336 = vmul.f32 %v3232, %v3332
    %s3337 = scalar_lea.vmem %s13, 32
    %v3338 = vld [vmem:[%s3337] sm:$0xf]
    %v3339 = vld [vmem:[%s3337 + $0x4] sm:$0xf]
    %v3340 = vld [vmem:[%s3337 + $0x8] sm:$0xf]
    %v3341 = vld [vmem:[%s3337 + $0xc] sm:$0xf]
    %v3342 = vld [vmem:[%s3337 + $0x10] sm:$0xf]
    %v3343 = vld [vmem:[%s3337 + $0x14] sm:$0xf]
    %v3344 = vld [vmem:[%s3337 + $0x18] sm:$0xf]
    %v3345 = vld [vmem:[%s3337 + $0x1c] sm:$0xf]
    %v3346 = vpack.c.bf16 %v3334, %v3333
    %v3347 = vpack.c.bf16 %v3336, %v3335
    %s3348 = scalar_lea.vmem %s14, 1
    %v3349 = vld [vmem:[%s3348] sm:$0x1]
    %v3351 = vlaneseq
    %v3352 = vshrl.u32 %v3351, 7
    %v3353 = vsub.s32 0, %v3352
    %v3354 = vrot.slane %v3349, %v3353
    %v3364 = vunpack.c.l.b16 %v3338
    %v3365 = vunpack.c.l.b16 %v3339
    %v3366 = vunpack.c.l.b16 %v3340
    %v3367 = vunpack.c.l.b16 %v3341
    %v3368 = vunpack.c.l.b16 %v3342
    %v3369 = vunpack.c.l.b16 %v3343
    %v3370 = vunpack.c.l.b16 %v3344
    %v3371 = vunpack.c.l.b16 %v3345
    %v3372 = vpack.c.b16 %v3365, %v3364
    %v3373 = vpack.c.b16 %v3367, %v3366
    %v3374 = vpack.c.b16 %v3369, %v3368
    %v3375 = vpack.c.b16 %v3371, %v3370
    %v3381 = vsel %vm1709, %v3346, 0
    %v3384 = vsel %vm1709, %v3347, 0
    %3386 = vmatprep.subr.bf16.mxu0 0
    %3387 = vmatpush1.bf16.msra.mxu0 %v3372
    %3388 = vmatprep.subr.bf16.mxu0 0
    %3389 = vmatpush1.bf16.msra.mxu0 %v3373
    %3390 = vmatprep.subr.bf16.mxu0 0
    %3391 = vmatpush1.bf16.msra.mxu0 %v3374
    %3392 = vmatprep.subr.bf16.mxu0 0
    %3393 = vmatpush1.bf16.msra.mxu0 %v3375
    %3394 = vmatprep.subr.bf16.mxu0 0
    %3395 = vmatpush1.bf16.msra.mxu0 0
    %3396 = vmatprep.subr.bf16.mxu0 0
    %3397 = vmatpush1.bf16.msra.mxu0 0
    %3398 = vmatprep.subr.bf16.mxu0 0
    %3399 = vmatpush1.bf16.msra.mxu0 0
    %3400 = vmatprep.subr.bf16.mxu0 0
    %3401 = vmatpush1.bf16.msra.mxu0 0
    %3402 = vmatprep.subr.bf16.mxu0 0
    %3403 = vmatpush1.bf16.msra.mxu0 0
    %3404 = vmatprep.subr.bf16.mxu0 0
    %3405 = vmatpush1.bf16.msra.mxu0 0
    %3406 = vmatprep.subr.bf16.mxu0 0
    %3407 = vmatpush1.bf16.msra.mxu0 0
    %3408 = vmatprep.subr.bf16.mxu0 0
    %3409 = vmatpush1.bf16.msra.mxu0 0
    %3410 = vmatprep.subr.bf16.mxu0 0
    %3411 = vmatpush1.bf16.msra.mxu0 0
    %3412 = vmatprep.subr.bf16.mxu0 0
    %3413 = vmatpush1.bf16.msra.mxu0 0
    %3414 = vmatprep.subr.bf16.mxu0 0
    %3415 = vmatpush1.bf16.msra.mxu0 0
    %3416 = vmatprep.subr.bf16.mxu0 0
    %3417 = vmatpush1.bf16.msra.mxu0 0
    %3418 = vmatprep.mubr.bf16.mxu0 0
    %3419 = vmatmul.mubr.bf16.gmra.mrb[0].mxu0 %v3381
    %v3420 = vpop.f32.mrb[0].mxu0
    %v3421 = vadd.f32 %v3354, %v3420
    %v3422 = vpop.f32.mrb[0].mxu0
    %v3423 = vpop.f32.mrb[0].mxu0
    %v3424 = vadd.f32 %v3354, %v3423
    %v3425 = vpop.f32.mrb[0].mxu0
    %3426 = vmatprep.mubr.bf16.mxu0 0
    %3427 = vmatmul.mubr.bf16.gmra.mrb[0].mxu0 %v3384
    %v3428 = vpop.f32.mrb[0].mxu0
    %v3429 = vadd.f32 %v3354, %v3428
    %v3430 = vpop.f32.mrb[0].mxu0
    %v3431 = vpop.f32.mrb[0].mxu0
    %v3432 = vadd.f32 %v3354, %v3431
    %v3433 = vpop.f32.mrb[0].mxu0
    %3434 = vdwg.mxu0
    %v3435 = vadd.f32 %v3421, %v3143
    %v3436 = vadd.f32 %v3424, %v3144
    %v3437 = vadd.f32 %v3429, %v3145
    %v3438 = vadd.f32 %v3432, %v3146
    %s3439 = scalar_lea.vmem %s15, 1
    %v3440 = vld [vmem:[%s3439] sm:$0x1]
    %s3441 = scalar_lea.vmem %s16, 1
    %v3442 = vld [vmem:[%s3441] sm:$0x1]
    %v3443 = vsel %vm90, %v3435, 0.0
    %3444 = vadd.xlane.f32.xlu0 %v3443
    %v3445 = vpop.xlane.xlu0 %3444
    %v3446 = vsel %vm90, %v3436, 0.0
    %3447 = vadd.xlane.f32.xlu0 %v3446
    %v3448 = vpop.xlane.xlu0 %3447
    %v3449 = vsel %vm90, %v3437, 0.0
    %3450 = vadd.xlane.f32.xlu0 %v3449
    %v3451 = vpop.xlane.xlu0 %3450
    %v3452 = vsel %vm90, %v3438, 0.0
    %3453 = vadd.xlane.f32.xlu0 %v3452
    %v3454 = vpop.xlane.xlu0 %3453
    %v3455 = vmul.f32 %v3445, %v103
    %v3456 = vmul.f32 %v3448, %v103
    %v3457 = vmul.f32 %v3451, %v103
    %v3458 = vmul.f32 %v3454, %v103
    %v3459 = vsub.f32 %v3435, %v3455
    %v3460 = vsub.f32 %v3436, %v3456
    %v3461 = vsub.f32 %v3437, %v3457
    %v3462 = vsub.f32 %v3438, %v3458
    %v3463 = vmul.f32 %v3459, %v3459
    %v3464 = vmul.f32 %v3460, %v3460
    %v3465 = vmul.f32 %v3461, %v3461
    %v3466 = vmul.f32 %v3462, %v3462
    %v3467 = vsel %vm90, %v3463, 0.0
    %3468 = vadd.xlane.f32.xlu0 %v3467
    %v3469 = vpop.xlane.xlu0 %3468
    %v3470 = vsel %vm90, %v3464, 0.0
    %3471 = vadd.xlane.f32.xlu0 %v3470
    %v3472 = vpop.xlane.xlu0 %3471
    %v3473 = vsel %vm90, %v3465, 0.0
    %3474 = vadd.xlane.f32.xlu0 %v3473
    %v3475 = vpop.xlane.xlu0 %3474
    %v3476 = vsel %vm90, %v3466, 0.0
    %3477 = vadd.xlane.f32.xlu0 %v3476
    %v3478 = vpop.xlane.xlu0 %3477
    %v3479 = vmul.f32 %v3469, %v103
    %v3480 = vmul.f32 %v3472, %v103
    %v3481 = vmul.f32 %v3475, %v103
    %v3482 = vmul.f32 %v3478, %v103
    %v3483 = vadd.f32 %v3479, 1e-12
    %v3484 = vadd.f32 %v3480, 1e-12
    %v3485 = vadd.f32 %v3481, 1e-12
    %v3486 = vadd.f32 %v3482, 1e-12
    %v3487 = vrsqrt.pop %v3483
    %v3488 = vrsqrt.pop %v3484
    %v3489 = vrsqrt.pop %v3485
    %v3490 = vrsqrt.pop %v3486
    %v3491 = vmul.f32 %v3459, %v3487
    %v3492 = vmul.f32 %v3460, %v3488
    %v3493 = vmul.f32 %v3461, %v3489
    %v3494 = vmul.f32 %v3462, %v3490
    %v3496 = vlaneseq
    %v3497 = vshrl.u32 %v3496, 7
    %v3498 = vsub.s32 0, %v3497
    %v3499 = vrot.slane %v3440, %v3498
    %v3501 = vmul.f32 %v3491, %v3499
    %v3502 = vmul.f32 %v3492, %v3499
    %v3503 = vmul.f32 %v3493, %v3499
    %v3504 = vmul.f32 %v3494, %v3499
    %v3506 = vlaneseq
    %v3507 = vshrl.u32 %v3506, 7
    %v3508 = vsub.s32 0, %v3507
    %v3509 = vrot.slane %v3442, %v3508
    %v3511 = vadd.f32 %v3501, %v3509
    %v3512 = vadd.f32 %v3502, %v3509
    %v3513 = vadd.f32 %v3503, %v3509
    %v3514 = vadd.f32 %v3504, %v3509
    %v3516 = vrot.slane %v3513, 7
    %vm3518 = vcmask 1040384
    %v3519 = vsel %vm3518, %v3511, %v3516
    %v3520 = vld [vmem:[%s17] sm:$0xf]
    %v3521 = vld [vmem:[%s17 + $0x4] sm:$0xf]
    %v3522 = vld [vmem:[%s17 + $0x8] sm:$0xf]
    %v3523 = vld [vmem:[%s17 + $0xc] sm:$0xf]
    %v3524 = vpack.c.bf16 %v3519, %v3519
    %v3525 = vld [vmem:[%s18] sm:$0x1]
    %v3527 = vlaneseq
    %v3528 = vshrl.u32 %v3527, 7
    %v3529 = vsub.s32 0, %v3528
    %v3530 = vrot.slane %v3525, %v3529
    %v3536 = vunpack.c.l.b16 %v3520
    %v3537 = vunpack.c.l.b16 %v3521
    %v3538 = vunpack.c.l.b16 %v3522
    %v3539 = vunpack.c.l.b16 %v3523
    %v3540 = vpack.c.b16 %v3537, %v3536
    %v3541 = vpack.c.b16 %v3539, %v3538
    %v3545 = vsel %vm90, %v3524, 0
    %3547 = vmatprep.subr.bf16.mxu0 0
    %3548 = vmatpush1.bf16.msra.mxu0 %v3540
    %3549 = vmatprep.subr.bf16.mxu0 0
    %3550 = vmatpush1.bf16.msra.mxu0 %v3541
    %3551 = vmatprep.subr.bf16.mxu0 0
    %3552 = vmatpush1.bf16.msra.mxu0 0
    %3553 = vmatprep.subr.bf16.mxu0 0
    %3554 = vmatpush1.bf16.msra.mxu0 0
    %3555 = vmatprep.subr.bf16.mxu0 0
    %3556 = vmatpush1.bf16.msra.mxu0 0
    %3557 = vmatprep.subr.bf16.mxu0 0
    %3558 = vmatpush1.bf16.msra.mxu0 0
    %3559 = vmatprep.subr.bf16.mxu0 0
    %3560 = vmatpush1.bf16.msra.mxu0 0
    %3561 = vmatprep.subr.bf16.mxu0 0
    %3562 = vmatpush1.bf16.msra.mxu0 0
    %3563 = vmatprep.subr.bf16.mxu0 0
    %3564 = vmatpush1.bf16.msra.mxu0 0
    %3565 = vmatprep.subr.bf16.mxu0 0
    %3566 = vmatpush1.bf16.msra.mxu0 0
    %3567 = vmatprep.subr.bf16.mxu0 0
    %3568 = vmatpush1.bf16.msra.mxu0 0
    %3569 = vmatprep.subr.bf16.mxu0 0
    %3570 = vmatpush1.bf16.msra.mxu0 0
    %3571 = vmatprep.subr.bf16.mxu0 0
    %3572 = vmatpush1.bf16.msra.mxu0 0
    %3573 = vmatprep.subr.bf16.mxu0 0
    %3574 = vmatpush1.bf16.msra.mxu0 0
    %3575 = vmatprep.subr.bf16.mxu0 0
    %3576 = vmatpush1.bf16.msra.mxu0 0
    %3577 = vmatprep.subr.bf16.mxu0 0
    %3578 = vmatpush1.bf16.msra.mxu0 0
    %3579 = vmatprep.mubr.bf16.mxu0 0
    %3580 = vmatmul.mubr.bf16.gmra.mrb[0].mxu0 %v3545
    %v3581 = vpop.f32.mrb[0].mxu0
    %v3582 = vadd.f32 %v3530, %v3581
    %v3583 = vpop.f32.mrb[0].mxu0
    %v3584 = vpop.f32.mrb[0].mxu0
    %v3585 = vpop.f32.mrb[0].mxu0
    %3586 = vdwg.mxu0
    %v3587 = vtanh.pop %v3582
    %v3588 = vld [vmem:[%s19] sm:$0xf]
    %v3589 = vld [vmem:[%s19 + $0x4] sm:$0xf]
    %v3590 = vld [vmem:[%s19 + $0x8] sm:$0xf]
    %v3591 = vld [vmem:[%s19 + $0xc] sm:$0xf]
    %v3592 = vpack.c.bf16 %v3587, %v3587
    %v3593 = vld [vmem:[%s20] sm:$0x1]
    %v3595 = vlaneseq
    %v3596 = vshrl.u32 %v3595, 7
    %v3597 = vsub.s32 0, %v3596
    %v3598 = vrot.slane %v3593, %v3597
    %v3604 = vunpack.c.l.b16 %v3588
    %v3605 = vunpack.c.l.b16 %v3589
    %v3606 = vunpack.c.l.b16 %v3590
    %v3607 = vunpack.c.l.b16 %v3591
    %v3608 = vpack.c.b16 %v3605, %v3604
    %v3609 = vpack.c.b16 %v3607, %v3606
    %v3613 = vsel %vm90, %v3592, 0
    %3615 = vmatprep.subr.bf16.mxu0 0
    %3616 = vmatpush1.bf16.msra.mxu0 %v3608
    %3617 = vmatprep.subr.bf16.mxu0 0
    %3618 = vmatpush1.bf16.msra.mxu0 %v3609
    %3619 = vmatprep.subr.bf16.mxu0 0
    %3620 = vmatpush1.bf16.msra.mxu0 0
    %3621 = vmatprep.subr.bf16.mxu0 0
    %3622 = vmatpush1.bf16.msra.mxu0 0
    %3623 = vmatprep.subr.bf16.mxu0 0
    %3624 = vmatpush1.bf16.msra.mxu0 0
    %3625 = vmatprep.subr.bf16.mxu0 0
    %3626 = vmatpush1.bf16.msra.mxu0 0
    %3627 = vmatprep.subr.bf16.mxu0 0
    %3628 = vmatpush1.bf16.msra.mxu0 0
    %3629 = vmatprep.subr.bf16.mxu0 0
    %3630 = vmatpush1.bf16.msra.mxu0 0
    %3631 = vmatprep.subr.bf16.mxu0 0
    %3632 = vmatpush1.bf16.msra.mxu0 0
    %3633 = vmatprep.subr.bf16.mxu0 0
    %3634 = vmatpush1.bf16.msra.mxu0 0
    %3635 = vmatprep.subr.bf16.mxu0 0
    %3636 = vmatpush1.bf16.msra.mxu0 0
    %3637 = vmatprep.subr.bf16.mxu0 0
    %3638 = vmatpush1.bf16.msra.mxu0 0
    %3639 = vmatprep.subr.bf16.mxu0 0
    %3640 = vmatpush1.bf16.msra.mxu0 0
    %3641 = vmatprep.subr.bf16.mxu0 0
    %3642 = vmatpush1.bf16.msra.mxu0 0
    %3643 = vmatprep.subr.bf16.mxu0 0
    %3644 = vmatpush1.bf16.msra.mxu0 0
    %3645 = vmatprep.subr.bf16.mxu0 0
    %3646 = vmatpush1.bf16.msra.mxu0 0
    %3647 = vmatprep.mubr.bf16.mxu0 0
    %3648 = vmatmul.mubr.bf16.gmra.mrb[0].mxu0 %v3613
    %v3649 = vpop.f32.mrb[0].mxu0
    %v3650 = vadd.f32 %v3598, %v3649
    %v3651 = vpop.f32.mrb[0].mxu0
    %v3652 = vpop.f32.mrb[0].mxu0
    %v3653 = vpop.f32.mrb[0].mxu0
    %3654 = vdwg.mxu0
    %vm3655 = vcmask 9216
    %3656 = vst.msk [vmem:[%s22] sm:$0x3] %vm3655, %v3650
    %v3657 = vlaneseq
    %v3658 = vshrl.u32 %v3657, 7
    %v3659 = vadd.s32 %v3658, 8
    %v3660 = vadd.s32 %v3658, 16
    %v3661 = vadd.s32 %v3658, 24
    %s3662 = sld [smem:[#allocation2]]
    %v3663 = vstv %s3662
    %vm3664 = vcmp.eq.s32.totalorder %v3658, %v3663
    %vm3665 = vcmp.eq.s32.totalorder %v3659, %v3663
    %vm3666 = vcmp.eq.s32.totalorder %v3660, %v3663
    %vm3667 = vcmp.eq.s32.totalorder %v3661, %v3663
    %v3668 = vsel %vm3664, 1, 0
    %v3669 = vsel %vm3665, 1, 0
    %v3670 = vsel %vm3666, 1, 0
    %v3671 = vsel %vm3667, 1, 0
    %vm3672 = vcmp.eq.s32.totalorder %v3668, 1
    %vm3673 = vcmp.eq.s32.totalorder %v3669, 1
    %vm3674 = vcmp.eq.s32.totalorder %v3670, 1
    %vm3675 = vcmp.eq.s32.totalorder %v3671, 1
    %v3676 = vsel %vm3672, %v3511, 0.0
    %v3677 = vsel %vm3673, %v3512, 0.0
    %v3678 = vsel %vm3674, %v3513, 0.0
    %v3679 = vsel %vm3675, %v3514, 0.0
    %v3680 = vsel %vm90, %v3676, 0.0
    %v3681 = vsel %vm90, %v3677, 0.0
    %v3682 = vadd.f32 %v3680, %v3681
    %v3683 = vsel %vm90, %v3678, 0.0
    %v3684 = vadd.f32 %v3682, %v3683
    %v3685 = vsel %vm90, %v3679, 0.0
    %v3686 = vadd.f32 %v3684, %v3685
    %v3687 = vrot.slane %v3686, 4
    %v3688 = vadd.f32 %v3686, %v3687
    %v3689 = vrot.slane %v3688, 2
    %v3690 = vadd.f32 %v3688, %v3689
    %v3691 = vrot.slane %v3690, 1
    %v3692 = vadd.f32 %v3690, %v3691
    %s3693 = sld [smem:[#allocation2 + $0x1]]
    %v3694 = vstv %s3693
    %vm3695 = vcmp.eq.s32.totalorder %v3658, %v3694
    %vm3696 = vcmp.eq.s32.totalorder %v3659, %v3694
    %vm3697 = vcmp.eq.s32.totalorder %v3660, %v3694
    %vm3698 = vcmp.eq.s32.totalorder %v3661, %v3694
    %v3699 = vsel %vm3695, 1, 0
    %v3700 = vsel %vm3696, 1, 0
    %v3701 = vsel %vm3697, 1, 0
    %v3702 = vsel %vm3698, 1, 0
    %vm3703 = vcmp.eq.s32.totalorder %v3699, 1
    %vm3704 = vcmp.eq.s32.totalorder %v3700, 1
    %vm3705 = vcmp.eq.s32.totalorder %v3701, 1
    %vm3706 = vcmp.eq.s32.totalorder %v3702, 1
    %v3707 = vsel %vm3703, %v3511, 0.0
    %v3708 = vsel %vm3704, %v3512, 0.0
    %v3709 = vsel %vm3705, %v3513, 0.0
    %v3710 = vsel %vm3706, %v3514, 0.0
    %v3711 = vsel %vm90, %v3707, 0.0
    %v3712 = vsel %vm90, %v3708, 0.0
    %v3713 = vadd.f32 %v3711, %v3712
    %v3714 = vsel %vm90, %v3709, 0.0
    %v3715 = vadd.f32 %v3713, %v3714
    %v3716 = vsel %vm90, %v3710, 0.0
    %v3717 = vadd.f32 %v3715, %v3716
    %v3718 = vrot.slane %v3717, 4
    %v3719 = vadd.f32 %v3717, %v3718
    %v3720 = vrot.slane %v3719, 2
    %v3721 = vadd.f32 %v3719, %v3720
    %v3722 = vrot.slane %v3721, 1
    %v3723 = vadd.f32 %v3721, %v3722
    %s3724 = sld [smem:[#allocation2 + $0x2]]
    %v3725 = vstv %s3724
    %vm3726 = vcmp.eq.s32.totalorder %v3658, %v3725
    %vm3727 = vcmp.eq.s32.totalorder %v3659, %v3725
    %vm3728 = vcmp.eq.s32.totalorder %v3660, %v3725
    %vm3729 = vcmp.eq.s32.totalorder %v3661, %v3725
    %v3730 = vsel %vm3726, 1, 0
    %v3731 = vsel %vm3727, 1, 0
    %v3732 = vsel %vm3728, 1, 0
    %v3733 = vsel %vm3729, 1, 0
    %vm3734 = vcmp.eq.s32.totalorder %v3730, 1
    %vm3735 = vcmp.eq.s32.totalorder %v3731, 1
    %vm3736 = vcmp.eq.s32.totalorder %v3732, 1
    %vm3737 = vcmp.eq.s32.totalorder %v3733, 1
    %v3738 = vsel %vm3734, %v3511, 0.0
    %v3739 = vsel %vm3735, %v3512, 0.0
    %v3740 = vsel %vm3736, %v3513, 0.0
    %v3741 = vsel %vm3737, %v3514, 0.0
    %v3742 = vsel %vm90, %v3738, 0.0
    %v3743 = vsel %vm90, %v3739, 0.0
    %v3744 = vadd.f32 %v3742, %v3743
    %v3745 = vsel %vm90, %v3740, 0.0
    %v3746 = vadd.f32 %v3744, %v3745
    %v3747 = vsel %vm90, %v3741, 0.0
    %v3748 = vadd.f32 %v3746, %v3747
    %v3749 = vrot.slane %v3748, 4
    %v3750 = vadd.f32 %v3748, %v3749
    %v3751 = vrot.slane %v3750, 2
    %v3752 = vadd.f32 %v3750, %v3751
    %v3753 = vrot.slane %v3752, 1
    %v3754 = vadd.f32 %v3752, %v3753
    %s3755 = sld [smem:[#allocation2 + $0x3]]
    %v3756 = vstv %s3755
    %vm3757 = vcmp.eq.s32.totalorder %v3658, %v3756
    %vm3758 = vcmp.eq.s32.totalorder %v3659, %v3756
    %vm3759 = vcmp.eq.s32.totalorder %v3660, %v3756
    %vm3760 = vcmp.eq.s32.totalorder %v3661, %v3756
    %v3761 = vsel %vm3757, 1, 0
    %v3762 = vsel %vm3758, 1, 0
    %v3763 = vsel %vm3759, 1, 0
    %v3764 = vsel %vm3760, 1, 0
    %vm3765 = vcmp.eq.s32.totalorder %v3761, 1
    %vm3766 = vcmp.eq.s32.totalorder %v3762, 1
    %vm3767 = vcmp.eq.s32.totalorder %v3763, 1
    %vm3768 = vcmp.eq.s32.totalorder %v3764, 1
    %v3769 = vsel %vm3765, %v3511, 0.0
    %v3770 = vsel %vm3766, %v3512, 0.0
    %v3771 = vsel %vm3767, %v3513, 0.0
    %v3772 = vsel %vm3768, %v3514, 0.0
    %v3773 = vsel %vm90, %v3769, 0.0
    %v3774 = vsel %vm90, %v3770, 0.0
    %v3775 = vadd.f32 %v3773, %v3774
    %v3776 = vsel %vm90, %v3771, 0.0
    %v3777 = vadd.f32 %v3775, %v3776
    %v3778 = vsel %vm90, %v3772, 0.0
    %v3779 = vadd.f32 %v3777, %v3778
    %v3780 = vrot.slane %v3779, 4
    %v3781 = vadd.f32 %v3779, %v3780
    %v3782 = vrot.slane %v3781, 2
    %v3783 = vadd.f32 %v3781, %v3782
    %v3784 = vrot.slane %v3783, 1
    %v3785 = vadd.f32 %v3783, %v3784
    %s3786 = sld [smem:[#allocation2 + $0x80]]
    %s3787 = sadd.s32 %s3786, 16
    %v3788 = vstv %s3787
    %vm3789 = vcmp.eq.s32.totalorder %v3658, %v3788
    %vm3790 = vcmp.eq.s32.totalorder %v3659, %v3788
    %vm3791 = vcmp.eq.s32.totalorder %v3660, %v3788
    %vm3792 = vcmp.eq.s32.totalorder %v3661, %v3788
    %v3793 = vsel %vm3789, 1, 0
    %v3794 = vsel %vm3790, 1, 0
    %v3795 = vsel %vm3791, 1, 0
    %v3796 = vsel %vm3792, 1, 0
    %vm3797 = vcmp.eq.s32.totalorder %v3793, 1
    %vm3798 = vcmp.eq.s32.totalorder %v3794, 1
    %vm3799 = vcmp.eq.s32.totalorder %v3795, 1
    %vm3800 = vcmp.eq.s32.totalorder %v3796, 1
    %v3801 = vsel %vm3797, %v3511, 0.0
    %v3802 = vsel %vm3798, %v3512, 0.0
    %v3803 = vsel %vm3799, %v3513, 0.0
    %v3804 = vsel %vm3800, %v3514, 0.0
    %v3805 = vsel %vm90, %v3801, 0.0
    %v3806 = vsel %vm90, %v3802, 0.0
    %v3807 = vadd.f32 %v3805, %v3806
    %v3808 = vsel %vm90, %v3803, 0.0
    %v3809 = vadd.f32 %v3807, %v3808
    %v3810 = vsel %vm90, %v3804, 0.0
    %v3811 = vadd.f32 %v3809, %v3810
    %v3812 = vrot.slane %v3811, 4
    %v3813 = vadd.f32 %v3811, %v3812
    %v3814 = vrot.slane %v3813, 2
    %v3815 = vadd.f32 %v3813, %v3814
    %v3816 = vrot.slane %v3815, 1
    %v3817 = vadd.f32 %v3815, %v3816
    %s3818 = sld [smem:[#allocation2 + $0x81]]
    %s3819 = sadd.s32 %s3818, 16
    %v3820 = vstv %s3819
    %vm3821 = vcmp.eq.s32.totalorder %v3658, %v3820
    %vm3822 = vcmp.eq.s32.totalorder %v3659, %v3820
    %vm3823 = vcmp.eq.s32.totalorder %v3660, %v3820
    %vm3824 = vcmp.eq.s32.totalorder %v3661, %v3820
    %v3825 = vsel %vm3821, 1, 0
    %v3826 = vsel %vm3822, 1, 0
    %v3827 = vsel %vm3823, 1, 0
    %v3828 = vsel %vm3824, 1, 0
    %vm3829 = vcmp.eq.s32.totalorder %v3825, 1
    %vm3830 = vcmp.eq.s32.totalorder %v3826, 1
    %vm3831 = vcmp.eq.s32.totalorder %v3827, 1
    %vm3832 = vcmp.eq.s32.totalorder %v3828, 1
    %v3833 = vsel %vm3829, %v3511, 0.0
    %v3834 = vsel %vm3830, %v3512, 0.0
    %v3835 = vsel %vm3831, %v3513, 0.0
    %v3836 = vsel %vm3832, %v3514, 0.0
    %v3837 = vsel %vm90, %v3833, 0.0
    %v3838 = vsel %vm90, %v3834, 0.0
    %v3839 = vadd.f32 %v3837, %v3838
    %v3840 = vsel %vm90, %v3835, 0.0
    %v3841 = vadd.f32 %v3839, %v3840
    %v3842 = vsel %vm90, %v3836, 0.0
    %v3843 = vadd.f32 %v3841, %v3842
    %v3844 = vrot.slane %v3843, 4
    %v3845 = vadd.f32 %v3843, %v3844
    %v3846 = vrot.slane %v3845, 2
    %v3847 = vadd.f32 %v3845, %v3846
    %v3848 = vrot.slane %v3847, 1
    %v3849 = vadd.f32 %v3847, %v3848
    %s3850 = sld [smem:[#allocation2 + $0x82]]
    %s3851 = sadd.s32 %s3850, 16
    %v3852 = vstv %s3851
    %vm3853 = vcmp.eq.s32.totalorder %v3658, %v3852
    %vm3854 = vcmp.eq.s32.totalorder %v3659, %v3852
    %vm3855 = vcmp.eq.s32.totalorder %v3660, %v3852
    %vm3856 = vcmp.eq.s32.totalorder %v3661, %v3852
    %v3857 = vsel %vm3853, 1, 0
    %v3858 = vsel %vm3854, 1, 0
    %v3859 = vsel %vm3855, 1, 0
    %v3860 = vsel %vm3856, 1, 0
    %vm3861 = vcmp.eq.s32.totalorder %v3857, 1
    %vm3862 = vcmp.eq.s32.totalorder %v3858, 1
    %vm3863 = vcmp.eq.s32.totalorder %v3859, 1
    %vm3864 = vcmp.eq.s32.totalorder %v3860, 1
    %v3865 = vsel %vm3861, %v3511, 0.0
    %v3866 = vsel %vm3862, %v3512, 0.0
    %v3867 = vsel %vm3863, %v3513, 0.0
    %v3868 = vsel %vm3864, %v3514, 0.0
    %v3869 = vsel %vm90, %v3865, 0.0
    %v3870 = vsel %vm90, %v3866, 0.0
    %v3871 = vadd.f32 %v3869, %v3870
    %v3872 = vsel %vm90, %v3867, 0.0
    %v3873 = vadd.f32 %v3871, %v3872
    %v3874 = vsel %vm90, %v3868, 0.0
    %v3875 = vadd.f32 %v3873, %v3874
    %v3876 = vrot.slane %v3875, 4
    %v3877 = vadd.f32 %v3875, %v3876
    %v3878 = vrot.slane %v3877, 2
    %v3879 = vadd.f32 %v3877, %v3878
    %v3880 = vrot.slane %v3879, 1
    %v3881 = vadd.f32 %v3879, %v3880
    %s3882 = sld [smem:[#allocation2 + $0x83]]
    %s3883 = sadd.s32 %s3882, 16
    %v3884 = vstv %s3883
    %vm3885 = vcmp.eq.s32.totalorder %v3658, %v3884
    %vm3886 = vcmp.eq.s32.totalorder %v3659, %v3884
    %vm3887 = vcmp.eq.s32.totalorder %v3660, %v3884
    %vm3888 = vcmp.eq.s32.totalorder %v3661, %v3884
    %v3889 = vsel %vm3885, 1, 0
    %v3890 = vsel %vm3886, 1, 0
    %v3891 = vsel %vm3887, 1, 0
    %v3892 = vsel %vm3888, 1, 0
    %vm3893 = vcmp.eq.s32.totalorder %v3889, 1
    %vm3894 = vcmp.eq.s32.totalorder %v3890, 1
    %vm3895 = vcmp.eq.s32.totalorder %v3891, 1
    %vm3896 = vcmp.eq.s32.totalorder %v3892, 1
    %v3897 = vsel %vm3893, %v3511, 0.0
    %v3898 = vsel %vm3894, %v3512, 0.0
    %v3899 = vsel %vm3895, %v3513, 0.0
    %v3900 = vsel %vm3896, %v3514, 0.0
    %v3901 = vsel %vm90, %v3897, 0.0
    %v3902 = vsel %vm90, %v3898, 0.0
    %v3903 = vadd.f32 %v3901, %v3902
    %v3904 = vsel %vm90, %v3899, 0.0
    %v3905 = vadd.f32 %v3903, %v3904
    %v3906 = vsel %vm90, %v3900, 0.0
    %v3907 = vadd.f32 %v3905, %v3906
    %v3908 = vrot.slane %v3907, 4
    %v3909 = vadd.f32 %v3907, %v3908
    %v3910 = vrot.slane %v3909, 2
    %v3911 = vadd.f32 %v3909, %v3910
    %v3912 = vrot.slane %v3911, 1
    %v3913 = vadd.f32 %v3911, %v3912
    %v3914 = vsel %vm3518, %v3692, %v3723
    %vm3915 = vcmask 1041408
    %v3916 = vsel %vm3915, %v3914, %v3754
    %vm3917 = vcmask 1042432
    %v3918 = vsel %vm3917, %v3916, %v3785
    %vm3919 = vcmask 1043456
    %v3920 = vsel %vm3919, %v3918, %v3817
    %vm3921 = vcmask 1044480
    %v3922 = vsel %vm3921, %v3920, %v3849
    %vm3923 = vcmask 1045504
    %v3924 = vsel %vm3923, %v3922, %v3881
    %vm3925 = vcmask 1046528
    %v3926 = vsel %vm3925, %v3924, %v3913
    %3927 = vst.msk [vmem:[%s21] sm:$0xff] %vm90, %v3926
    // Predicated region
    $region90: #{bert_further_forward.2} parent=1 // pred_check
      _
    $region91: #{bert_further_forward.2} parent=1 // pred_check_branch
      %3929 = sbr.rel (0) target = $region93
    $region92: #{bert_further_forward.2} parent=1 // pred_region
      _
    $region93: #{bert_further_forward.2} parent=1 // pred_fallthru
      _
    // Predicated region
    $region94: #{bert_further_forward.2} parent=1 // pred_check
      _
    $region95: #{bert_further_forward.2} parent=1 // pred_check_branch
      %3931 = sbr.rel (0) target = $region97
    $region96: #{bert_further_forward.2} parent=1 // pred_region
      _
    $region97: #{bert_further_forward.2} parent=1 // pred_fallthru
      _
    // Predicated region
    $region98: #{bert_further_forward.2} parent=1 // pred_check
      _
    $region99: #{bert_further_forward.2} parent=1 // pred_check_branch
      %3933 = sbr.rel (0) target = $region101
    $region100: #{bert_further_forward.2} parent=1 // pred_region
      _
    $region101: #{bert_further_forward.2} parent=1 // pred_fallthru
      _
    // Predicated region
    $region102: #{bert_further_forward.2} parent=1 // pred_check
      _
    $region103: #{bert_further_forward.2} parent=1 // pred_check_branch
      %3935 = sbr.rel (0) target = $region105
    $region104: #{bert_further_forward.2} parent=1 // pred_region
      _
    $region105: #{bert_further_forward.2} parent=1 // pred_fallthru
      _
    %3936 = vsyncpa [#allocation3], 1

</llo_original>
